<compile_context>
chip_gen: v7x
topology: tpu7x:2x2x1
jax: 0.10.0
libtpu: 0.0.40
codegen_flags: <defaults>
</compile_context>

<pallas_src>
import functools

import jax
import jax.numpy as jnp
from jax.experimental import pallas as pl
from jax.experimental.pallas import tpu as pltpu


def _lstm_cell(gates, c_prev, H):
    """PyTorch-order (i,f,g,o) LSTM cell from a fused (B, 4H) gate pre-activation."""
    if 4 * H <= 128:
        # whole block is a single vreg: one sigmoid pass + one tanh pass, then slice
        sig = jax.nn.sigmoid(gates)
        th = jnp.tanh(gates)
        i_g = sig[:, 0:H]
        f_g = sig[:, H:2 * H]
        g_g = th[:, 2 * H:3 * H]
        o_g = sig[:, 3 * H:4 * H]
    else:
        # 4H spans several vregs: apply the right nonlinearity per gate band only
        i_g = jax.nn.sigmoid(gates[:, 0:H])
        f_g = jax.nn.sigmoid(gates[:, H:2 * H])
        g_g = jnp.tanh(gates[:, 2 * H:3 * H])
        o_g = jax.nn.sigmoid(gates[:, 3 * H:4 * H])
    c_new = f_g * c_prev + i_g * g_g
    h_new = o_g * jnp.tanh(c_new)
    return h_new, c_new


def _decoder_kernel(*refs, sos, A, H, L, unroll):
    if L > 1:
        (h0_ref, c0_ref, w0x_ref, wih_ref, whh_ref,
         b_ref, fcw_ref, fcb_ref, out_ref) = refs
    else:
        (h0_ref, c0_ref, w0x_ref, whh_ref,
         b_ref, fcw_ref, fcb_ref, out_ref) = refs
        wih_ref = None

    T, B, OP = out_ref.shape            # OP = lane-padded output width (>= 128)
    f32 = jnp.float32
    wdt = w0x_ref.dtype                 # compute dtype for MXU operands
    neg_inf = f32(-jnp.inf)

    # ---------------- hoisted loop invariants (read / broadcast exactly once) --
    lane = jax.lax.broadcasted_iota(jnp.int32, (B, OP), 1)
    act_mask = lane < A                 # activity-logit lanes [0, A)
    dur_mask = lane == A                # duration lane

    w0x = w0x_ref[...]                                           # (OP, 4H)
    whh = [whh_ref[l] for l in range(L)]                         # (H, 4H) each
    wih = [wih_ref[l - 1] for l in range(1, L)] if L > 1 else []
    bias = [jnp.broadcast_to(b_ref[l], (B, 4 * H)) for l in range(L)]
    fcw = fcw_ref[...]                                           # (H, OP)
    fcb = jnp.broadcast_to(fcb_ref[...], (B, OP))

    # Initial decoder input carried as full-lane [one-hot(act) | dur | 0-pad]
    # (B, OP): decoder_input[:, :, 0] = sos, duration = 0.  Never lane-sliced.
    x_in0 = (lane == sos).astype(f32)
    h0 = tuple(h0_ref[l] for l in range(L))
    c0 = tuple(c0_ref[l] for l in range(L))

    def cd(v):                                   # cast MXU operands (no-op f32)
        return v if v.dtype == wdt else v.astype(wdt)

    def step(x_in, h, c, need_next=True):
        h = list(h)
        c = list(c)

        # ---- layer 0: embedding folded into the input weight; split dots
        # (x @ W_in + h @ W_hh) -- no lane concat on the critical path.
        gates = (jnp.dot(cd(x_in), w0x, preferred_element_type=f32)
                 + jnp.dot(cd(h[0]), whh[0], preferred_element_type=f32)
                 + bias[0])
        h[0], c[0] = _lstm_cell(gates, c[0], H)
        x = h[0]

        # ---- layers >= 1
        for l in range(1, L):
            gates = (jnp.dot(cd(x), wih[l - 1], preferred_element_type=f32)
                     + jnp.dot(cd(h[l]), whh[l], preferred_element_type=f32)
                     + bias[l])
            h[l], c[l] = _lstm_cell(gates, c[l], H)
            x = h[l]

        # ---- fc head, lane-padded to OP -> unmasked per-step stores
        pred = jnp.dot(cd(x), fcw, preferred_element_type=f32) + fcb   # (B, OP)

        # log_softmax over activity lanes; stable log(sigmoid) on duration lane
        logits_m = jnp.where(act_mask, pred, neg_inf)
        m = jnp.max(logits_m, axis=-1, keepdims=True)
        lse = jnp.log(jnp.sum(jnp.exp(logits_m - m), axis=-1, keepdims=True)) + m
        e = jnp.exp(-jnp.abs(pred))
        log_sig = jnp.minimum(pred, 0.0) - jnp.log(1.0 + e)
        row = jnp.where(act_mask, pred - lse,
                        jnp.where(dur_mask, log_sig, 0.0))

        if not need_next:
            return row, None, tuple(h), tuple(c)

        # ---- pack(): next input = one-hot(argmax activity) ++ sigmoid(duration)
        # carried directly as lanes.  sigmoid reuses e (no extra EUP exp):
        #   x >= 0 : 1/(1+e)        x < 0 : e/(1+e)
        is_max = jnp.logical_and(act_mask, pred >= m)
        idx = jnp.min(jnp.where(is_max, lane, OP), axis=-1, keepdims=True)
        onehot = (lane == idx).astype(f32)
        r = pl.reciprocal(1.0 + e, approx=True)
        sig = jnp.where(pred >= 0, r, e * r)
        x_next = jnp.where(dur_mask, sig, onehot)
        return row, x_next, tuple(h), tuple(c)

    if unroll:
        # short rollouts: fully unrolled, register-resident h / c / x_in state
        x_in, h, c = x_in0, h0, c0
        for t in range(T):
            row, x_in, h, c = step(x_in, h, c, need_next=(t + 1 < T))
            out_ref[t] = row
    else:
        # long rollouts: fori_loop keeps live ranges bounded (no vreg spills)
        def body(t, carry):
            x_in, h, c = carry
            row, x_next, h, c = step(x_in, h, c, need_next=True)
            out_ref[t] = row
            return (x_next, h, c)

        jax.lax.fori_loop(0, T, body, (x_in0, h0, c0))

    # TODO(synk): teacher-forcing branch (target is not None) not implemented;
    # this kernel realizes the free-running (target=None) path only.


def decoder_forward(hidden, cell, params, *, max_length, sos=0,
                    weights_dtype=jnp.float32, unroll_threshold=32,
                    batch_first=True):
    """hidden, cell: (L, B, H) float32.

    Returns (B, max_length, output_size) log-probs (batch_first=True), or the
    raw lane-padded (max_length, B, OP) kernel output (batch_first=False).
    """
    L, B, H = hidden.shape
    emb = params["emb"]                            # (A, H-1)
    A = int(emb.shape[0])
    O = int(params["fc_w"].shape[0])
    assert O == A + 1, "decoder assumes output_size == num_activities + 1"
    assert 0 <= sos < A, "sos must be a valid activity index"

    hp = jax.lax.Precision.HIGHEST
    OP = max(128, ((O + 127) // 128) * 128)        # lane-dense padded width

    wih_t = jnp.transpose(params["w_ih"], (0, 2, 1))    # (L, H, 4H)
    whh_t = jnp.transpose(params["w_hh"], (0, 2, 1))    # (L, H, 4H)

    # Layer-0 input weight with the embedding folded in, padded to OP rows so
    # the fed-back (B, OP) lane vector dots straight in (no lane slicing):
    #   rows [0, A)  : emb @ W_ih0[:H-1]       (one-hot activity lanes)
    #   row A        : W_ih0[H-1]              (duration column)
    #   rows (A, OP) : 0                       (padding lanes contribute nothing)
    ew0 = jnp.dot(emb, wih_t[0, :H - 1, :], precision=hp)            # (A, 4H)
    w0x = (jnp.zeros((OP, 4 * H), jnp.float32)
           .at[:A].set(ew0)
           .at[A].set(wih_t[0, H - 1]))

    # merged bias per layer
    b = (params["b_ih"] + params["b_hh"]).reshape(L, 1, 4 * H).astype(jnp.float32)

    # fc head padded to lane-dense width -> unmasked per-step stores
    fcw_pad = jnp.zeros((H, OP), jnp.float32).at[:, :O].set(params["fc_w"].T)
    fcb_pad = jnp.zeros((1, OP), jnp.float32).at[:, :O].set(params["fc_b"])

    wdt = weights_dtype
    operands = [hidden.astype(jnp.float32), cell.astype(jnp.float32),
                w0x.astype(wdt)]
    if L > 1:                                       # skip dummy DMA when L == 1
        operands.append(wih_t[1:].astype(wdt))      # (L-1, H, 4H)
    operands += [whh_t.astype(wdt), b, fcw_pad.astype(wdt), fcb_pad]

    T = int(max_length)
    vmem = pl.BlockSpec(memory_space=pltpu.MemorySpace.VMEM)

    # advisory cost hint: tiny-FLOP, long serial-latency custom call
    flops = T * (2 * B * OP * 4 * H + 2 * B * H * 4 * H * (2 * L - 1)
                 + 2 * B * H * OP)
    transcendentals = T * B * (L * (8 * H + H) + 4 * OP)
    bytes_accessed = (sum(int(op.size) * op.dtype.itemsize for op in operands)
                      + T * B * OP * 4)

    out_pad = pl.pallas_call(
        functools.partial(_decoder_kernel, sos=int(sos), A=A, H=int(H),
                          L=int(L), unroll=(T <= unroll_threshold)),
        out_shape=jax.ShapeDtypeStruct((T, B, OP), jnp.float32),
        in_specs=[vmem] * len(operands),
        out_specs=vmem,
        cost_estimate=pl.CostEstimate(flops=int(flops),
                                      transcendentals=int(transcendentals),
                                      bytes_accessed=int(bytes_accessed)),
    )(*operands)

    if not batch_first:
        return out_pad                               # (T, B, OP), lane-padded
    # (T, B, OP) -> PyTorch batch_first (B, T, O)
    return jnp.transpose(out_pad[:, :, :O], (1, 0, 2))


def _decoder_reference(hidden, cell, params, *, max_length, sos=0):
    """Pure-JAX re-implementation of the PyTorch Decoder.forward (target=None)."""
    L, B, H = hidden.shape
    emb = params["emb"]
    O = params["fc_w"].shape[0]
    hp = jax.lax.Precision.HIGHEST
    h = [hidden[l] for l in range(L)]
    c = [cell[l] for l in range(L)]
    act = jnp.full((B,), sos, jnp.int32)
    dur = jnp.zeros((B, 1), jnp.float32)
    preds = []
    for _ in range(max_length):
        x = jnp.concatenate([emb[act], dur], axis=-1)
        for l in range(L):
            g = (jnp.dot(x, params["w_ih"][l].T, precision=hp)
                 + jnp.dot(h[l], params["w_hh"][l].T, precision=hp)
                 + params["b_ih"][l] + params["b_hh"][l])
            i = jax.nn.sigmoid(g[:, 0:H])
            f = jax.nn.sigmoid(g[:, H:2 * H])
            gg = jnp.tanh(g[:, 2 * H:3 * H])
            o = jax.nn.sigmoid(g[:, 3 * H:4 * H])
            c[l] = f * c[l] + i * gg
            h[l] = o * jnp.tanh(c[l])
            x = h[l]
        pred = jnp.dot(x, params["fc_w"].T, precision=hp) + params["fc_b"]
        preds.append(pred)
        act = jnp.argmax(pred[:, :O - 1], axis=-1).astype(jnp.int32)
        dur = jax.nn.sigmoid(pred[:, O - 1:O])
    outs = jnp.stack(preds, axis=1)                                  # (B, T, O)
    log_probs = jax.nn.log_softmax(outs[..., :O - 1], axis=-1)
    log_dur = jnp.log(jax.nn.sigmoid(outs[..., O - 1:]))
    return jnp.concatenate([log_probs, log_dur], axis=-1)


def init_params(key, input_size, hidden_size, output_size, num_layers):
    ks = jax.random.split(key, 7)
    H = hidden_size
    scale = 1.0 / jnp.sqrt(H)
    return {
        "emb": jax.random.normal(ks[0], (input_size, H - 1), jnp.float32) * 0.1,
        "w_ih": jax.random.uniform(ks[1], (num_layers, 4 * H, H), jnp.float32,
                                   -scale, scale),
        "w_hh": jax.random.uniform(ks[2], (num_layers, 4 * H, H), jnp.float32,
                                   -scale, scale),
        "b_ih": jax.random.uniform(ks[3], (num_layers, 4 * H), jnp.float32,
                                   -scale, scale),
        "b_hh": jax.random.uniform(ks[4], (num_layers, 4 * H), jnp.float32,
                                   -scale, scale),
        "fc_w": jax.random.uniform(ks[5], (output_size, H), jnp.float32,
                                   -scale, scale),
        "fc_b": jax.random.uniform(ks[6], (output_size,), jnp.float32,
                                   -scale, scale),
    }


if __name__ == "__main__":
    # small shapes: batch=8, hidden=32, num activities (input_size)=6,
    # output_size=7 (6 activity logits + 1 duration), num_layers=2, max_length=6
    B, H, A, L, T = 8, 32, 6, 2, 6
    O = A + 1
    key = jax.random.PRNGKey(0)
    kp, kh, kc = jax.random.split(key, 3)
    params = init_params(kp, input_size=A, hidden_size=H, output_size=O,
                         num_layers=L)
    hidden = jax.random.normal(kh, (L, B, H), jnp.float32) * 0.5
    cell = jax.random.normal(kc, (L, B, H), jnp.float32) * 0.5

    # pure-JAX reference of the PyTorch module (same params, same rollout)
    ref = jax.block_until_ready(
        _decoder_reference(hidden, cell, params, max_length=T, sos=0))

    # ---- f32, fully-unrolled path (exact module semantics) ----
    out = jax.block_until_ready(
        decoder_forward(hidden, cell, params, max_length=T, sos=0))
    assert out.shape == (B, T, O), out.shape
    assert bool(jnp.all(jnp.isfinite(out)))
    assert bool(jnp.allclose(jnp.sum(jnp.exp(out[..., :O - 1]), axis=-1), 1.0,
                             atol=1e-4))
    assert bool(jnp.allclose(out, ref, atol=2e-3, rtol=2e-3)), \
        float(jnp.max(jnp.abs(out - ref)))

    # ---- f32, fori_loop path (used automatically for long max_length) ----
    out_loop = jax.block_until_ready(
        decoder_forward(hidden, cell, params, max_length=T, sos=0,
                        unroll_threshold=0))
    assert bool(jnp.allclose(out_loop, ref, atol=2e-3, rtol=2e-3)), \
        float(jnp.max(jnp.abs(out_loop - ref)))

    # ---- bf16-weight fast path: sanity-only checks (autoregressive argmax can
    # legitimately diverge from the f32 rollout on near-ties) ----
    out_bf16 = jax.block_until_ready(
        decoder_forward(hidden, cell, params, max_length=T, sos=0,
                        weights_dtype=jnp.bfloat16))
    assert out_bf16.shape == (B, T, O)
    assert bool(jnp.all(jnp.isfinite(out_bf16)))
    assert bool(jnp.allclose(jnp.sum(jnp.exp(out_bf16[..., :O - 1]), axis=-1),
                             1.0, atol=1e-3))

    print("KERNEL_OK")
</pallas_src>

<mosaic_0001>
module attributes {stable_mosaic.version = 11 : i64} {
  func.func @_decoder_kernel(%arg0: memref<2x8x32xf32, #tpu.memory_space<vmem>>, %arg1: memref<2x8x32xf32, #tpu.memory_space<vmem>>, %arg2: memref<128x128xf32, #tpu.memory_space<vmem>>, %arg3: memref<1x32x128xf32, #tpu.memory_space<vmem>>, %arg4: memref<2x32x128xf32, #tpu.memory_space<vmem>>, %arg5: memref<2x1x128xf32, #tpu.memory_space<vmem>>, %arg6: memref<32x128xf32, #tpu.memory_space<vmem>>, %arg7: memref<1x128xf32, #tpu.memory_space<vmem>>, %arg8: memref<6x8x128xf32, #tpu.memory_space<vmem>>) attributes {dimension_semantics = [], scalar_prefetch = 0 : i64, scratch_operands = 0 : i64, tpu.core_type = #tpu.core_type<tc>} {
    %0 = tpu.iota {dimensions = array<i32: 1>} : vector<8x128xi32>
    %c6_i32 = arith.constant 6 : i32
    %1 = vector.broadcast %c6_i32 : i32 to vector<8x128xi32>
    %2 = arith.cmpi slt, %0, %1 : vector<8x128xi32>
    %c6_i32_0 = arith.constant 6 : i32
    %3 = vector.broadcast %c6_i32_0 : i32 to vector<8x128xi32>
    %4 = arith.cmpi eq, %0, %3 : vector<8x128xi32>
    %c0 = arith.constant 0 : index
    %c0_1 = arith.constant 0 : index
    %5 = vector.load %arg2[%c0, %c0_1] : memref<128x128xf32, #tpu.memory_space<vmem>>, vector<128x128xf32>
    %c0_2 = arith.constant 0 : index
    %c0_3 = arith.constant 0 : index
    %c0_4 = arith.constant 0 : index
    %6 = vector.load %arg4[%c0_2, %c0_3, %c0_4] : memref<2x32x128xf32, #tpu.memory_space<vmem>>, vector<1x32x128xf32>
    %7 = vector.shape_cast %6 : vector<1x32x128xf32> to vector<32x128xf32>
    %c1 = arith.constant 1 : index
    %c0_5 = arith.constant 0 : index
    %c0_6 = arith.constant 0 : index
    %8 = vector.load %arg4[%c1, %c0_5, %c0_6] : memref<2x32x128xf32, #tpu.memory_space<vmem>>, vector<1x32x128xf32>
    %9 = vector.shape_cast %8 : vector<1x32x128xf32> to vector<32x128xf32>
    %c0_7 = arith.constant 0 : index
    %c0_8 = arith.constant 0 : index
    %c0_9 = arith.constant 0 : index
    %10 = vector.load %arg3[%c0_7, %c0_8, %c0_9] : memref<1x32x128xf32, #tpu.memory_space<vmem>>, vector<1x32x128xf32>
    %11 = vector.shape_cast %10 : vector<1x32x128xf32> to vector<32x128xf32>
    %c0_10 = arith.constant 0 : index
    %c0_11 = arith.constant 0 : index
    %c0_12 = arith.constant 0 : index
    %12 = vector.load %arg5[%c0_10, %c0_11, %c0_12] : memref<2x1x128xf32, #tpu.memory_space<vmem>>, vector<1x1x128xf32>
    %13 = vector.shape_cast %12 : vector<1x1x128xf32> to vector<1x128xf32>
    %14 = vector.shape_cast %13 : vector<1x128xf32> to vector<1x128xf32>
    %15 = vector.broadcast %14 : vector<1x128xf32> to vector<8x128xf32>
    %c1_13 = arith.constant 1 : index
    %c0_14 = arith.constant 0 : index
    %c0_15 = arith.constant 0 : index
    %16 = vector.load %arg5[%c1_13, %c0_14, %c0_15] : memref<2x1x128xf32, #tpu.memory_space<vmem>>, vector<1x1x128xf32>
    %17 = vector.shape_cast %16 : vector<1x1x128xf32> to vector<1x128xf32>
    %18 = vector.shape_cast %17 : vector<1x128xf32> to vector<1x128xf32>
    %19 = vector.broadcast %18 : vector<1x128xf32> to vector<8x128xf32>
    %c0_16 = arith.constant 0 : index
    %c0_17 = arith.constant 0 : index
    %20 = vector.load %arg6[%c0_16, %c0_17] : memref<32x128xf32, #tpu.memory_space<vmem>>, vector<32x128xf32>
    %c0_18 = arith.constant 0 : index
    %c0_19 = arith.constant 0 : index
    %21 = vector.load %arg7[%c0_18, %c0_19] : memref<1x128xf32, #tpu.memory_space<vmem>>, vector<1x128xf32>
    %22 = vector.shape_cast %21 : vector<1x128xf32> to vector<1x128xf32>
    %23 = vector.broadcast %22 : vector<1x128xf32> to vector<8x128xf32>
    %c0_i32 = arith.constant 0 : i32
    %24 = vector.broadcast %c0_i32 : i32 to vector<8x128xi32>
    %25 = arith.cmpi eq, %0, %24 : vector<8x128xi32>
    %26 = arith.extui %25 : vector<8x128xi1> to vector<8x128xi32>
    %27 = arith.sitofp %26 : vector<8x128xi32> to vector<8x128xf32>
    %c0_20 = arith.constant 0 : index
    %c0_21 = arith.constant 0 : index
    %c0_22 = arith.constant 0 : index
    %28 = vector.load %arg0[%c0_20, %c0_21, %c0_22] : memref<2x8x32xf32, #tpu.memory_space<vmem>>, vector<1x8x32xf32>
    %29 = vector.shape_cast %28 : vector<1x8x32xf32> to vector<8x32xf32>
    %c1_23 = arith.constant 1 : index
    %c0_24 = arith.constant 0 : index
    %c0_25 = arith.constant 0 : index
    %30 = vector.load %arg0[%c1_23, %c0_24, %c0_25] : memref<2x8x32xf32, #tpu.memory_space<vmem>>, vector<1x8x32xf32>
    %31 = vector.shape_cast %30 : vector<1x8x32xf32> to vector<8x32xf32>
    %c0_26 = arith.constant 0 : index
    %c0_27 = arith.constant 0 : index
    %c0_28 = arith.constant 0 : index
    %32 = vector.load %arg1[%c0_26, %c0_27, %c0_28] : memref<2x8x32xf32, #tpu.memory_space<vmem>>, vector<1x8x32xf32>
    %33 = vector.shape_cast %32 : vector<1x8x32xf32> to vector<8x32xf32>
    %c1_29 = arith.constant 1 : index
    %c0_30 = arith.constant 0 : index
    %c0_31 = arith.constant 0 : index
    %34 = vector.load %arg1[%c1_29, %c0_30, %c0_31] : memref<2x8x32xf32, #tpu.memory_space<vmem>>, vector<1x8x32xf32>
    %35 = vector.shape_cast %34 : vector<1x8x32xf32> to vector<8x32xf32>
    %cst = arith.constant dense<0.000000e+00> : vector<8x128xf32>
    %36 = tpu.matmul %27, %5, %cst {dimension_numbers = #tpu.dot_dimension_numbers<[1], [0], [0], [1], [0, 0, 1, 1], [], []>} : vector<8x128xf32>, vector<128x128xf32>, vector<8x128xf32> -> vector<8x128xf32>
    %cst_32 = arith.constant dense<0.000000e+00> : vector<8x128xf32>
    %37 = tpu.matmul %29, %7, %cst_32 {dimension_numbers = #tpu.dot_dimension_numbers<[1], [0], [0], [1], [0, 0, 1, 1], [], []>} : vector<8x32xf32>, vector<32x128xf32>, vector<8x128xf32> -> vector<8x128xf32>
    %38 = arith.addf %36, %37 : vector<8x128xf32>
    %39 = arith.addf %38, %15 : vector<8x128xf32>
    %40 = arith.negf %39 : vector<8x128xf32>
    %41 = math.exp %40 : vector<8x128xf32>
    %cst_33 = arith.constant 1.000000e+00 : f32
    %42 = vector.broadcast %cst_33 : f32 to vector<8x128xf32>
    %43 = arith.addf %42, %41 : vector<8x128xf32>
    %44 = arith.divf %42, %43 : vector<8x128xf32>
    %45 = math.tanh %39 : vector<8x128xf32>
    %46 = vector.extract_strided_slice %44 {offsets = [0, 0], sizes = [8, 32], strides = [1, 1]} : vector<8x128xf32> to vector<8x32xf32>
    %47 = vector.extract_strided_slice %44 {offsets = [0, 32], sizes = [8, 32], strides = [1, 1]} : vector<8x128xf32> to vector<8x32xf32>
    %48 = vector.extract_strided_slice %45 {offsets = [0, 64], sizes = [8, 32], strides = [1, 1]} : vector<8x128xf32> to vector<8x32xf32>
    %49 = vector.extract_strided_slice %44 {offsets = [0, 96], sizes = [8, 32], strides = [1, 1]} : vector<8x128xf32> to vector<8x32xf32>
    %50 = arith.mulf %47, %33 : vector<8x32xf32>
    %51 = arith.mulf %46, %48 : vector<8x32xf32>
    %52 = arith.addf %50, %51 : vector<8x32xf32>
    %53 = math.tanh %52 : vector<8x32xf32>
    %54 = arith.mulf %49, %53 : vector<8x32xf32>
    %cst_34 = arith.constant dense<0.000000e+00> : vector<8x128xf32>
    %55 = tpu.matmul %54, %11, %cst_34 {dimension_numbers = #tpu.dot_dimension_numbers<[1], [0], [0], [1], [0, 0, 1, 1], [], []>} : vector<8x32xf32>, vector<32x128xf32>, vector<8x128xf32> -> vector<8x128xf32>
    %cst_35 = arith.constant dense<0.000000e+00> : vector<8x128xf32>
    %56 = tpu.matmul %31, %9, %cst_35 {dimension_numbers = #tpu.dot_dimension_numbers<[1], [0], [0], [1], [0, 0, 1, 1], [], []>} : vector<8x32xf32>, vector<32x128xf32>, vector<8x128xf32> -> vector<8x128xf32>
    %57 = arith.addf %55, %56 : vector<8x128xf32>
    %58 = arith.addf %57, %19 : vector<8x128xf32>
    %59 = arith.negf %58 : vector<8x128xf32>
    %60 = math.exp %59 : vector<8x128xf32>
    %cst_36 = arith.constant 1.000000e+00 : f32
    %61 = vector.broadcast %cst_36 : f32 to vector<8x128xf32>
    %62 = arith.addf %61, %60 : vector<8x128xf32>
    %63 = arith.divf %61, %62 : vector<8x128xf32>
    %64 = math.tanh %58 : vector<8x128xf32>
    %65 = vector.extract_strided_slice %63 {offsets = [0, 0], sizes = [8, 32], strides = [1, 1]} : vector<8x128xf32> to vector<8x32xf32>
    %66 = vector.extract_strided_slice %63 {offsets = [0, 32], sizes = [8, 32], strides = [1, 1]} : vector<8x128xf32> to vector<8x32xf32>
    %67 = vector.extract_strided_slice %64 {offsets = [0, 64], sizes = [8, 32], strides = [1, 1]} : vector<8x128xf32> to vector<8x32xf32>
    %68 = vector.extract_strided_slice %63 {offsets = [0, 96], sizes = [8, 32], strides = [1, 1]} : vector<8x128xf32> to vector<8x32xf32>
    %69 = arith.mulf %66, %35 : vector<8x32xf32>
    %70 = arith.mulf %65, %67 : vector<8x32xf32>
    %71 = arith.addf %69, %70 : vector<8x32xf32>
    %72 = math.tanh %71 : vector<8x32xf32>
    %73 = arith.mulf %68, %72 : vector<8x32xf32>
    %cst_37 = arith.constant dense<0.000000e+00> : vector<8x128xf32>
    %74 = tpu.matmul %73, %20, %cst_37 {dimension_numbers = #tpu.dot_dimension_numbers<[1], [0], [0], [1], [0, 0, 1, 1], [], []>} : vector<8x32xf32>, vector<32x128xf32>, vector<8x128xf32> -> vector<8x128xf32>
    %75 = arith.addf %74, %23 : vector<8x128xf32>
    %cst_38 = arith.constant 0xFF800000 : f32
    %76 = vector.broadcast %cst_38 : f32 to vector<8x128xf32>
    %77 = arith.select %2, %75, %76 : vector<8x128xi1>, vector<8x128xf32>
    %cst_39 = arith.constant dense<0xFF800000> : vector<8xf32>
    %78 = vector.multi_reduction <maximumf>, %77, %cst_39 [1] : vector<8x128xf32> to vector<8xf32>
    %79 = vector.shape_cast %78 : vector<8xf32> to vector<8x1xf32>
    %80 = vector.broadcast %79 : vector<8x1xf32> to vector<8x128xf32>
    %81 = arith.subf %77, %80 : vector<8x128xf32>
    %82 = math.exp %81 : vector<8x128xf32>
    %cst_40 = arith.constant dense<0.000000e+00> : vector<8xf32>
    %83 = vector.multi_reduction <add>, %82, %cst_40 [1] : vector<8x128xf32> to vector<8xf32>
    %84 = vector.shape_cast %83 : vector<8xf32> to vector<8x1xf32>
    %85 = math.log %84 : vector<8x1xf32>
    %86 = arith.addf %85, %79 : vector<8x1xf32>
    %87 = math.absf %75 : vector<8x128xf32>
    %cst_41 = arith.constant 0.000000e+00 : f32
    %88 = vector.broadcast %cst_41 : f32 to vector<8x128xf32>
    %89 = arith.subf %88, %87 : vector<8x128xf32>
    %90 = math.exp %89 : vector<8x128xf32>
    %cst_42 = arith.constant 0.000000e+00 : f32
    %91 = vector.broadcast %cst_42 : f32 to vector<8x128xf32>
    %92 = arith.minimumf %75, %91 : vector<8x128xf32>
    %cst_43 = arith.constant 1.000000e+00 : f32
    %93 = vector.broadcast %cst_43 : f32 to vector<8x128xf32>
    %94 = arith.addf %93, %90 : vector<8x128xf32>
    %95 = math.log %94 : vector<8x128xf32>
    %96 = arith.subf %92, %95 : vector<8x128xf32>
    %97 = vector.broadcast %86 : vector<8x1xf32> to vector<8x128xf32>
    %98 = arith.subf %75, %97 : vector<8x128xf32>
    %cst_44 = arith.constant 0.000000e+00 : f32
    %99 = vector.broadcast %cst_44 : f32 to vector<8x128xf32>
    %100 = arith.select %4, %96, %99 : vector<8x128xi1>, vector<8x128xf32>
    %101 = arith.select %2, %98, %100 : vector<8x128xi1>, vector<8x128xf32>
    %102 = vector.broadcast %79 : vector<8x1xf32> to vector<8x128xf32>
    %103 = arith.cmpf oge, %75, %102 : vector<8x128xf32>
    %104 = arith.andi %2, %103 : vector<8x128xi1>
    %c128_i32 = arith.constant 128 : i32
    %105 = vector.broadcast %c128_i32 : i32 to vector<8x128xi32>
    %106 = arith.select %104, %0, %105 : vector<8x128xi1>, vector<8x128xi32>
    %cst_45 = arith.constant dense<2147483647> : vector<8xi32>
    %107 = vector.multi_reduction <minsi>, %106, %cst_45 [1] : vector<8x128xi32> to vector<8xi32>
    %108 = vector.shape_cast %107 : vector<8xi32> to vector<8x1xi32>
    %109 = vector.broadcast %108 : vector<8x1xi32> to vector<8x128xi32>
    %110 = arith.cmpi eq, %0, %109 : vector<8x128xi32>
    %111 = arith.extui %110 : vector<8x128xi1> to vector<8x128xi32>
    %112 = arith.sitofp %111 : vector<8x128xi32> to vector<8x128xf32>
    %cst_46 = arith.constant 1.000000e+00 : f32
    %113 = vector.broadcast %cst_46 : f32 to vector<8x128xf32>
    %114 = arith.addf %113, %90 : vector<8x128xf32>
    %115 = tpu.reciprocal %114 {approx = true} : vector<8x128xf32> -> vector<8x128xf32>
    %cst_47 = arith.constant 0.000000e+00 : f32
    %116 = vector.broadcast %cst_47 : f32 to vector<8x128xf32>
    %117 = arith.cmpf oge, %75, %116 : vector<8x128xf32>
    %118 = arith.mulf %90, %115 : vector<8x128xf32>
    %119 = arith.select %117, %115, %118 : vector<8x128xi1>, vector<8x128xf32>
    %120 = arith.select %4, %119, %112 : vector<8x128xi1>, vector<8x128xf32>
    %c0_48 = arith.constant 0 : index
    %c0_49 = arith.constant 0 : index
    %c0_50 = arith.constant 0 : index
    %121 = vector.load %arg8[%c0_48, %c0_49, %c0_50] : memref<6x8x128xf32, #tpu.memory_space<vmem>>, vector<1x8x128xf32>
    %122 = vector.shape_cast %121 : vector<1x8x128xf32> to vector<8x128xf32>
    %123 = vector.shape_cast %101 : vector<8x128xf32> to vector<1x8x128xf32>
    tpu.vector_store %arg8[%c0_48, %c0_49, %c0_50], %123 {strides = array<i32>} : memref<6x8x128xf32, #tpu.memory_space<vmem>>, vector<1x8x128xf32>,
    %cst_51 = arith.constant dense<0.000000e+00> : vector<8x128xf32>
    %124 = tpu.matmul %120, %5, %cst_51 {dimension_numbers = #tpu.dot_dimension_numbers<[1], [0], [0], [1], [0, 0, 1, 1], [], []>} : vector<8x128xf32>, vector<128x128xf32>, vector<8x128xf32> -> vector<8x128xf32>
    %cst_52 = arith.constant dense<0.000000e+00> : vector<8x128xf32>
    %125 = tpu.matmul %54, %7, %cst_52 {dimension_numbers = #tpu.dot_dimension_numbers<[1], [0], [0], [1], [0, 0, 1, 1], [], []>} : vector<8x32xf32>, vector<32x128xf32>, vector<8x128xf32> -> vector<8x128xf32>
    %126 = arith.addf %124, %125 : vector<8x128xf32>
    %127 = arith.addf %126, %15 : vector<8x128xf32>
    %128 = arith.negf %127 : vector<8x128xf32>
    %129 = math.exp %128 : vector<8x128xf32>
    %cst_53 = arith.constant 1.000000e+00 : f32
    %130 = vector.broadcast %cst_53 : f32 to vector<8x128xf32>
    %131 = arith.addf %130, %129 : vector<8x128xf32>
    %132 = arith.divf %130, %131 : vector<8x128xf32>
    %133 = math.tanh %127 : vector<8x128xf32>
    %134 = vector.extract_strided_slice %132 {offsets = [0, 0], sizes = [8, 32], strides = [1, 1]} : vector<8x128xf32> to vector<8x32xf32>
    %135 = vector.extract_strided_slice %132 {offsets = [0, 32], sizes = [8, 32], strides = [1, 1]} : vector<8x128xf32> to vector<8x32xf32>
    %136 = vector.extract_strided_slice %133 {offsets = [0, 64], sizes = [8, 32], strides = [1, 1]} : vector<8x128xf32> to vector<8x32xf32>
    %137 = vector.extract_strided_slice %132 {offsets = [0, 96], sizes = [8, 32], strides = [1, 1]} : vector<8x128xf32> to vector<8x32xf32>
    %138 = arith.mulf %135, %52 : vector<8x32xf32>
    %139 = arith.mulf %134, %136 : vector<8x32xf32>
    %140 = arith.addf %138, %139 : vector<8x32xf32>
    %141 = math.tanh %140 : vector<8x32xf32>
    %142 = arith.mulf %137, %141 : vector<8x32xf32>
    %cst_54 = arith.constant dense<0.000000e+00> : vector<8x128xf32>
    %143 = tpu.matmul %142, %11, %cst_54 {dimension_numbers = #tpu.dot_dimension_numbers<[1], [0], [0], [1], [0, 0, 1, 1], [], []>} : vector<8x32xf32>, vector<32x128xf32>, vector<8x128xf32> -> vector<8x128xf32>
    %cst_55 = arith.constant dense<0.000000e+00> : vector<8x128xf32>
    %144 = tpu.matmul %73, %9, %cst_55 {dimension_numbers = #tpu.dot_dimension_numbers<[1], [0], [0], [1], [0, 0, 1, 1], [], []>} : vector<8x32xf32>, vector<32x128xf32>, vector<8x128xf32> -> vector<8x128xf32>
    %145 = arith.addf %143, %144 : vector<8x128xf32>
    %146 = arith.addf %145, %19 : vector<8x128xf32>
    %147 = arith.negf %146 : vector<8x128xf32>
    %148 = math.exp %147 : vector<8x128xf32>
    %cst_56 = arith.constant 1.000000e+00 : f32
    %149 = vector.broadcast %cst_56 : f32 to vector<8x128xf32>
    %150 = arith.addf %149, %148 : vector<8x128xf32>
    %151 = arith.divf %149, %150 : vector<8x128xf32>
    %152 = math.tanh %146 : vector<8x128xf32>
    %153 = vector.extract_strided_slice %151 {offsets = [0, 0], sizes = [8, 32], strides = [1, 1]} : vector<8x128xf32> to vector<8x32xf32>
    %154 = vector.extract_strided_slice %151 {offsets = [0, 32], sizes = [8, 32], strides = [1, 1]} : vector<8x128xf32> to vector<8x32xf32>
    %155 = vector.extract_strided_slice %152 {offsets = [0, 64], sizes = [8, 32], strides = [1, 1]} : vector<8x128xf32> to vector<8x32xf32>
    %156 = vector.extract_strided_slice %151 {offsets = [0, 96], sizes = [8, 32], strides = [1, 1]} : vector<8x128xf32> to vector<8x32xf32>
    %157 = arith.mulf %154, %71 : vector<8x32xf32>
    %158 = arith.mulf %153, %155 : vector<8x32xf32>
    %159 = arith.addf %157, %158 : vector<8x32xf32>
    %160 = math.tanh %159 : vector<8x32xf32>
    %161 = arith.mulf %156, %160 : vector<8x32xf32>
    %cst_57 = arith.constant dense<0.000000e+00> : vector<8x128xf32>
    %162 = tpu.matmul %161, %20, %cst_57 {dimension_numbers = #tpu.dot_dimension_numbers<[1], [0], [0], [1], [0, 0, 1, 1], [], []>} : vector<8x32xf32>, vector<32x128xf32>, vector<8x128xf32> -> vector<8x128xf32>
    %163 = arith.addf %162, %23 : vector<8x128xf32>
    %cst_58 = arith.constant 0xFF800000 : f32
    %164 = vector.broadcast %cst_58 : f32 to vector<8x128xf32>
    %165 = arith.select %2, %163, %164 : vector<8x128xi1>, vector<8x128xf32>
    %cst_59 = arith.constant dense<0xFF800000> : vector<8xf32>
    %166 = vector.multi_reduction <maximumf>, %165, %cst_59 [1] : vector<8x128xf32> to vector<8xf32>
    %167 = vector.shape_cast %166 : vector<8xf32> to vector<8x1xf32>
    %168 = vector.broadcast %167 : vector<8x1xf32> to vector<8x128xf32>
    %169 = arith.subf %165, %168 : vector<8x128xf32>
    %170 = math.exp %169 : vector<8x128xf32>
    %cst_60 = arith.constant dense<0.000000e+00> : vector<8xf32>
    %171 = vector.multi_reduction <add>, %170, %cst_60 [1] : vector<8x128xf32> to vector<8xf32>
    %172 = vector.shape_cast %171 : vector<8xf32> to vector<8x1xf32>
    %173 = math.log %172 : vector<8x1xf32>
    %174 = arith.addf %173, %167 : vector<8x1xf32>
    %175 = math.absf %163 : vector<8x128xf32>
    %cst_61 = arith.constant 0.000000e+00 : f32
    %176 = vector.broadcast %cst_61 : f32 to vector<8x128xf32>
    %177 = arith.subf %176, %175 : vector<8x128xf32>
    %178 = math.exp %177 : vector<8x128xf32>
    %cst_62 = arith.constant 0.000000e+00 : f32
    %179 = vector.broadcast %cst_62 : f32 to vector<8x128xf32>
    %180 = arith.minimumf %163, %179 : vector<8x128xf32>
    %cst_63 = arith.constant 1.000000e+00 : f32
    %181 = vector.broadcast %cst_63 : f32 to vector<8x128xf32>
    %182 = arith.addf %181, %178 : vector<8x128xf32>
    %183 = math.log %182 : vector<8x128xf32>
    %184 = arith.subf %180, %183 : vector<8x128xf32>
    %185 = vector.broadcast %174 : vector<8x1xf32> to vector<8x128xf32>
    %186 = arith.subf %163, %185 : vector<8x128xf32>
    %cst_64 = arith.constant 0.000000e+00 : f32
    %187 = vector.broadcast %cst_64 : f32 to vector<8x128xf32>
    %188 = arith.select %4, %184, %187 : vector<8x128xi1>, vector<8x128xf32>
    %189 = arith.select %2, %186, %188 : vector<8x128xi1>, vector<8x128xf32>
    %190 = vector.broadcast %167 : vector<8x1xf32> to vector<8x128xf32>
    %191 = arith.cmpf oge, %163, %190 : vector<8x128xf32>
    %192 = arith.andi %2, %191 : vector<8x128xi1>
    %c128_i32_65 = arith.constant 128 : i32
    %193 = vector.broadcast %c128_i32_65 : i32 to vector<8x128xi32>
    %194 = arith.select %192, %0, %193 : vector<8x128xi1>, vector<8x128xi32>
    %cst_66 = arith.constant dense<2147483647> : vector<8xi32>
    %195 = vector.multi_reduction <minsi>, %194, %cst_66 [1] : vector<8x128xi32> to vector<8xi32>
    %196 = vector.shape_cast %195 : vector<8xi32> to vector<8x1xi32>
    %197 = vector.broadcast %196 : vector<8x1xi32> to vector<8x128xi32>
    %198 = arith.cmpi eq, %0, %197 : vector<8x128xi32>
    %199 = arith.extui %198 : vector<8x128xi1> to vector<8x128xi32>
    %200 = arith.sitofp %199 : vector<8x128xi32> to vector<8x128xf32>
    %cst_67 = arith.constant 1.000000e+00 : f32
    %201 = vector.broadcast %cst_67 : f32 to vector<8x128xf32>
    %202 = arith.addf %201, %178 : vector<8x128xf32>
    %203 = tpu.reciprocal %202 {approx = true} : vector<8x128xf32> -> vector<8x128xf32>
    %cst_68 = arith.constant 0.000000e+00 : f32
    %204 = vector.broadcast %cst_68 : f32 to vector<8x128xf32>
    %205 = arith.cmpf oge, %163, %204 : vector<8x128xf32>
    %206 = arith.mulf %178, %203 : vector<8x128xf32>
    %207 = arith.select %205, %203, %206 : vector<8x128xi1>, vector<8x128xf32>
    %208 = arith.select %4, %207, %200 : vector<8x128xi1>, vector<8x128xf32>
    %c1_69 = arith.constant 1 : index
    %c0_70 = arith.constant 0 : index
    %c0_71 = arith.constant 0 : index
    %209 = vector.load %arg8[%c1_69, %c0_70, %c0_71] : memref<6x8x128xf32, #tpu.memory_space<vmem>>, vector<1x8x128xf32>
    %210 = vector.shape_cast %209 : vector<1x8x128xf32> to vector<8x128xf32>
    %211 = vector.shape_cast %189 : vector<8x128xf32> to vector<1x8x128xf32>
    tpu.vector_store %arg8[%c1_69, %c0_70, %c0_71], %211 {strides = array<i32>} : memref<6x8x128xf32, #tpu.memory_space<vmem>>, vector<1x8x128xf32>,
    %cst_72 = arith.constant dense<0.000000e+00> : vector<8x128xf32>
    %212 = tpu.matmul %208, %5, %cst_72 {dimension_numbers = #tpu.dot_dimension_numbers<[1], [0], [0], [1], [0, 0, 1, 1], [], []>} : vector<8x128xf32>, vector<128x128xf32>, vector<8x128xf32> -> vector<8x128xf32>
    %cst_73 = arith.constant dense<0.000000e+00> : vector<8x128xf32>
    %213 = tpu.matmul %142, %7, %cst_73 {dimension_numbers = #tpu.dot_dimension_numbers<[1], [0], [0], [1], [0, 0, 1, 1], [], []>} : vector<8x32xf32>, vector<32x128xf32>, vector<8x128xf32> -> vector<8x128xf32>
    %214 = arith.addf %212, %213 : vector<8x128xf32>
    %215 = arith.addf %214, %15 : vector<8x128xf32>
    %216 = arith.negf %215 : vector<8x128xf32>
    %217 = math.exp %216 : vector<8x128xf32>
    %cst_74 = arith.constant 1.000000e+00 : f32
    %218 = vector.broadcast %cst_74 : f32 to vector<8x128xf32>
    %219 = arith.addf %218, %217 : vector<8x128xf32>
    %220 = arith.divf %218, %219 : vector<8x128xf32>
    %221 = math.tanh %215 : vector<8x128xf32>
    %222 = vector.extract_strided_slice %220 {offsets = [0, 0], sizes = [8, 32], strides = [1, 1]} : vector<8x128xf32> to vector<8x32xf32>
    %223 = vector.extract_strided_slice %220 {offsets = [0, 32], sizes = [8, 32], strides = [1, 1]} : vector<8x128xf32> to vector<8x32xf32>
    %224 = vector.extract_strided_slice %221 {offsets = [0, 64], sizes = [8, 32], strides = [1, 1]} : vector<8x128xf32> to vector<8x32xf32>
    %225 = vector.extract_strided_slice %220 {offsets = [0, 96], sizes = [8, 32], strides = [1, 1]} : vector<8x128xf32> to vector<8x32xf32>
    %226 = arith.mulf %223, %140 : vector<8x32xf32>
    %227 = arith.mulf %222, %224 : vector<8x32xf32>
    %228 = arith.addf %226, %227 : vector<8x32xf32>
    %229 = math.tanh %228 : vector<8x32xf32>
    %230 = arith.mulf %225, %229 : vector<8x32xf32>
    %cst_75 = arith.constant dense<0.000000e+00> : vector<8x128xf32>
    %231 = tpu.matmul %230, %11, %cst_75 {dimension_numbers = #tpu.dot_dimension_numbers<[1], [0], [0], [1], [0, 0, 1, 1], [], []>} : vector<8x32xf32>, vector<32x128xf32>, vector<8x128xf32> -> vector<8x128xf32>
    %cst_76 = arith.constant dense<0.000000e+00> : vector<8x128xf32>
    %232 = tpu.matmul %161, %9, %cst_76 {dimension_numbers = #tpu.dot_dimension_numbers<[1], [0], [0], [1], [0, 0, 1, 1], [], []>} : vector<8x32xf32>, vector<32x128xf32>, vector<8x128xf32> -> vector<8x128xf32>
    %233 = arith.addf %231, %232 : vector<8x128xf32>
    %234 = arith.addf %233, %19 : vector<8x128xf32>
    %235 = arith.negf %234 : vector<8x128xf32>
    %236 = math.exp %235 : vector<8x128xf32>
    %cst_77 = arith.constant 1.000000e+00 : f32
    %237 = vector.broadcast %cst_77 : f32 to vector<8x128xf32>
    %238 = arith.addf %237, %236 : vector<8x128xf32>
    %239 = arith.divf %237, %238 : vector<8x128xf32>
    %240 = math.tanh %234 : vector<8x128xf32>
    %241 = vector.extract_strided_slice %239 {offsets = [0, 0], sizes = [8, 32], strides = [1, 1]} : vector<8x128xf32> to vector<8x32xf32>
    %242 = vector.extract_strided_slice %239 {offsets = [0, 32], sizes = [8, 32], strides = [1, 1]} : vector<8x128xf32> to vector<8x32xf32>
    %243 = vector.extract_strided_slice %240 {offsets = [0, 64], sizes = [8, 32], strides = [1, 1]} : vector<8x128xf32> to vector<8x32xf32>
    %244 = vector.extract_strided_slice %239 {offsets = [0, 96], sizes = [8, 32], strides = [1, 1]} : vector<8x128xf32> to vector<8x32xf32>
    %245 = arith.mulf %242, %159 : vector<8x32xf32>
    %246 = arith.mulf %241, %243 : vector<8x32xf32>
    %247 = arith.addf %245, %246 : vector<8x32xf32>
    %248 = math.tanh %247 : vector<8x32xf32>
    %249 = arith.mulf %244, %248 : vector<8x32xf32>
    %cst_78 = arith.constant dense<0.000000e+00> : vector<8x128xf32>
    %250 = tpu.matmul %249, %20, %cst_78 {dimension_numbers = #tpu.dot_dimension_numbers<[1], [0], [0], [1], [0, 0, 1, 1], [], []>} : vector<8x32xf32>, vector<32x128xf32>, vector<8x128xf32> -> vector<8x128xf32>
    %251 = arith.addf %250, %23 : vector<8x128xf32>
    %cst_79 = arith.constant 0xFF800000 : f32
    %252 = vector.broadcast %cst_79 : f32 to vector<8x128xf32>
    %253 = arith.select %2, %251, %252 : vector<8x128xi1>, vector<8x128xf32>
    %cst_80 = arith.constant dense<0xFF800000> : vector<8xf32>
    %254 = vector.multi_reduction <maximumf>, %253, %cst_80 [1] : vector<8x128xf32> to vector<8xf32>
    %255 = vector.shape_cast %254 : vector<8xf32> to vector<8x1xf32>
    %256 = vector.broadcast %255 : vector<8x1xf32> to vector<8x128xf32>
    %257 = arith.subf %253, %256 : vector<8x128xf32>
    %258 = math.exp %257 : vector<8x128xf32>
    %cst_81 = arith.constant dense<0.000000e+00> : vector<8xf32>
    %259 = vector.multi_reduction <add>, %258, %cst_81 [1] : vector<8x128xf32> to vector<8xf32>
    %260 = vector.shape_cast %259 : vector<8xf32> to vector<8x1xf32>
    %261 = math.log %260 : vector<8x1xf32>
    %262 = arith.addf %261, %255 : vector<8x1xf32>
    %263 = math.absf %251 : vector<8x128xf32>
    %cst_82 = arith.constant 0.000000e+00 : f32
    %264 = vector.broadcast %cst_82 : f32 to vector<8x128xf32>
    %265 = arith.subf %264, %263 : vector<8x128xf32>
    %266 = math.exp %265 : vector<8x128xf32>
    %cst_83 = arith.constant 0.000000e+00 : f32
    %267 = vector.broadcast %cst_83 : f32 to vector<8x128xf32>
    %268 = arith.minimumf %251, %267 : vector<8x128xf32>
    %cst_84 = arith.constant 1.000000e+00 : f32
    %269 = vector.broadcast %cst_84 : f32 to vector<8x128xf32>
    %270 = arith.addf %269, %266 : vector<8x128xf32>
    %271 = math.log %270 : vector<8x128xf32>
    %272 = arith.subf %268, %271 : vector<8x128xf32>
    %273 = vector.broadcast %262 : vector<8x1xf32> to vector<8x128xf32>
    %274 = arith.subf %251, %273 : vector<8x128xf32>
    %cst_85 = arith.constant 0.000000e+00 : f32
    %275 = vector.broadcast %cst_85 : f32 to vector<8x128xf32>
    %276 = arith.select %4, %272, %275 : vector<8x128xi1>, vector<8x128xf32>
    %277 = arith.select %2, %274, %276 : vector<8x128xi1>, vector<8x128xf32>
    %278 = vector.broadcast %255 : vector<8x1xf32> to vector<8x128xf32>
    %279 = arith.cmpf oge, %251, %278 : vector<8x128xf32>
    %280 = arith.andi %2, %279 : vector<8x128xi1>
    %c128_i32_86 = arith.constant 128 : i32
    %281 = vector.broadcast %c128_i32_86 : i32 to vector<8x128xi32>
    %282 = arith.select %280, %0, %281 : vector<8x128xi1>, vector<8x128xi32>
    %cst_87 = arith.constant dense<2147483647> : vector<8xi32>
    %283 = vector.multi_reduction <minsi>, %282, %cst_87 [1] : vector<8x128xi32> to vector<8xi32>
    %284 = vector.shape_cast %283 : vector<8xi32> to vector<8x1xi32>
    %285 = vector.broadcast %284 : vector<8x1xi32> to vector<8x128xi32>
    %286 = arith.cmpi eq, %0, %285 : vector<8x128xi32>
    %287 = arith.extui %286 : vector<8x128xi1> to vector<8x128xi32>
    %288 = arith.sitofp %287 : vector<8x128xi32> to vector<8x128xf32>
    %cst_88 = arith.constant 1.000000e+00 : f32
    %289 = vector.broadcast %cst_88 : f32 to vector<8x128xf32>
    %290 = arith.addf %289, %266 : vector<8x128xf32>
    %291 = tpu.reciprocal %290 {approx = true} : vector<8x128xf32> -> vector<8x128xf32>
    %cst_89 = arith.constant 0.000000e+00 : f32
    %292 = vector.broadcast %cst_89 : f32 to vector<8x128xf32>
    %293 = arith.cmpf oge, %251, %292 : vector<8x128xf32>
    %294 = arith.mulf %266, %291 : vector<8x128xf32>
    %295 = arith.select %293, %291, %294 : vector<8x128xi1>, vector<8x128xf32>
    %296 = arith.select %4, %295, %288 : vector<8x128xi1>, vector<8x128xf32>
    %c2 = arith.constant 2 : index
    %c0_90 = arith.constant 0 : index
    %c0_91 = arith.constant 0 : index
    %297 = vector.load %arg8[%c2, %c0_90, %c0_91] : memref<6x8x128xf32, #tpu.memory_space<vmem>>, vector<1x8x128xf32>
    %298 = vector.shape_cast %297 : vector<1x8x128xf32> to vector<8x128xf32>
    %299 = vector.shape_cast %277 : vector<8x128xf32> to vector<1x8x128xf32>
    tpu.vector_store %arg8[%c2, %c0_90, %c0_91], %299 {strides = array<i32>} : memref<6x8x128xf32, #tpu.memory_space<vmem>>, vector<1x8x128xf32>,
    %cst_92 = arith.constant dense<0.000000e+00> : vector<8x128xf32>
    %300 = tpu.matmul %296, %5, %cst_92 {dimension_numbers = #tpu.dot_dimension_numbers<[1], [0], [0], [1], [0, 0, 1, 1], [], []>} : vector<8x128xf32>, vector<128x128xf32>, vector<8x128xf32> -> vector<8x128xf32>
    %cst_93 = arith.constant dense<0.000000e+00> : vector<8x128xf32>
    %301 = tpu.matmul %230, %7, %cst_93 {dimension_numbers = #tpu.dot_dimension_numbers<[1], [0], [0], [1], [0, 0, 1, 1], [], []>} : vector<8x32xf32>, vector<32x128xf32>, vector<8x128xf32> -> vector<8x128xf32>
    %302 = arith.addf %300, %301 : vector<8x128xf32>
    %303 = arith.addf %302, %15 : vector<8x128xf32>
    %304 = arith.negf %303 : vector<8x128xf32>
    %305 = math.exp %304 : vector<8x128xf32>
    %cst_94 = arith.constant 1.000000e+00 : f32
    %306 = vector.broadcast %cst_94 : f32 to vector<8x128xf32>
    %307 = arith.addf %306, %305 : vector<8x128xf32>
    %308 = arith.divf %306, %307 : vector<8x128xf32>
    %309 = math.tanh %303 : vector<8x128xf32>
    %310 = vector.extract_strided_slice %308 {offsets = [0, 0], sizes = [8, 32], strides = [1, 1]} : vector<8x128xf32> to vector<8x32xf32>
    %311 = vector.extract_strided_slice %308 {offsets = [0, 32], sizes = [8, 32], strides = [1, 1]} : vector<8x128xf32> to vector<8x32xf32>
    %312 = vector.extract_strided_slice %309 {offsets = [0, 64], sizes = [8, 32], strides = [1, 1]} : vector<8x128xf32> to vector<8x32xf32>
    %313 = vector.extract_strided_slice %308 {offsets = [0, 96], sizes = [8, 32], strides = [1, 1]} : vector<8x128xf32> to vector<8x32xf32>
    %314 = arith.mulf %311, %228 : vector<8x32xf32>
    %315 = arith.mulf %310, %312 : vector<8x32xf32>
    %316 = arith.addf %314, %315 : vector<8x32xf32>
    %317 = math.tanh %316 : vector<8x32xf32>
    %318 = arith.mulf %313, %317 : vector<8x32xf32>
    %cst_95 = arith.constant dense<0.000000e+00> : vector<8x128xf32>
    %319 = tpu.matmul %318, %11, %cst_95 {dimension_numbers = #tpu.dot_dimension_numbers<[1], [0], [0], [1], [0, 0, 1, 1], [], []>} : vector<8x32xf32>, vector<32x128xf32>, vector<8x128xf32> -> vector<8x128xf32>
    %cst_96 = arith.constant dense<0.000000e+00> : vector<8x128xf32>
    %320 = tpu.matmul %249, %9, %cst_96 {dimension_numbers = #tpu.dot_dimension_numbers<[1], [0], [0], [1], [0, 0, 1, 1], [], []>} : vector<8x32xf32>, vector<32x128xf32>, vector<8x128xf32> -> vector<8x128xf32>
    %321 = arith.addf %319, %320 : vector<8x128xf32>
    %322 = arith.addf %321, %19 : vector<8x128xf32>
    %323 = arith.negf %322 : vector<8x128xf32>
    %324 = math.exp %323 : vector<8x128xf32>
    %cst_97 = arith.constant 1.000000e+00 : f32
    %325 = vector.broadcast %cst_97 : f32 to vector<8x128xf32>
    %326 = arith.addf %325, %324 : vector<8x128xf32>
    %327 = arith.divf %325, %326 : vector<8x128xf32>
    %328 = math.tanh %322 : vector<8x128xf32>
    %329 = vector.extract_strided_slice %327 {offsets = [0, 0], sizes = [8, 32], strides = [1, 1]} : vector<8x128xf32> to vector<8x32xf32>
    %330 = vector.extract_strided_slice %327 {offsets = [0, 32], sizes = [8, 32], strides = [1, 1]} : vector<8x128xf32> to vector<8x32xf32>
    %331 = vector.extract_strided_slice %328 {offsets = [0, 64], sizes = [8, 32], strides = [1, 1]} : vector<8x128xf32> to vector<8x32xf32>
    %332 = vector.extract_strided_slice %327 {offsets = [0, 96], sizes = [8, 32], strides = [1, 1]} : vector<8x128xf32> to vector<8x32xf32>
    %333 = arith.mulf %330, %247 : vector<8x32xf32>
    %334 = arith.mulf %329, %331 : vector<8x32xf32>
    %335 = arith.addf %333, %334 : vector<8x32xf32>
    %336 = math.tanh %335 : vector<8x32xf32>
    %337 = arith.mulf %332, %336 : vector<8x32xf32>
    %cst_98 = arith.constant dense<0.000000e+00> : vector<8x128xf32>
    %338 = tpu.matmul %337, %20, %cst_98 {dimension_numbers = #tpu.dot_dimension_numbers<[1], [0], [0], [1], [0, 0, 1, 1], [], []>} : vector<8x32xf32>, vector<32x128xf32>, vector<8x128xf32> -> vector<8x128xf32>
    %339 = arith.addf %338, %23 : vector<8x128xf32>
    %cst_99 = arith.constant 0xFF800000 : f32
    %340 = vector.broadcast %cst_99 : f32 to vector<8x128xf32>
    %341 = arith.select %2, %339, %340 : vector<8x128xi1>, vector<8x128xf32>
    %cst_100 = arith.constant dense<0xFF800000> : vector<8xf32>
    %342 = vector.multi_reduction <maximumf>, %341, %cst_100 [1] : vector<8x128xf32> to vector<8xf32>
    %343 = vector.shape_cast %342 : vector<8xf32> to vector<8x1xf32>
    %344 = vector.broadcast %343 : vector<8x1xf32> to vector<8x128xf32>
    %345 = arith.subf %341, %344 : vector<8x128xf32>
    %346 = math.exp %345 : vector<8x128xf32>
    %cst_101 = arith.constant dense<0.000000e+00> : vector<8xf32>
    %347 = vector.multi_reduction <add>, %346, %cst_101 [1] : vector<8x128xf32> to vector<8xf32>
    %348 = vector.shape_cast %347 : vector<8xf32> to vector<8x1xf32>
    %349 = math.log %348 : vector<8x1xf32>
    %350 = arith.addf %349, %343 : vector<8x1xf32>
    %351 = math.absf %339 : vector<8x128xf32>
    %cst_102 = arith.constant 0.000000e+00 : f32
    %352 = vector.broadcast %cst_102 : f32 to vector<8x128xf32>
    %353 = arith.subf %352, %351 : vector<8x128xf32>
    %354 = math.exp %353 : vector<8x128xf32>
    %cst_103 = arith.constant 0.000000e+00 : f32
    %355 = vector.broadcast %cst_103 : f32 to vector<8x128xf32>
    %356 = arith.minimumf %339, %355 : vector<8x128xf32>
    %cst_104 = arith.constant 1.000000e+00 : f32
    %357 = vector.broadcast %cst_104 : f32 to vector<8x128xf32>
    %358 = arith.addf %357, %354 : vector<8x128xf32>
    %359 = math.log %358 : vector<8x128xf32>
    %360 = arith.subf %356, %359 : vector<8x128xf32>
    %361 = vector.broadcast %350 : vector<8x1xf32> to vector<8x128xf32>
    %362 = arith.subf %339, %361 : vector<8x128xf32>
    %cst_105 = arith.constant 0.000000e+00 : f32
    %363 = vector.broadcast %cst_105 : f32 to vector<8x128xf32>
    %364 = arith.select %4, %360, %363 : vector<8x128xi1>, vector<8x128xf32>
    %365 = arith.select %2, %362, %364 : vector<8x128xi1>, vector<8x128xf32>
    %366 = vector.broadcast %343 : vector<8x1xf32> to vector<8x128xf32>
    %367 = arith.cmpf oge, %339, %366 : vector<8x128xf32>
    %368 = arith.andi %2, %367 : vector<8x128xi1>
    %c128_i32_106 = arith.constant 128 : i32
    %369 = vector.broadcast %c128_i32_106 : i32 to vector<8x128xi32>
    %370 = arith.select %368, %0, %369 : vector<8x128xi1>, vector<8x128xi32>
    %cst_107 = arith.constant dense<2147483647> : vector<8xi32>
    %371 = vector.multi_reduction <minsi>, %370, %cst_107 [1] : vector<8x128xi32> to vector<8xi32>
    %372 = vector.shape_cast %371 : vector<8xi32> to vector<8x1xi32>
    %373 = vector.broadcast %372 : vector<8x1xi32> to vector<8x128xi32>
    %374 = arith.cmpi eq, %0, %373 : vector<8x128xi32>
    %375 = arith.extui %374 : vector<8x128xi1> to vector<8x128xi32>
    %376 = arith.sitofp %375 : vector<8x128xi32> to vector<8x128xf32>
    %cst_108 = arith.constant 1.000000e+00 : f32
    %377 = vector.broadcast %cst_108 : f32 to vector<8x128xf32>
    %378 = arith.addf %377, %354 : vector<8x128xf32>
    %379 = tpu.reciprocal %378 {approx = true} : vector<8x128xf32> -> vector<8x128xf32>
    %cst_109 = arith.constant 0.000000e+00 : f32
    %380 = vector.broadcast %cst_109 : f32 to vector<8x128xf32>
    %381 = arith.cmpf oge, %339, %380 : vector<8x128xf32>
    %382 = arith.mulf %354, %379 : vector<8x128xf32>
    %383 = arith.select %381, %379, %382 : vector<8x128xi1>, vector<8x128xf32>
    %384 = arith.select %4, %383, %376 : vector<8x128xi1>, vector<8x128xf32>
    %c3 = arith.constant 3 : index
    %c0_110 = arith.constant 0 : index
    %c0_111 = arith.constant 0 : index
    %385 = vector.load %arg8[%c3, %c0_110, %c0_111] : memref<6x8x128xf32, #tpu.memory_space<vmem>>, vector<1x8x128xf32>
    %386 = vector.shape_cast %385 : vector<1x8x128xf32> to vector<8x128xf32>
    %387 = vector.shape_cast %365 : vector<8x128xf32> to vector<1x8x128xf32>
    tpu.vector_store %arg8[%c3, %c0_110, %c0_111], %387 {strides = array<i32>} : memref<6x8x128xf32, #tpu.memory_space<vmem>>, vector<1x8x128xf32>,
    %cst_112 = arith.constant dense<0.000000e+00> : vector<8x128xf32>
    %388 = tpu.matmul %384, %5, %cst_112 {dimension_numbers = #tpu.dot_dimension_numbers<[1], [0], [0], [1], [0, 0, 1, 1], [], []>} : vector<8x128xf32>, vector<128x128xf32>, vector<8x128xf32> -> vector<8x128xf32>
    %cst_113 = arith.constant dense<0.000000e+00> : vector<8x128xf32>
    %389 = tpu.matmul %318, %7, %cst_113 {dimension_numbers = #tpu.dot_dimension_numbers<[1], [0], [0], [1], [0, 0, 1, 1], [], []>} : vector<8x32xf32>, vector<32x128xf32>, vector<8x128xf32> -> vector<8x128xf32>
    %390 = arith.addf %388, %389 : vector<8x128xf32>
    %391 = arith.addf %390, %15 : vector<8x128xf32>
    %392 = arith.negf %391 : vector<8x128xf32>
    %393 = math.exp %392 : vector<8x128xf32>
    %cst_114 = arith.constant 1.000000e+00 : f32
    %394 = vector.broadcast %cst_114 : f32 to vector<8x128xf32>
    %395 = arith.addf %394, %393 : vector<8x128xf32>
    %396 = arith.divf %394, %395 : vector<8x128xf32>
    %397 = math.tanh %391 : vector<8x128xf32>
    %398 = vector.extract_strided_slice %396 {offsets = [0, 0], sizes = [8, 32], strides = [1, 1]} : vector<8x128xf32> to vector<8x32xf32>
    %399 = vector.extract_strided_slice %396 {offsets = [0, 32], sizes = [8, 32], strides = [1, 1]} : vector<8x128xf32> to vector<8x32xf32>
    %400 = vector.extract_strided_slice %397 {offsets = [0, 64], sizes = [8, 32], strides = [1, 1]} : vector<8x128xf32> to vector<8x32xf32>
    %401 = vector.extract_strided_slice %396 {offsets = [0, 96], sizes = [8, 32], strides = [1, 1]} : vector<8x128xf32> to vector<8x32xf32>
    %402 = arith.mulf %399, %316 : vector<8x32xf32>
    %403 = arith.mulf %398, %400 : vector<8x32xf32>
    %404 = arith.addf %402, %403 : vector<8x32xf32>
    %405 = math.tanh %404 : vector<8x32xf32>
    %406 = arith.mulf %401, %405 : vector<8x32xf32>
    %cst_115 = arith.constant dense<0.000000e+00> : vector<8x128xf32>
    %407 = tpu.matmul %406, %11, %cst_115 {dimension_numbers = #tpu.dot_dimension_numbers<[1], [0], [0], [1], [0, 0, 1, 1], [], []>} : vector<8x32xf32>, vector<32x128xf32>, vector<8x128xf32> -> vector<8x128xf32>
    %cst_116 = arith.constant dense<0.000000e+00> : vector<8x128xf32>
    %408 = tpu.matmul %337, %9, %cst_116 {dimension_numbers = #tpu.dot_dimension_numbers<[1], [0], [0], [1], [0, 0, 1, 1], [], []>} : vector<8x32xf32>, vector<32x128xf32>, vector<8x128xf32> -> vector<8x128xf32>
    %409 = arith.addf %407, %408 : vector<8x128xf32>
    %410 = arith.addf %409, %19 : vector<8x128xf32>
    %411 = arith.negf %410 : vector<8x128xf32>
    %412 = math.exp %411 : vector<8x128xf32>
    %cst_117 = arith.constant 1.000000e+00 : f32
    %413 = vector.broadcast %cst_117 : f32 to vector<8x128xf32>
    %414 = arith.addf %413, %412 : vector<8x128xf32>
    %415 = arith.divf %413, %414 : vector<8x128xf32>
    %416 = math.tanh %410 : vector<8x128xf32>
    %417 = vector.extract_strided_slice %415 {offsets = [0, 0], sizes = [8, 32], strides = [1, 1]} : vector<8x128xf32> to vector<8x32xf32>
    %418 = vector.extract_strided_slice %415 {offsets = [0, 32], sizes = [8, 32], strides = [1, 1]} : vector<8x128xf32> to vector<8x32xf32>
    %419 = vector.extract_strided_slice %416 {offsets = [0, 64], sizes = [8, 32], strides = [1, 1]} : vector<8x128xf32> to vector<8x32xf32>
    %420 = vector.extract_strided_slice %415 {offsets = [0, 96], sizes = [8, 32], strides = [1, 1]} : vector<8x128xf32> to vector<8x32xf32>
    %421 = arith.mulf %418, %335 : vector<8x32xf32>
    %422 = arith.mulf %417, %419 : vector<8x32xf32>
    %423 = arith.addf %421, %422 : vector<8x32xf32>
    %424 = math.tanh %423 : vector<8x32xf32>
    %425 = arith.mulf %420, %424 : vector<8x32xf32>
    %cst_118 = arith.constant dense<0.000000e+00> : vector<8x128xf32>
    %426 = tpu.matmul %425, %20, %cst_118 {dimension_numbers = #tpu.dot_dimension_numbers<[1], [0], [0], [1], [0, 0, 1, 1], [], []>} : vector<8x32xf32>, vector<32x128xf32>, vector<8x128xf32> -> vector<8x128xf32>
    %427 = arith.addf %426, %23 : vector<8x128xf32>
    %cst_119 = arith.constant 0xFF800000 : f32
    %428 = vector.broadcast %cst_119 : f32 to vector<8x128xf32>
    %429 = arith.select %2, %427, %428 : vector<8x128xi1>, vector<8x128xf32>
    %cst_120 = arith.constant dense<0xFF800000> : vector<8xf32>
    %430 = vector.multi_reduction <maximumf>, %429, %cst_120 [1] : vector<8x128xf32> to vector<8xf32>
    %431 = vector.shape_cast %430 : vector<8xf32> to vector<8x1xf32>
    %432 = vector.broadcast %431 : vector<8x1xf32> to vector<8x128xf32>
    %433 = arith.subf %429, %432 : vector<8x128xf32>
    %434 = math.exp %433 : vector<8x128xf32>
    %cst_121 = arith.constant dense<0.000000e+00> : vector<8xf32>
    %435 = vector.multi_reduction <add>, %434, %cst_121 [1] : vector<8x128xf32> to vector<8xf32>
    %436 = vector.shape_cast %435 : vector<8xf32> to vector<8x1xf32>
    %437 = math.log %436 : vector<8x1xf32>
    %438 = arith.addf %437, %431 : vector<8x1xf32>
    %439 = math.absf %427 : vector<8x128xf32>
    %cst_122 = arith.constant 0.000000e+00 : f32
    %440 = vector.broadcast %cst_122 : f32 to vector<8x128xf32>
    %441 = arith.subf %440, %439 : vector<8x128xf32>
    %442 = math.exp %441 : vector<8x128xf32>
    %cst_123 = arith.constant 0.000000e+00 : f32
    %443 = vector.broadcast %cst_123 : f32 to vector<8x128xf32>
    %444 = arith.minimumf %427, %443 : vector<8x128xf32>
    %cst_124 = arith.constant 1.000000e+00 : f32
    %445 = vector.broadcast %cst_124 : f32 to vector<8x128xf32>
    %446 = arith.addf %445, %442 : vector<8x128xf32>
    %447 = math.log %446 : vector<8x128xf32>
    %448 = arith.subf %444, %447 : vector<8x128xf32>
    %449 = vector.broadcast %438 : vector<8x1xf32> to vector<8x128xf32>
    %450 = arith.subf %427, %449 : vector<8x128xf32>
    %cst_125 = arith.constant 0.000000e+00 : f32
    %451 = vector.broadcast %cst_125 : f32 to vector<8x128xf32>
    %452 = arith.select %4, %448, %451 : vector<8x128xi1>, vector<8x128xf32>
    %453 = arith.select %2, %450, %452 : vector<8x128xi1>, vector<8x128xf32>
    %454 = vector.broadcast %431 : vector<8x1xf32> to vector<8x128xf32>
    %455 = arith.cmpf oge, %427, %454 : vector<8x128xf32>
    %456 = arith.andi %2, %455 : vector<8x128xi1>
    %c128_i32_126 = arith.constant 128 : i32
    %457 = vector.broadcast %c128_i32_126 : i32 to vector<8x128xi32>
    %458 = arith.select %456, %0, %457 : vector<8x128xi1>, vector<8x128xi32>
    %cst_127 = arith.constant dense<2147483647> : vector<8xi32>
    %459 = vector.multi_reduction <minsi>, %458, %cst_127 [1] : vector<8x128xi32> to vector<8xi32>
    %460 = vector.shape_cast %459 : vector<8xi32> to vector<8x1xi32>
    %461 = vector.broadcast %460 : vector<8x1xi32> to vector<8x128xi32>
    %462 = arith.cmpi eq, %0, %461 : vector<8x128xi32>
    %463 = arith.extui %462 : vector<8x128xi1> to vector<8x128xi32>
    %464 = arith.sitofp %463 : vector<8x128xi32> to vector<8x128xf32>
    %cst_128 = arith.constant 1.000000e+00 : f32
    %465 = vector.broadcast %cst_128 : f32 to vector<8x128xf32>
    %466 = arith.addf %465, %442 : vector<8x128xf32>
    %467 = tpu.reciprocal %466 {approx = true} : vector<8x128xf32> -> vector<8x128xf32>
    %cst_129 = arith.constant 0.000000e+00 : f32
    %468 = vector.broadcast %cst_129 : f32 to vector<8x128xf32>
    %469 = arith.cmpf oge, %427, %468 : vector<8x128xf32>
    %470 = arith.mulf %442, %467 : vector<8x128xf32>
    %471 = arith.select %469, %467, %470 : vector<8x128xi1>, vector<8x128xf32>
    %472 = arith.select %4, %471, %464 : vector<8x128xi1>, vector<8x128xf32>
    %c4 = arith.constant 4 : index
    %c0_130 = arith.constant 0 : index
    %c0_131 = arith.constant 0 : index
    %473 = vector.load %arg8[%c4, %c0_130, %c0_131] : memref<6x8x128xf32, #tpu.memory_space<vmem>>, vector<1x8x128xf32>
    %474 = vector.shape_cast %473 : vector<1x8x128xf32> to vector<8x128xf32>
    %475 = vector.shape_cast %453 : vector<8x128xf32> to vector<1x8x128xf32>
    tpu.vector_store %arg8[%c4, %c0_130, %c0_131], %475 {strides = array<i32>} : memref<6x8x128xf32, #tpu.memory_space<vmem>>, vector<1x8x128xf32>,
    %cst_132 = arith.constant dense<0.000000e+00> : vector<8x128xf32>
    %476 = tpu.matmul %472, %5, %cst_132 {dimension_numbers = #tpu.dot_dimension_numbers<[1], [0], [0], [1], [0, 0, 1, 1], [], []>} : vector<8x128xf32>, vector<128x128xf32>, vector<8x128xf32> -> vector<8x128xf32>
    %cst_133 = arith.constant dense<0.000000e+00> : vector<8x128xf32>
    %477 = tpu.matmul %406, %7, %cst_133 {dimension_numbers = #tpu.dot_dimension_numbers<[1], [0], [0], [1], [0, 0, 1, 1], [], []>} : vector<8x32xf32>, vector<32x128xf32>, vector<8x128xf32> -> vector<8x128xf32>
    %478 = arith.addf %476, %477 : vector<8x128xf32>
    %479 = arith.addf %478, %15 : vector<8x128xf32>
    %480 = arith.negf %479 : vector<8x128xf32>
    %481 = math.exp %480 : vector<8x128xf32>
    %cst_134 = arith.constant 1.000000e+00 : f32
    %482 = vector.broadcast %cst_134 : f32 to vector<8x128xf32>
    %483 = arith.addf %482, %481 : vector<8x128xf32>
    %484 = arith.divf %482, %483 : vector<8x128xf32>
    %485 = math.tanh %479 : vector<8x128xf32>
    %486 = vector.extract_strided_slice %484 {offsets = [0, 0], sizes = [8, 32], strides = [1, 1]} : vector<8x128xf32> to vector<8x32xf32>
    %487 = vector.extract_strided_slice %484 {offsets = [0, 32], sizes = [8, 32], strides = [1, 1]} : vector<8x128xf32> to vector<8x32xf32>
    %488 = vector.extract_strided_slice %485 {offsets = [0, 64], sizes = [8, 32], strides = [1, 1]} : vector<8x128xf32> to vector<8x32xf32>
    %489 = vector.extract_strided_slice %484 {offsets = [0, 96], sizes = [8, 32], strides = [1, 1]} : vector<8x128xf32> to vector<8x32xf32>
    %490 = arith.mulf %487, %404 : vector<8x32xf32>
    %491 = arith.mulf %486, %488 : vector<8x32xf32>
    %492 = arith.addf %490, %491 : vector<8x32xf32>
    %493 = math.tanh %492 : vector<8x32xf32>
    %494 = arith.mulf %489, %493 : vector<8x32xf32>
    %cst_135 = arith.constant dense<0.000000e+00> : vector<8x128xf32>
    %495 = tpu.matmul %494, %11, %cst_135 {dimension_numbers = #tpu.dot_dimension_numbers<[1], [0], [0], [1], [0, 0, 1, 1], [], []>} : vector<8x32xf32>, vector<32x128xf32>, vector<8x128xf32> -> vector<8x128xf32>
    %cst_136 = arith.constant dense<0.000000e+00> : vector<8x128xf32>
    %496 = tpu.matmul %425, %9, %cst_136 {dimension_numbers = #tpu.dot_dimension_numbers<[1], [0], [0], [1], [0, 0, 1, 1], [], []>} : vector<8x32xf32>, vector<32x128xf32>, vector<8x128xf32> -> vector<8x128xf32>
    %497 = arith.addf %495, %496 : vector<8x128xf32>
    %498 = arith.addf %497, %19 : vector<8x128xf32>
    %499 = arith.negf %498 : vector<8x128xf32>
    %500 = math.exp %499 : vector<8x128xf32>
    %cst_137 = arith.constant 1.000000e+00 : f32
    %501 = vector.broadcast %cst_137 : f32 to vector<8x128xf32>
    %502 = arith.addf %501, %500 : vector<8x128xf32>
    %503 = arith.divf %501, %502 : vector<8x128xf32>
    %504 = math.tanh %498 : vector<8x128xf32>
    %505 = vector.extract_strided_slice %503 {offsets = [0, 0], sizes = [8, 32], strides = [1, 1]} : vector<8x128xf32> to vector<8x32xf32>
    %506 = vector.extract_strided_slice %503 {offsets = [0, 32], sizes = [8, 32], strides = [1, 1]} : vector<8x128xf32> to vector<8x32xf32>
    %507 = vector.extract_strided_slice %504 {offsets = [0, 64], sizes = [8, 32], strides = [1, 1]} : vector<8x128xf32> to vector<8x32xf32>
    %508 = vector.extract_strided_slice %503 {offsets = [0, 96], sizes = [8, 32], strides = [1, 1]} : vector<8x128xf32> to vector<8x32xf32>
    %509 = arith.mulf %506, %423 : vector<8x32xf32>
    %510 = arith.mulf %505, %507 : vector<8x32xf32>
    %511 = arith.addf %509, %510 : vector<8x32xf32>
    %512 = math.tanh %511 : vector<8x32xf32>
    %513 = arith.mulf %508, %512 : vector<8x32xf32>
    %cst_138 = arith.constant dense<0.000000e+00> : vector<8x128xf32>
    %514 = tpu.matmul %513, %20, %cst_138 {dimension_numbers = #tpu.dot_dimension_numbers<[1], [0], [0], [1], [0, 0, 1, 1], [], []>} : vector<8x32xf32>, vector<32x128xf32>, vector<8x128xf32> -> vector<8x128xf32>
    %515 = arith.addf %514, %23 : vector<8x128xf32>
    %cst_139 = arith.constant 0xFF800000 : f32
    %516 = vector.broadcast %cst_139 : f32 to vector<8x128xf32>
    %517 = arith.select %2, %515, %516 : vector<8x128xi1>, vector<8x128xf32>
    %cst_140 = arith.constant dense<0xFF800000> : vector<8xf32>
    %518 = vector.multi_reduction <maximumf>, %517, %cst_140 [1] : vector<8x128xf32> to vector<8xf32>
    %519 = vector.shape_cast %518 : vector<8xf32> to vector<8x1xf32>
    %520 = vector.broadcast %519 : vector<8x1xf32> to vector<8x128xf32>
    %521 = arith.subf %517, %520 : vector<8x128xf32>
    %522 = math.exp %521 : vector<8x128xf32>
    %cst_141 = arith.constant dense<0.000000e+00> : vector<8xf32>
    %523 = vector.multi_reduction <add>, %522, %cst_141 [1] : vector<8x128xf32> to vector<8xf32>
    %524 = vector.shape_cast %523 : vector<8xf32> to vector<8x1xf32>
    %525 = math.log %524 : vector<8x1xf32>
    %526 = arith.addf %525, %519 : vector<8x1xf32>
    %527 = math.absf %515 : vector<8x128xf32>
    %cst_142 = arith.constant 0.000000e+00 : f32
    %528 = vector.broadcast %cst_142 : f32 to vector<8x128xf32>
    %529 = arith.subf %528, %527 : vector<8x128xf32>
    %530 = math.exp %529 : vector<8x128xf32>
    %cst_143 = arith.constant 0.000000e+00 : f32
    %531 = vector.broadcast %cst_143 : f32 to vector<8x128xf32>
    %532 = arith.minimumf %515, %531 : vector<8x128xf32>
    %cst_144 = arith.constant 1.000000e+00 : f32
    %533 = vector.broadcast %cst_144 : f32 to vector<8x128xf32>
    %534 = arith.addf %533, %530 : vector<8x128xf32>
    %535 = math.log %534 : vector<8x128xf32>
    %536 = arith.subf %532, %535 : vector<8x128xf32>
    %537 = vector.broadcast %526 : vector<8x1xf32> to vector<8x128xf32>
    %538 = arith.subf %515, %537 : vector<8x128xf32>
    %cst_145 = arith.constant 0.000000e+00 : f32
    %539 = vector.broadcast %cst_145 : f32 to vector<8x128xf32>
    %540 = arith.select %4, %536, %539 : vector<8x128xi1>, vector<8x128xf32>
    %541 = arith.select %2, %538, %540 : vector<8x128xi1>, vector<8x128xf32>
    %c5 = arith.constant 5 : index
    %c0_146 = arith.constant 0 : index
    %c0_147 = arith.constant 0 : index
    %542 = vector.load %arg8[%c5, %c0_146, %c0_147] : memref<6x8x128xf32, #tpu.memory_space<vmem>>, vector<1x8x128xf32>
    %543 = vector.shape_cast %542 : vector<1x8x128xf32> to vector<8x128xf32>
    %544 = vector.shape_cast %541 : vector<8x128xf32> to vector<1x8x128xf32>
    tpu.vector_store %arg8[%c5, %c0_146, %c0_147], %544 {strides = array<i32>} : memref<6x8x128xf32, #tpu.memory_space<vmem>>, vector<1x8x128xf32>,
    return
  }
}

</mosaic_0001>

<llo_original>
// kernel: tpu_custom_call.1
$region0: #{tpu_custom_call.1}
  #allocation0 [shape = 'u32[]', space=smem, size = 0x4, offset = 0x4, fixed_abs, tag = 'smem constant byte address 0x4 - core index']
  #allocation1 [shape = 'u32[144,128]{1,0:T(1,128)}', space=vmem, size = 0x12000, scoped, tag = 'internal scratch']
  %s0 = inlined_call_operand.hbm [shape: f32[2,8,32], index: 0, kind: input, shape index: {}]
  %s1 = inlined_call_operand.hbm [shape: f32[2,8,32], index: 1, kind: input, shape index: {}]
  %s2 = inlined_call_operand.hbm [shape: f32[128,128], index: 2, kind: input, shape index: {}]
  %s3 = inlined_call_operand.hbm [shape: f32[1,32,128], index: 3, kind: input, shape index: {}]
  %s4 = inlined_call_operand.hbm [shape: f32[2,32,128], index: 4, kind: input, shape index: {}]
  %s5 = inlined_call_operand.vmem [shape: f32[2,1,128], index: 5, kind: input, shape index: {}]
  %s6 = inlined_call_operand.hbm [shape: f32[32,128], index: 6, kind: input, shape index: {}]
  %s7 = inlined_call_operand.vmem [shape: f32[1,128], index: 7, kind: input, shape index: {}]
  %s8 = inlined_call_operand.hbm [shape: f32[6,8,128], index: 8, kind: output, shape index: {}]
  %s9 = sld [smem:[#allocation0]]
  $region66: #{tpu_custom_call.1} parent=0
    _
  %s11 = ssub.s32 1, %s9
  %s12 = scalar_select 0, %s11, %s9
  $region1: #{tpu_custom_call.1} parent=0
    #allocation2 [shape = 'u8[8192]{0}', space=vmem, size = 0x2000, scoped, tag = 'input window, operand 0, single buffered']
    #allocation3 [shape = 's32[1]{0}', space=sflag, size = 0x4, scoped, tag = 'scoped memory for tpu_custom_call.1']
    #allocation4 [shape = 's32[1]{0}', space=sflag, size = 0x4, scoped, tag = 'scoped memory for tpu_custom_call.1']
    #allocation5 [shape = 'u8[8192]{0}', space=vmem, size = 0x2000, scoped, tag = 'input window, operand 1, single buffered']
    #allocation6 [shape = 's32[1]{0}', space=sflag, size = 0x4, scoped, tag = 'scoped memory for tpu_custom_call.1']
    #allocation7 [shape = 'u8[65536]{0}', space=vmem, size = 0x10000, scoped, tag = 'input window, operand 2, single buffered']
    #allocation8 [shape = 'u8[16384]{0}', space=vmem, size = 0x4000, scoped, tag = 'input window, operand 3, single buffered']
    #allocation9 [shape = 's32[1]{0}', space=sflag, size = 0x4, scoped, tag = 'scoped memory for tpu_custom_call.1']
    #allocation10 [shape = 'u8[32768]{0}', space=vmem, size = 0x8000, scoped, tag = 'input window, operand 4, single buffered']
    #allocation11 [shape = 'u8[16384]{0}', space=vmem, size = 0x4000, scoped, tag = 'input window, operand 6, single buffered']
    #allocation12 [shape = 's32[1]{0}', space=sflag, size = 0x4, scoped, tag = 'scoped memory for tpu_custom_call.1']
    #allocation13 [shape = 'u8[24576]{0}', space=vmem, size = 0x6000, scoped, tag = 'output window, operand 0, single buffered']
    %13 = vsyncpa [#allocation3], 0
    %14 = vsyncpa [#allocation6], 0
    %15 = vsyncpa [#allocation9], 0
    %16 = vsyncpa [#allocation12], 0
    %17 = vsyncpa [#allocation4], 0
    // Predicated region
    $region2: #{tpu_custom_call.1} parent=1 // pred_check
      _
    $region3: #{tpu_custom_call.1} parent=1 // pred_check_branch
      %19 = sbr.rel (0) target = $region5
    $region4: #{tpu_custom_call.1} parent=1 // pred_region
      %s21 = ssub.s32 256, 256
      %22 = vsyncadd [#allocation3], %s21
      %s23 = sshll.u32 [#allocation2], 4
      %s24 = int_to_ptr.vmem [resolvable:$true] %s23
      %29 = dma.hbm_to_vmem [thread:$0]  %s0, 256, %s24, [#allocation3], 128, 128, 8
    $region5: #{tpu_custom_call.1} parent=1 // pred_fallthru
      _
    // Predicated region
    $region6: #{tpu_custom_call.1} parent=1 // pred_check
      _
    $region7: #{tpu_custom_call.1} parent=1 // pred_check_branch
      %31 = sbr.rel (0) target = $region9
    $region8: #{tpu_custom_call.1} parent=1 // pred_region
      %s33 = ssub.s32 256, 256
      %34 = vsyncadd [#allocation6], %s33
      %s35 = sshll.u32 [#allocation5], 4
      %s36 = int_to_ptr.vmem [resolvable:$true] %s35
      %41 = dma.hbm_to_vmem [thread:$0]  %s1, 256, %s36, [#allocation6], 128, 128, 8
    $region9: #{tpu_custom_call.1} parent=1 // pred_fallthru
      _
    // Predicated region
    $region10: #{tpu_custom_call.1} parent=1 // pred_check
      _
    $region11: #{tpu_custom_call.1} parent=1 // pred_check_branch
      %43 = sbr.rel (0) target = $region13
    $region12: #{tpu_custom_call.1} parent=1 // pred_region
      %s45 = ssub.s32 2048, 2048
      %46 = vsyncadd [#allocation6], %s45
      %s47 = sshll.u32 [#allocation7], 4
      %s48 = int_to_ptr.vmem [resolvable:$true] %s47
      %53 = dma.hbm_to_vmem [thread:$0]  %s2, 2048, %s48, [#allocation6], 128, 128, 8
    $region13: #{tpu_custom_call.1} parent=1 // pred_fallthru
      _
    // Predicated region
    $region14: #{tpu_custom_call.1} parent=1 // pred_check
      _
    $region15: #{tpu_custom_call.1} parent=1 // pred_check_branch
      %55 = sbr.rel (0) target = $region17
    $region16: #{tpu_custom_call.1} parent=1 // pred_region
      %s57 = ssub.s32 512, 512
      %58 = vsyncadd [#allocation9], %s57
      %s59 = sshll.u32 [#allocation8], 4
      %s60 = int_to_ptr.vmem [resolvable:$true] %s59
      %65 = dma.hbm_to_vmem [thread:$0]  %s3, 512, %s60, [#allocation9], 128, 128, 8
    $region17: #{tpu_custom_call.1} parent=1 // pred_fallthru
      _
    // Predicated region
    $region18: #{tpu_custom_call.1} parent=1 // pred_check
      _
    $region19: #{tpu_custom_call.1} parent=1 // pred_check_branch
      %67 = sbr.rel (0) target = $region21
    $region20: #{tpu_custom_call.1} parent=1 // pred_region
      %s69 = ssub.s32 1024, 1024
      %70 = vsyncadd [#allocation9], %s69
      %s71 = sshll.u32 [#allocation10], 4
      %s72 = int_to_ptr.vmem [resolvable:$true] %s71
      %77 = dma.hbm_to_vmem [thread:$0]  %s4, 1024, %s72, [#allocation9], 128, 128, 8
    $region21: #{tpu_custom_call.1} parent=1 // pred_fallthru
      _
    // Predicated region
    $region22: #{tpu_custom_call.1} parent=1 // pred_check
      _
    $region23: #{tpu_custom_call.1} parent=1 // pred_check_branch
      %79 = sbr.rel (0) target = $region25
    $region24: #{tpu_custom_call.1} parent=1 // pred_region
      _
    $region25: #{tpu_custom_call.1} parent=1 // pred_fallthru
      _
    // Predicated region
    $region26: #{tpu_custom_call.1} parent=1 // pred_check
      _
    $region27: #{tpu_custom_call.1} parent=1 // pred_check_branch
      %81 = sbr.rel (0) target = $region29
    $region28: #{tpu_custom_call.1} parent=1 // pred_region
      %s83 = ssub.s32 512, 512
      %84 = vsyncadd [#allocation12], %s83
      %s85 = sshll.u32 [#allocation11], 4
      %s86 = int_to_ptr.vmem [resolvable:$true] %s85
      %91 = dma.hbm_to_vmem [thread:$0]  %s6, 512, %s86, [#allocation12], 128, 128, 8
    $region29: #{tpu_custom_call.1} parent=1 // pred_fallthru
      _
    // Predicated region
    $region30: #{tpu_custom_call.1} parent=1 // pred_check
      _
    $region31: #{tpu_custom_call.1} parent=1 // pred_check_branch
      %93 = sbr.rel (0) target = $region33
    $region32: #{tpu_custom_call.1} parent=1 // pred_region
      _
    $region33: #{tpu_custom_call.1} parent=1 // pred_fallthru
      _
    // Predicated region
    $region34: #{tpu_custom_call.1} parent=1 // pred_check
      _
    $region35: #{tpu_custom_call.1} parent=1 // pred_check_branch
      %95 = sbr.rel (0) target = $region37
    $region36: #{tpu_custom_call.1} parent=1 // pred_region
      %96 = dma.done [#allocation3], 256
    $region37: #{tpu_custom_call.1} parent=1 // pred_fallthru
      _
    // Predicated region
    $region38: #{tpu_custom_call.1} parent=1 // pred_check
      _
    $region39: #{tpu_custom_call.1} parent=1 // pred_check_branch
      %98 = sbr.rel (0) target = $region41
    $region40: #{tpu_custom_call.1} parent=1 // pred_region
      %99 = dma.done [#allocation6], 256
    $region41: #{tpu_custom_call.1} parent=1 // pred_fallthru
      _
    // Predicated region
    $region42: #{tpu_custom_call.1} parent=1 // pred_check
      _
    $region43: #{tpu_custom_call.1} parent=1 // pred_check_branch
      %101 = sbr.rel (0) target = $region45
    $region44: #{tpu_custom_call.1} parent=1 // pred_region
      %102 = dma.done [#allocation6], 2048
    $region45: #{tpu_custom_call.1} parent=1 // pred_fallthru
      _
    // Predicated region
    $region46: #{tpu_custom_call.1} parent=1 // pred_check
      _
    $region47: #{tpu_custom_call.1} parent=1 // pred_check_branch
      %104 = sbr.rel (0) target = $region49
    $region48: #{tpu_custom_call.1} parent=1 // pred_region
      %105 = dma.done [#allocation9], 512
    $region49: #{tpu_custom_call.1} parent=1 // pred_fallthru
      _
    // Predicated region
    $region50: #{tpu_custom_call.1} parent=1 // pred_check
      _
    $region51: #{tpu_custom_call.1} parent=1 // pred_check_branch
      %107 = sbr.rel (0) target = $region53
    $region52: #{tpu_custom_call.1} parent=1 // pred_region
      %108 = dma.done [#allocation9], 1024
    $region53: #{tpu_custom_call.1} parent=1 // pred_fallthru
      _
    // Predicated region
    $region54: #{tpu_custom_call.1} parent=1 // pred_check
      _
    $region55: #{tpu_custom_call.1} parent=1 // pred_check_branch
      %110 = sbr.rel (0) target = $region57
    $region56: #{tpu_custom_call.1} parent=1 // pred_region
      %111 = dma.done [#allocation12], 512
    $region57: #{tpu_custom_call.1} parent=1 // pred_fallthru
      _
    %v112 = vlaneseq
    %v113 = vand.u32 %v112, 127
    %vm114 = vcmp.lt.s32.totalorder %v113, 6
    %vm115 = vcmp.eq.s32.totalorder %v113, 6
    %v116 = vld [vmem:[#allocation7] sm:$0xff]
    %v117 = vld [vmem:[#allocation7 + $0x8] sm:$0xff]
    %v118 = vld [vmem:[#allocation7 + $0x10] sm:$0xff]
    %v119 = vld [vmem:[#allocation7 + $0x18] sm:$0xff]
    %v120 = vld [vmem:[#allocation7 + $0x20] sm:$0xff]
    %v121 = vld [vmem:[#allocation7 + $0x28] sm:$0xff]
    %v122 = vld [vmem:[#allocation7 + $0x30] sm:$0xff]
    %v123 = vld [vmem:[#allocation7 + $0x38] sm:$0xff]
    %v124 = vld [vmem:[#allocation7 + $0x40] sm:$0xff]
    %v125 = vld [vmem:[#allocation7 + $0x48] sm:$0xff]
    %v126 = vld [vmem:[#allocation7 + $0x50] sm:$0xff]
    %v127 = vld [vmem:[#allocation7 + $0x58] sm:$0xff]
    %v128 = vld [vmem:[#allocation7 + $0x60] sm:$0xff]
    %v129 = vld [vmem:[#allocation7 + $0x68] sm:$0xff]
    %v130 = vld [vmem:[#allocation7 + $0x70] sm:$0xff]
    %v131 = vld [vmem:[#allocation7 + $0x78] sm:$0xff]
    %v132 = vld [vmem:[#allocation10] sm:$0xff]
    %v133 = vld [vmem:[#allocation10 + $0x8] sm:$0xff]
    %v134 = vld [vmem:[#allocation10 + $0x10] sm:$0xff]
    %v135 = vld [vmem:[#allocation10 + $0x18] sm:$0xff]
    %s136 = scalar_lea.vmem [#allocation10], 32
    %v137 = vld [vmem:[%s136] sm:$0xff]
    %v138 = vld [vmem:[%s136 + $0x8] sm:$0xff]
    %v139 = vld [vmem:[%s136 + $0x10] sm:$0xff]
    %v140 = vld [vmem:[%s136 + $0x18] sm:$0xff]
    %v141 = vld [vmem:[#allocation8] sm:$0xff]
    %v142 = vld [vmem:[#allocation8 + $0x8] sm:$0xff]
    %v143 = vld [vmem:[#allocation8 + $0x10] sm:$0xff]
    %v144 = vld [vmem:[#allocation8 + $0x18] sm:$0xff]
    %v145 = vld [vmem:[%s5] sm:$0x1]
    %v147 = vlaneseq
    %v148 = vshrl.u32 %v147, 7
    %v149 = vsub.s32 0, %v148
    %v150 = vrot.slane %v145, %v149
    %s152 = scalar_lea.vmem %s5, 1
    %v153 = vld [vmem:[%s152] sm:$0x1]
    %v155 = vlaneseq
    %v156 = vshrl.u32 %v155, 7
    %v157 = vsub.s32 0, %v156
    %v158 = vrot.slane %v153, %v157
    %v160 = vld [vmem:[#allocation11] sm:$0xff]
    %v161 = vld [vmem:[#allocation11 + $0x8] sm:$0xff]
    %v162 = vld [vmem:[#allocation11 + $0x10] sm:$0xff]
    %v163 = vld [vmem:[#allocation11 + $0x18] sm:$0xff]
    %v164 = vld [vmem:[%s7] sm:$0x1]
    %v166 = vlaneseq
    %v167 = vshrl.u32 %v166, 7
    %v168 = vsub.s32 0, %v167
    %v169 = vrot.slane %v164, %v168
    %vm171 = vcmp.eq.s32.totalorder %v113, 0
    %v172 = vsel %vm171, 1, 0
    %v173 = vcvt.s32.f32 %v172
    %v174 = vld [vmem:[#allocation2] sm:$0xff]
    %s175 = scalar_lea.vmem [#allocation2], 8
    %v176 = vld [vmem:[%s175] sm:$0xff]
    %v177 = vld [vmem:[#allocation5] sm:$0xff]
    %s178 = scalar_lea.vmem [#allocation5], 8
    %v179 = vld [vmem:[%s178] sm:$0xff]
    %vm180 = vcmask 261120
    %v182 = vsel %vm180, %v174, 0
    %184 = vmatprep.subr.mxu0 0.0
    %185 = vmatpush1.msra.mxu0 %v132
    %186 = vmatprep.subr.mxu0 0.0
    %187 = vmatpush1.msra.mxu0 %v133
    %188 = vmatprep.subr.mxu0 0.0
    %189 = vmatpush1.msra.mxu0 %v134
    %190 = vmatprep.subr.mxu0 0.0
    %191 = vmatpush1.msra.mxu0 %v135
    %192 = vmatprep.subr.mxu0 0.0
    %193 = vmatpush1.msra.mxu0 0.0
    %194 = vmatprep.subr.mxu0 0.0
    %195 = vmatpush1.msra.mxu0 0.0
    %196 = vmatprep.subr.mxu0 0.0
    %197 = vmatpush1.msra.mxu0 0.0
    %198 = vmatprep.subr.mxu0 0.0
    %199 = vmatpush1.msra.mxu0 0.0
    %200 = vmatprep.subr.mxu0 0.0
    %201 = vmatpush1.msra.mxu0 0.0
    %202 = vmatprep.subr.mxu0 0.0
    %203 = vmatpush1.msra.mxu0 0.0
    %204 = vmatprep.subr.mxu0 0.0
    %205 = vmatpush1.msra.mxu0 0.0
    %206 = vmatprep.subr.mxu0 0.0
    %207 = vmatpush1.msra.mxu0 0.0
    %208 = vmatprep.subr.mxu0 0.0
    %209 = vmatpush1.msra.mxu0 0.0
    %210 = vmatprep.subr.mxu0 0.0
    %211 = vmatpush1.msra.mxu0 0.0
    %212 = vmatprep.subr.mxu0 0.0
    %213 = vmatpush1.msra.mxu0 0.0
    %214 = vmatprep.subr.mxu0 0.0
    %215 = vmatpush1.msra.mxu0 0.0
    %216 = vmatprep.subr.mxu0 0.0
    %217 = vmatpush1.msra.mxu0 0.0
    %218 = vmatprep.subr.mxu0 0.0
    %219 = vmatpush1.msra.mxu0 0.0
    %220 = vmatprep.subr.mxu0 0.0
    %221 = vmatpush1.msra.mxu0 0.0
    %222 = vmatprep.subr.mxu0 0.0
    %223 = vmatpush1.msra.mxu0 0.0
    %224 = vmatprep.subr.mxu0 0.0
    %225 = vmatpush1.msra.mxu0 0.0
    %226 = vmatprep.subr.mxu0 0.0
    %227 = vmatpush1.msra.mxu0 0.0
    %228 = vmatprep.subr.mxu0 0.0
    %229 = vmatpush1.msra.mxu0 0.0
    %230 = vmatprep.subr.mxu0 0.0
    %231 = vmatpush1.msra.mxu0 0.0
    %232 = vmatprep.subr.mxu0 0.0
    %233 = vmatpush1.msra.mxu0 0.0
    %234 = vmatprep.subr.mxu0 0.0
    %235 = vmatpush1.msra.mxu0 0.0
    %236 = vmatprep.subr.mxu0 0.0
    %237 = vmatpush1.msra.mxu0 0.0
    %238 = vmatprep.subr.mxu0 0.0
    %239 = vmatpush1.msra.mxu0 0.0
    %240 = vmatprep.subr.mxu0 0.0
    %241 = vmatpush1.msra.mxu0 0.0
    %242 = vmatprep.subr.mxu0 0.0
    %243 = vmatpush1.msra.mxu0 0.0
    %244 = vmatprep.subr.mxu0 0.0
    %245 = vmatpush1.msra.mxu0 0.0
    %246 = vmatprep.subr.mxu0 0.0
    %247 = vmatpush1.msra.mxu0 0.0
    %248 = vmatprep.mubr.f32.mxu0 0.0
    %249 = vmatmul.mubr.f32.gmra.mrb[0].mxu0 %v182
    %v250 = vpop.f32.mrb[0].mxu0
    %v251 = vadd.f32 0.0, %v250
    %v252 = vpop.f32.mrb[0].mxu0
    %253 = vdwg.mxu0
    %254 = vmatprep.subr.mxu0 0.0
    %255 = vmatpush1.msra.mxu0 %v116
    %256 = vmatprep.subr.mxu0 0.0
    %257 = vmatpush1.msra.mxu0 %v117
    %258 = vmatprep.subr.mxu0 0.0
    %259 = vmatpush1.msra.mxu0 %v118
    %260 = vmatprep.subr.mxu0 0.0
    %261 = vmatpush1.msra.mxu0 %v119
    %262 = vmatprep.subr.mxu0 0.0
    %263 = vmatpush1.msra.mxu0 %v120
    %264 = vmatprep.subr.mxu0 0.0
    %265 = vmatpush1.msra.mxu0 %v121
    %266 = vmatprep.subr.mxu0 0.0
    %267 = vmatpush1.msra.mxu0 %v122
    %268 = vmatprep.subr.mxu0 0.0
    %269 = vmatpush1.msra.mxu0 %v123
    %270 = vmatprep.subr.mxu0 0.0
    %271 = vmatpush1.msra.mxu0 %v124
    %272 = vmatprep.subr.mxu0 0.0
    %273 = vmatpush1.msra.mxu0 %v125
    %274 = vmatprep.subr.mxu0 0.0
    %275 = vmatpush1.msra.mxu0 %v126
    %276 = vmatprep.subr.mxu0 0.0
    %277 = vmatpush1.msra.mxu0 %v127
    %278 = vmatprep.subr.mxu0 0.0
    %279 = vmatpush1.msra.mxu0 %v128
    %280 = vmatprep.subr.mxu0 0.0
    %281 = vmatpush1.msra.mxu0 %v129
    %282 = vmatprep.subr.mxu0 0.0
    %283 = vmatpush1.msra.mxu0 %v130
    %284 = vmatprep.subr.mxu0 0.0
    %285 = vmatpush1.msra.mxu0 %v131
    %286 = vmatprep.subr.mxu0 0.0
    %287 = vmatpush1.msra.mxu0 0.0
    %288 = vmatprep.subr.mxu0 0.0
    %289 = vmatpush1.msra.mxu0 0.0
    %290 = vmatprep.subr.mxu0 0.0
    %291 = vmatpush1.msra.mxu0 0.0
    %292 = vmatprep.subr.mxu0 0.0
    %293 = vmatpush1.msra.mxu0 0.0
    %294 = vmatprep.subr.mxu0 0.0
    %295 = vmatpush1.msra.mxu0 0.0
    %296 = vmatprep.subr.mxu0 0.0
    %297 = vmatpush1.msra.mxu0 0.0
    %298 = vmatprep.subr.mxu0 0.0
    %299 = vmatpush1.msra.mxu0 0.0
    %300 = vmatprep.subr.mxu0 0.0
    %301 = vmatpush1.msra.mxu0 0.0
    %302 = vmatprep.subr.mxu0 0.0
    %303 = vmatpush1.msra.mxu0 0.0
    %304 = vmatprep.subr.mxu0 0.0
    %305 = vmatpush1.msra.mxu0 0.0
    %306 = vmatprep.subr.mxu0 0.0
    %307 = vmatpush1.msra.mxu0 0.0
    %308 = vmatprep.subr.mxu0 0.0
    %309 = vmatpush1.msra.mxu0 0.0
    %310 = vmatprep.subr.mxu0 0.0
    %311 = vmatpush1.msra.mxu0 0.0
    %312 = vmatprep.subr.mxu0 0.0
    %313 = vmatpush1.msra.mxu0 0.0
    %314 = vmatprep.subr.mxu0 0.0
    %315 = vmatpush1.msra.mxu0 0.0
    %316 = vmatprep.subr.mxu0 0.0
    %317 = vmatpush1.msra.mxu0 0.0
    %318 = vmatprep.mubr.f32.mxu0 0.0
    %319 = vmatmul.mubr.f32.gmra.mrb[0].mxu0 %v173
    %v320 = vpop.f32.mrb[0].mxu0
    %v321 = vadd.f32 %v251, %v320
    %v322 = vpop.f32.mrb[0].mxu0
    %323 = vdwg.mxu0
    %v324 = vadd.f32 %v321, %v150
    %v325 = vxor.u32 %v324, 2147483648
    %v326 = vmul.f32 %v325, 1.442695
    %v327 = vpow.pop %v326
    %v328 = vadd.f32 %v327, 1.0
    %v329 = vrcp.pop %v328
    %v330 = vmul.f32 1.0, %v329
    %v331 = vtanh.pop %v324
    %333 = vrot.lane.b32.xlu0 %v177, 32
    %v334 = vpop.permute.xlu0 %333
    %v336 = vmul.f32 %v330, %v334
    %338 = vrot.lane.b32.xlu0 %v331, 64
    %v339 = vpop.permute.xlu0 %338
    %v341 = vmul.f32 %v330, %v339
    %343 = vrot.lane.b32.xlu0 %v341, 32
    %v344 = vpop.permute.xlu0 %343
    %v346 = vadd.f32 %v336, %v344
    %v347 = vtanh.pop %v346
    %349 = vrot.lane.b32.xlu0 %v347, 64
    %v350 = vpop.permute.xlu0 %349
    %v352 = vmul.f32 %v330, %v350
    %v354 = vsel %vm180, %v176, 0
    %356 = vmatprep.subr.mxu0 0.0
    %357 = vmatpush1.msra.mxu0 %v137
    %358 = vmatprep.subr.mxu0 0.0
    %359 = vmatpush1.msra.mxu0 %v138
    %360 = vmatprep.subr.mxu0 0.0
    %361 = vmatpush1.msra.mxu0 %v139
    %362 = vmatprep.subr.mxu0 0.0
    %363 = vmatpush1.msra.mxu0 %v140
    %364 = vmatprep.subr.mxu0 0.0
    %365 = vmatpush1.msra.mxu0 0.0
    %366 = vmatprep.subr.mxu0 0.0
    %367 = vmatpush1.msra.mxu0 0.0
    %368 = vmatprep.subr.mxu0 0.0
    %369 = vmatpush1.msra.mxu0 0.0
    %370 = vmatprep.subr.mxu0 0.0
    %371 = vmatpush1.msra.mxu0 0.0
    %372 = vmatprep.subr.mxu0 0.0
    %373 = vmatpush1.msra.mxu0 0.0
    %374 = vmatprep.subr.mxu0 0.0
    %375 = vmatpush1.msra.mxu0 0.0
    %376 = vmatprep.subr.mxu0 0.0
    %377 = vmatpush1.msra.mxu0 0.0
    %378 = vmatprep.subr.mxu0 0.0
    %379 = vmatpush1.msra.mxu0 0.0
    %380 = vmatprep.subr.mxu0 0.0
    %381 = vmatpush1.msra.mxu0 0.0
    %382 = vmatprep.subr.mxu0 0.0
    %383 = vmatpush1.msra.mxu0 0.0
    %384 = vmatprep.subr.mxu0 0.0
    %385 = vmatpush1.msra.mxu0 0.0
    %386 = vmatprep.subr.mxu0 0.0
    %387 = vmatpush1.msra.mxu0 0.0
    %388 = vmatprep.subr.mxu0 0.0
    %389 = vmatpush1.msra.mxu0 0.0
    %390 = vmatprep.subr.mxu0 0.0
    %391 = vmatpush1.msra.mxu0 0.0
    %392 = vmatprep.subr.mxu0 0.0
    %393 = vmatpush1.msra.mxu0 0.0
    %394 = vmatprep.subr.mxu0 0.0
    %395 = vmatpush1.msra.mxu0 0.0
    %396 = vmatprep.subr.mxu0 0.0
    %397 = vmatpush1.msra.mxu0 0.0
    %398 = vmatprep.subr.mxu0 0.0
    %399 = vmatpush1.msra.mxu0 0.0
    %400 = vmatprep.subr.mxu0 0.0
    %401 = vmatpush1.msra.mxu0 0.0
    %402 = vmatprep.subr.mxu0 0.0
    %403 = vmatpush1.msra.mxu0 0.0
    %404 = vmatprep.subr.mxu0 0.0
    %405 = vmatpush1.msra.mxu0 0.0
    %406 = vmatprep.subr.mxu0 0.0
    %407 = vmatpush1.msra.mxu0 0.0
    %408 = vmatprep.subr.mxu0 0.0
    %409 = vmatpush1.msra.mxu0 0.0
    %410 = vmatprep.subr.mxu0 0.0
    %411 = vmatpush1.msra.mxu0 0.0
    %412 = vmatprep.subr.mxu0 0.0
    %413 = vmatpush1.msra.mxu0 0.0
    %414 = vmatprep.subr.mxu0 0.0
    %415 = vmatpush1.msra.mxu0 0.0
    %416 = vmatprep.subr.mxu0 0.0
    %417 = vmatpush1.msra.mxu0 0.0
    %418 = vmatprep.subr.mxu0 0.0
    %419 = vmatpush1.msra.mxu0 0.0
    %420 = vmatprep.mubr.f32.mxu0 0.0
    %421 = vmatmul.mubr.f32.gmra.mrb[0].mxu0 %v354
    %v422 = vpop.f32.mrb[0].mxu0
    %v423 = vadd.f32 0.0, %v422
    %v424 = vpop.f32.mrb[0].mxu0
    %425 = vdwg.mxu0
    %427 = vrot.lane.b32.xlu0 %v352, 32
    %v428 = vpop.permute.xlu0 %427
    %v429 = vsel %vm180, %v428, 0
    %431 = vmatprep.subr.mxu0 0.0
    %432 = vmatpush1.msra.mxu0 %v141
    %433 = vmatprep.subr.mxu0 0.0
    %434 = vmatpush1.msra.mxu0 %v142
    %435 = vmatprep.subr.mxu0 0.0
    %436 = vmatpush1.msra.mxu0 %v143
    %437 = vmatprep.subr.mxu0 0.0
    %438 = vmatpush1.msra.mxu0 %v144
    %439 = vmatprep.subr.mxu0 0.0
    %440 = vmatpush1.msra.mxu0 0.0
    %441 = vmatprep.subr.mxu0 0.0
    %442 = vmatpush1.msra.mxu0 0.0
    %443 = vmatprep.subr.mxu0 0.0
    %444 = vmatpush1.msra.mxu0 0.0
    %445 = vmatprep.subr.mxu0 0.0
    %446 = vmatpush1.msra.mxu0 0.0
    %447 = vmatprep.subr.mxu0 0.0
    %448 = vmatpush1.msra.mxu0 0.0
    %449 = vmatprep.subr.mxu0 0.0
    %450 = vmatpush1.msra.mxu0 0.0
    %451 = vmatprep.subr.mxu0 0.0
    %452 = vmatpush1.msra.mxu0 0.0
    %453 = vmatprep.subr.mxu0 0.0
    %454 = vmatpush1.msra.mxu0 0.0
    %455 = vmatprep.subr.mxu0 0.0
    %456 = vmatpush1.msra.mxu0 0.0
    %457 = vmatprep.subr.mxu0 0.0
    %458 = vmatpush1.msra.mxu0 0.0
    %459 = vmatprep.subr.mxu0 0.0
    %460 = vmatpush1.msra.mxu0 0.0
    %461 = vmatprep.subr.mxu0 0.0
    %462 = vmatpush1.msra.mxu0 0.0
    %463 = vmatprep.subr.mxu0 0.0
    %464 = vmatpush1.msra.mxu0 0.0
    %465 = vmatprep.subr.mxu0 0.0
    %466 = vmatpush1.msra.mxu0 0.0
    %467 = vmatprep.subr.mxu0 0.0
    %468 = vmatpush1.msra.mxu0 0.0
    %469 = vmatprep.subr.mxu0 0.0
    %470 = vmatpush1.msra.mxu0 0.0
    %471 = vmatprep.subr.mxu0 0.0
    %472 = vmatpush1.msra.mxu0 0.0
    %473 = vmatprep.subr.mxu0 0.0
    %474 = vmatpush1.msra.mxu0 0.0
    %475 = vmatprep.subr.mxu0 0.0
    %476 = vmatpush1.msra.mxu0 0.0
    %477 = vmatprep.subr.mxu0 0.0
    %478 = vmatpush1.msra.mxu0 0.0
    %479 = vmatprep.subr.mxu0 0.0
    %480 = vmatpush1.msra.mxu0 0.0
    %481 = vmatprep.subr.mxu0 0.0
    %482 = vmatpush1.msra.mxu0 0.0
    %483 = vmatprep.subr.mxu0 0.0
    %484 = vmatpush1.msra.mxu0 0.0
    %485 = vmatprep.subr.mxu0 0.0
    %486 = vmatpush1.msra.mxu0 0.0
    %487 = vmatprep.subr.mxu0 0.0
    %488 = vmatpush1.msra.mxu0 0.0
    %489 = vmatprep.subr.mxu0 0.0
    %490 = vmatpush1.msra.mxu0 0.0
    %491 = vmatprep.subr.mxu0 0.0
    %492 = vmatpush1.msra.mxu0 0.0
    %493 = vmatprep.subr.mxu0 0.0
    %494 = vmatpush1.msra.mxu0 0.0
    %495 = vmatprep.mubr.f32.mxu0 0.0
    %496 = vmatmul.mubr.f32.gmra.mrb[0].mxu0 %v429
    %v497 = vpop.f32.mrb[0].mxu0
    %v498 = vadd.f32 %v423, %v497
    %v499 = vpop.f32.mrb[0].mxu0
    %500 = vdwg.mxu0
    %v501 = vadd.f32 %v498, %v158
    %v502 = vxor.u32 %v501, 2147483648
    %v503 = vmul.f32 %v502, 1.442695
    %v504 = vpow.pop %v503
    %v505 = vadd.f32 %v504, 1.0
    %v506 = vrcp.pop %v505
    %v507 = vmul.f32 1.0, %v506
    %v508 = vtanh.pop %v501
    %510 = vrot.lane.b32.xlu0 %v179, 32
    %v511 = vpop.permute.xlu0 %510
    %v513 = vmul.f32 %v507, %v511
    %515 = vrot.lane.b32.xlu0 %v508, 64
    %v516 = vpop.permute.xlu0 %515
    %v518 = vmul.f32 %v507, %v516
    %520 = vrot.lane.b32.xlu0 %v518, 32
    %v521 = vpop.permute.xlu0 %520
    %v523 = vadd.f32 %v513, %v521
    %v524 = vtanh.pop %v523
    %526 = vrot.lane.b32.xlu0 %v524, 64
    %v527 = vpop.permute.xlu0 %526
    %v529 = vmul.f32 %v507, %v527
    %531 = vrot.lane.b32.xlu0 %v529, 32
    %v532 = vpop.permute.xlu0 %531
    %v533 = vsel %vm180, %v532, 0
    %535 = vmatprep.subr.mxu0 0.0
    %536 = vmatpush1.msra.mxu0 %v160
    %537 = vmatprep.subr.mxu0 0.0
    %538 = vmatpush1.msra.mxu0 %v161
    %539 = vmatprep.subr.mxu0 0.0
    %540 = vmatpush1.msra.mxu0 %v162
    %541 = vmatprep.subr.mxu0 0.0
    %542 = vmatpush1.msra.mxu0 %v163
    %543 = vmatprep.subr.mxu0 0.0
    %544 = vmatpush1.msra.mxu0 0.0
    %545 = vmatprep.subr.mxu0 0.0
    %546 = vmatpush1.msra.mxu0 0.0
    %547 = vmatprep.subr.mxu0 0.0
    %548 = vmatpush1.msra.mxu0 0.0
    %549 = vmatprep.subr.mxu0 0.0
    %550 = vmatpush1.msra.mxu0 0.0
    %551 = vmatprep.subr.mxu0 0.0
    %552 = vmatpush1.msra.mxu0 0.0
    %553 = vmatprep.subr.mxu0 0.0
    %554 = vmatpush1.msra.mxu0 0.0
    %555 = vmatprep.subr.mxu0 0.0
    %556 = vmatpush1.msra.mxu0 0.0
    %557 = vmatprep.subr.mxu0 0.0
    %558 = vmatpush1.msra.mxu0 0.0
    %559 = vmatprep.subr.mxu0 0.0
    %560 = vmatpush1.msra.mxu0 0.0
    %561 = vmatprep.subr.mxu0 0.0
    %562 = vmatpush1.msra.mxu0 0.0
    %563 = vmatprep.subr.mxu0 0.0
    %564 = vmatpush1.msra.mxu0 0.0
    %565 = vmatprep.subr.mxu0 0.0
    %566 = vmatpush1.msra.mxu0 0.0
    %567 = vmatprep.subr.mxu0 0.0
    %568 = vmatpush1.msra.mxu0 0.0
    %569 = vmatprep.subr.mxu0 0.0
    %570 = vmatpush1.msra.mxu0 0.0
    %571 = vmatprep.subr.mxu0 0.0
    %572 = vmatpush1.msra.mxu0 0.0
    %573 = vmatprep.subr.mxu0 0.0
    %574 = vmatpush1.msra.mxu0 0.0
    %575 = vmatprep.subr.mxu0 0.0
    %576 = vmatpush1.msra.mxu0 0.0
    %577 = vmatprep.subr.mxu0 0.0
    %578 = vmatpush1.msra.mxu0 0.0
    %579 = vmatprep.subr.mxu0 0.0
    %580 = vmatpush1.msra.mxu0 0.0
    %581 = vmatprep.subr.mxu0 0.0
    %582 = vmatpush1.msra.mxu0 0.0
    %583 = vmatprep.subr.mxu0 0.0
    %584 = vmatpush1.msra.mxu0 0.0
    %585 = vmatprep.subr.mxu0 0.0
    %586 = vmatpush1.msra.mxu0 0.0
    %587 = vmatprep.subr.mxu0 0.0
    %588 = vmatpush1.msra.mxu0 0.0
    %589 = vmatprep.subr.mxu0 0.0
    %590 = vmatpush1.msra.mxu0 0.0
    %591 = vmatprep.subr.mxu0 0.0
    %592 = vmatpush1.msra.mxu0 0.0
    %593 = vmatprep.subr.mxu0 0.0
    %594 = vmatpush1.msra.mxu0 0.0
    %595 = vmatprep.subr.mxu0 0.0
    %596 = vmatpush1.msra.mxu0 0.0
    %597 = vmatprep.subr.mxu0 0.0
    %598 = vmatpush1.msra.mxu0 0.0
    %599 = vmatprep.mubr.f32.mxu0 0.0
    %600 = vmatmul.mubr.f32.gmra.mrb[0].mxu0 %v533
    %v601 = vpop.f32.mrb[0].mxu0
    %v602 = vadd.f32 %v169, %v601
    %v603 = vpop.f32.mrb[0].mxu0
    %604 = vdwg.mxu0
    %v605 = vsel %vm114, %v602, -inf
    %606 = vmax.xlane.f32.xlu0 %v605
    %v607 = vpop.xlane.xlu0 %606
    %v608 = vsub.f32 %v605, %v607
    %v609 = vmul.f32 %v608, 1.442695
    %v610 = vpow.pop %v609
    %611 = vadd.xlane.f32.xlu0 %v610
    %v612 = vpop.xlane.xlu0 %611
    %v613 = vlog2.pop %v612
    %v614 = vmul.f32 %v613, 0.6931472
    %v615 = vadd.f32 %v614, %v607
    %v616 = vand.u32 2147483647, %v602
    %v617 = vsub.f32 0.0, %v616
    %v618 = vmul.f32 %v617, 1.442695
    %v619 = vpow.pop %v618
    %v620 = vmin.f32 %v602, 0.0
    %v621 = vadd.f32 %v619, 1.0
    %v622 = vlog2.pop %v621
    %v623 = vmul.f32 %v622, 0.6931472
    %v624 = vsub.f32 %v620, %v623
    %v625 = vsub.f32 %v602, %v615
    %v626 = vsel %vm115, %v624, 0.0
    %v627 = vsel %vm114, %v625, %v626
    %vm628 = vcmp.ge.f32.partialorder %v602, %v607
    %vm629 = vmand %vm114, %vm628
    %v630 = vsel %vm629, %v113, 128
    %v631 = vand.u32 %v630, 65535
    %v632 = vshra.s32 %v630, 16
    %v633 = vcvt.s32.f32 %v631
    %v634 = vcvt.s32.f32 %v632
    %635 = vmin.xlane.f32.xlu0 %v634
    %v636 = vpop.xlane.xlu0 %635
    %vm637 = vcmp.eq.f32.partialorder %v634, %v636
    %v638 = vsel %vm637, %v633, inf
    %639 = vmin.xlane.f32.xlu0 %v638
    %v640 = vpop.xlane.xlu0 %639
    %v641 = vcvt.f32.s32 %v640
    %v642 = vcvt.f32.s32 %v636
    %v643 = vshll.u32 %v642, 16
    %v644 = vadd.s32 %v643, %v641
    %vm645 = vcmp.eq.s32.totalorder %v113, %v644
    %v646 = vsel %vm645, 1, 0
    %v647 = vcvt.s32.f32 %v646
    %v648 = vrcp.pop %v621
    %vm649 = vcmp.ge.f32.partialorder %v602, 0.0
    %v650 = vmul.f32 %v619, %v648
    %v651 = vsel %vm649, %v648, %v650
    %v652 = vsel %vm115, %v651, %v647
    %653 = vst [vmem:[#allocation13] sm:$0xff] %v627
    %654 = vmatprep.subr.mxu0 0.0
    %655 = vmatpush1.msra.mxu0 %v132
    %656 = vmatprep.subr.mxu0 0.0
    %657 = vmatpush1.msra.mxu0 %v133
    %658 = vmatprep.subr.mxu0 0.0
    %659 = vmatpush1.msra.mxu0 %v134
    %660 = vmatprep.subr.mxu0 0.0
    %661 = vmatpush1.msra.mxu0 %v135
    %662 = vmatprep.subr.mxu0 0.0
    %663 = vmatpush1.msra.mxu0 0.0
    %664 = vmatprep.subr.mxu0 0.0
    %665 = vmatpush1.msra.mxu0 0.0
    %666 = vmatprep.subr.mxu0 0.0
    %667 = vmatpush1.msra.mxu0 0.0
    %668 = vmatprep.subr.mxu0 0.0
    %669 = vmatpush1.msra.mxu0 0.0
    %670 = vmatprep.subr.mxu0 0.0
    %671 = vmatpush1.msra.mxu0 0.0
    %672 = vmatprep.subr.mxu0 0.0
    %673 = vmatpush1.msra.mxu0 0.0
    %674 = vmatprep.subr.mxu0 0.0
    %675 = vmatpush1.msra.mxu0 0.0
    %676 = vmatprep.subr.mxu0 0.0
    %677 = vmatpush1.msra.mxu0 0.0
    %678 = vmatprep.subr.mxu0 0.0
    %679 = vmatpush1.msra.mxu0 0.0
    %680 = vmatprep.subr.mxu0 0.0
    %681 = vmatpush1.msra.mxu0 0.0
    %682 = vmatprep.subr.mxu0 0.0
    %683 = vmatpush1.msra.mxu0 0.0
    %684 = vmatprep.subr.mxu0 0.0
    %685 = vmatpush1.msra.mxu0 0.0
    %686 = vmatprep.subr.mxu0 0.0
    %687 = vmatpush1.msra.mxu0 0.0
    %688 = vmatprep.subr.mxu0 0.0
    %689 = vmatpush1.msra.mxu0 0.0
    %690 = vmatprep.subr.mxu0 0.0
    %691 = vmatpush1.msra.mxu0 0.0
    %692 = vmatprep.subr.mxu0 0.0
    %693 = vmatpush1.msra.mxu0 0.0
    %694 = vmatprep.subr.mxu0 0.0
    %695 = vmatpush1.msra.mxu0 0.0
    %696 = vmatprep.subr.mxu0 0.0
    %697 = vmatpush1.msra.mxu0 0.0
    %698 = vmatprep.subr.mxu0 0.0
    %699 = vmatpush1.msra.mxu0 0.0
    %700 = vmatprep.subr.mxu0 0.0
    %701 = vmatpush1.msra.mxu0 0.0
    %702 = vmatprep.subr.mxu0 0.0
    %703 = vmatpush1.msra.mxu0 0.0
    %704 = vmatprep.subr.mxu0 0.0
    %705 = vmatpush1.msra.mxu0 0.0
    %706 = vmatprep.subr.mxu0 0.0
    %707 = vmatpush1.msra.mxu0 0.0
    %708 = vmatprep.subr.mxu0 0.0
    %709 = vmatpush1.msra.mxu0 0.0
    %710 = vmatprep.subr.mxu0 0.0
    %711 = vmatpush1.msra.mxu0 0.0
    %712 = vmatprep.subr.mxu0 0.0
    %713 = vmatpush1.msra.mxu0 0.0
    %714 = vmatprep.subr.mxu0 0.0
    %715 = vmatpush1.msra.mxu0 0.0
    %716 = vmatprep.subr.mxu0 0.0
    %717 = vmatpush1.msra.mxu0 0.0
    %718 = vmatprep.mubr.f32.mxu0 0.0
    %719 = vmatmul.mubr.f32.gmra.mrb[0].mxu0 %v429
    %v720 = vpop.f32.mrb[0].mxu0
    %v721 = vadd.f32 0.0, %v720
    %v722 = vpop.f32.mrb[0].mxu0
    %723 = vdwg.mxu0
    %724 = vmatprep.subr.mxu0 0.0
    %725 = vmatpush1.msra.mxu0 %v116
    %726 = vmatprep.subr.mxu0 0.0
    %727 = vmatpush1.msra.mxu0 %v117
    %728 = vmatprep.subr.mxu0 0.0
    %729 = vmatpush1.msra.mxu0 %v118
    %730 = vmatprep.subr.mxu0 0.0
    %731 = vmatpush1.msra.mxu0 %v119
    %732 = vmatprep.subr.mxu0 0.0
    %733 = vmatpush1.msra.mxu0 %v120
    %734 = vmatprep.subr.mxu0 0.0
    %735 = vmatpush1.msra.mxu0 %v121
    %736 = vmatprep.subr.mxu0 0.0
    %737 = vmatpush1.msra.mxu0 %v122
    %738 = vmatprep.subr.mxu0 0.0
    %739 = vmatpush1.msra.mxu0 %v123
    %740 = vmatprep.subr.mxu0 0.0
    %741 = vmatpush1.msra.mxu0 %v124
    %742 = vmatprep.subr.mxu0 0.0
    %743 = vmatpush1.msra.mxu0 %v125
    %744 = vmatprep.subr.mxu0 0.0
    %745 = vmatpush1.msra.mxu0 %v126
    %746 = vmatprep.subr.mxu0 0.0
    %747 = vmatpush1.msra.mxu0 %v127
    %748 = vmatprep.subr.mxu0 0.0
    %749 = vmatpush1.msra.mxu0 %v128
    %750 = vmatprep.subr.mxu0 0.0
    %751 = vmatpush1.msra.mxu0 %v129
    %752 = vmatprep.subr.mxu0 0.0
    %753 = vmatpush1.msra.mxu0 %v130
    %754 = vmatprep.subr.mxu0 0.0
    %755 = vmatpush1.msra.mxu0 %v131
    %756 = vmatprep.subr.mxu0 0.0
    %757 = vmatpush1.msra.mxu0 0.0
    %758 = vmatprep.subr.mxu0 0.0
    %759 = vmatpush1.msra.mxu0 0.0
    %760 = vmatprep.subr.mxu0 0.0
    %761 = vmatpush1.msra.mxu0 0.0
    %762 = vmatprep.subr.mxu0 0.0
    %763 = vmatpush1.msra.mxu0 0.0
    %764 = vmatprep.subr.mxu0 0.0
    %765 = vmatpush1.msra.mxu0 0.0
    %766 = vmatprep.subr.mxu0 0.0
    %767 = vmatpush1.msra.mxu0 0.0
    %768 = vmatprep.subr.mxu0 0.0
    %769 = vmatpush1.msra.mxu0 0.0
    %770 = vmatprep.subr.mxu0 0.0
    %771 = vmatpush1.msra.mxu0 0.0
    %772 = vmatprep.subr.mxu0 0.0
    %773 = vmatpush1.msra.mxu0 0.0
    %774 = vmatprep.subr.mxu0 0.0
    %775 = vmatpush1.msra.mxu0 0.0
    %776 = vmatprep.subr.mxu0 0.0
    %777 = vmatpush1.msra.mxu0 0.0
    %778 = vmatprep.subr.mxu0 0.0
    %779 = vmatpush1.msra.mxu0 0.0
    %780 = vmatprep.subr.mxu0 0.0
    %781 = vmatpush1.msra.mxu0 0.0
    %782 = vmatprep.subr.mxu0 0.0
    %783 = vmatpush1.msra.mxu0 0.0
    %784 = vmatprep.subr.mxu0 0.0
    %785 = vmatpush1.msra.mxu0 0.0
    %786 = vmatprep.subr.mxu0 0.0
    %787 = vmatpush1.msra.mxu0 0.0
    %788 = vmatprep.mubr.f32.mxu0 0.0
    %789 = vmatmul.mubr.f32.gmra.mrb[0].mxu0 %v652
    %v790 = vpop.f32.mrb[0].mxu0
    %v791 = vadd.f32 %v721, %v790
    %v792 = vpop.f32.mrb[0].mxu0
    %793 = vdwg.mxu0
    %v794 = vadd.f32 %v791, %v150
    %v795 = vxor.u32 %v794, 2147483648
    %v796 = vmul.f32 %v795, 1.442695
    %v797 = vpow.pop %v796
    %v798 = vadd.f32 %v797, 1.0
    %v799 = vrcp.pop %v798
    %v800 = vmul.f32 1.0, %v799
    %v801 = vtanh.pop %v794
    %v802 = vmul.f32 %v800, %v346
    %804 = vrot.lane.b32.xlu0 %v801, 64
    %v805 = vpop.permute.xlu0 %804
    %v807 = vmul.f32 %v800, %v805
    %809 = vrot.lane.b32.xlu0 %v807, 32
    %v810 = vpop.permute.xlu0 %809
    %v812 = vadd.f32 %v802, %v810
    %v813 = vtanh.pop %v812
    %815 = vrot.lane.b32.xlu0 %v813, 64
    %v816 = vpop.permute.xlu0 %815
    %v818 = vmul.f32 %v800, %v816
    %819 = vmatprep.subr.mxu0 0.0
    %820 = vmatpush1.msra.mxu0 %v137
    %821 = vmatprep.subr.mxu0 0.0
    %822 = vmatpush1.msra.mxu0 %v138
    %823 = vmatprep.subr.mxu0 0.0
    %824 = vmatpush1.msra.mxu0 %v139
    %825 = vmatprep.subr.mxu0 0.0
    %826 = vmatpush1.msra.mxu0 %v140
    %827 = vmatprep.subr.mxu0 0.0
    %828 = vmatpush1.msra.mxu0 0.0
    %829 = vmatprep.subr.mxu0 0.0
    %830 = vmatpush1.msra.mxu0 0.0
    %831 = vmatprep.subr.mxu0 0.0
    %832 = vmatpush1.msra.mxu0 0.0
    %833 = vmatprep.subr.mxu0 0.0
    %834 = vmatpush1.msra.mxu0 0.0
    %835 = vmatprep.subr.mxu0 0.0
    %836 = vmatpush1.msra.mxu0 0.0
    %837 = vmatprep.subr.mxu0 0.0
    %838 = vmatpush1.msra.mxu0 0.0
    %839 = vmatprep.subr.mxu0 0.0
    %840 = vmatpush1.msra.mxu0 0.0
    %841 = vmatprep.subr.mxu0 0.0
    %842 = vmatpush1.msra.mxu0 0.0
    %843 = vmatprep.subr.mxu0 0.0
    %844 = vmatpush1.msra.mxu0 0.0
    %845 = vmatprep.subr.mxu0 0.0
    %846 = vmatpush1.msra.mxu0 0.0
    %847 = vmatprep.subr.mxu0 0.0
    %848 = vmatpush1.msra.mxu0 0.0
    %849 = vmatprep.subr.mxu0 0.0
    %850 = vmatpush1.msra.mxu0 0.0
    %851 = vmatprep.subr.mxu0 0.0
    %852 = vmatpush1.msra.mxu0 0.0
    %853 = vmatprep.subr.mxu0 0.0
    %854 = vmatpush1.msra.mxu0 0.0
    %855 = vmatprep.subr.mxu0 0.0
    %856 = vmatpush1.msra.mxu0 0.0
    %857 = vmatprep.subr.mxu0 0.0
    %858 = vmatpush1.msra.mxu0 0.0
    %859 = vmatprep.subr.mxu0 0.0
    %860 = vmatpush1.msra.mxu0 0.0
    %861 = vmatprep.subr.mxu0 0.0
    %862 = vmatpush1.msra.mxu0 0.0
    %863 = vmatprep.subr.mxu0 0.0
    %864 = vmatpush1.msra.mxu0 0.0
    %865 = vmatprep.subr.mxu0 0.0
    %866 = vmatpush1.msra.mxu0 0.0
    %867 = vmatprep.subr.mxu0 0.0
    %868 = vmatpush1.msra.mxu0 0.0
    %869 = vmatprep.subr.mxu0 0.0
    %870 = vmatpush1.msra.mxu0 0.0
    %871 = vmatprep.subr.mxu0 0.0
    %872 = vmatpush1.msra.mxu0 0.0
    %873 = vmatprep.subr.mxu0 0.0
    %874 = vmatpush1.msra.mxu0 0.0
    %875 = vmatprep.subr.mxu0 0.0
    %876 = vmatpush1.msra.mxu0 0.0
    %877 = vmatprep.subr.mxu0 0.0
    %878 = vmatpush1.msra.mxu0 0.0
    %879 = vmatprep.subr.mxu0 0.0
    %880 = vmatpush1.msra.mxu0 0.0
    %881 = vmatprep.subr.mxu0 0.0
    %882 = vmatpush1.msra.mxu0 0.0
    %883 = vmatprep.mubr.f32.mxu0 0.0
    %884 = vmatmul.mubr.f32.gmra.mrb[0].mxu0 %v533
    %v885 = vpop.f32.mrb[0].mxu0
    %v886 = vadd.f32 0.0, %v885
    %v887 = vpop.f32.mrb[0].mxu0
    %888 = vdwg.mxu0
    %890 = vrot.lane.b32.xlu0 %v818, 32
    %v891 = vpop.permute.xlu0 %890
    %v892 = vsel %vm180, %v891, 0
    %894 = vmatprep.subr.mxu0 0.0
    %895 = vmatpush1.msra.mxu0 %v141
    %896 = vmatprep.subr.mxu0 0.0
    %897 = vmatpush1.msra.mxu0 %v142
    %898 = vmatprep.subr.mxu0 0.0
    %899 = vmatpush1.msra.mxu0 %v143
    %900 = vmatprep.subr.mxu0 0.0
    %901 = vmatpush1.msra.mxu0 %v144
    %902 = vmatprep.subr.mxu0 0.0
    %903 = vmatpush1.msra.mxu0 0.0
    %904 = vmatprep.subr.mxu0 0.0
    %905 = vmatpush1.msra.mxu0 0.0
    %906 = vmatprep.subr.mxu0 0.0
    %907 = vmatpush1.msra.mxu0 0.0
    %908 = vmatprep.subr.mxu0 0.0
    %909 = vmatpush1.msra.mxu0 0.0
    %910 = vmatprep.subr.mxu0 0.0
    %911 = vmatpush1.msra.mxu0 0.0
    %912 = vmatprep.subr.mxu0 0.0
    %913 = vmatpush1.msra.mxu0 0.0
    %914 = vmatprep.subr.mxu0 0.0
    %915 = vmatpush1.msra.mxu0 0.0
    %916 = vmatprep.subr.mxu0 0.0
    %917 = vmatpush1.msra.mxu0 0.0
    %918 = vmatprep.subr.mxu0 0.0
    %919 = vmatpush1.msra.mxu0 0.0
    %920 = vmatprep.subr.mxu0 0.0
    %921 = vmatpush1.msra.mxu0 0.0
    %922 = vmatprep.subr.mxu0 0.0
    %923 = vmatpush1.msra.mxu0 0.0
    %924 = vmatprep.subr.mxu0 0.0
    %925 = vmatpush1.msra.mxu0 0.0
    %926 = vmatprep.subr.mxu0 0.0
    %927 = vmatpush1.msra.mxu0 0.0
    %928 = vmatprep.subr.mxu0 0.0
    %929 = vmatpush1.msra.mxu0 0.0
    %930 = vmatprep.subr.mxu0 0.0
    %931 = vmatpush1.msra.mxu0 0.0
    %932 = vmatprep.subr.mxu0 0.0
    %933 = vmatpush1.msra.mxu0 0.0
    %934 = vmatprep.subr.mxu0 0.0
    %935 = vmatpush1.msra.mxu0 0.0
    %936 = vmatprep.subr.mxu0 0.0
    %937 = vmatpush1.msra.mxu0 0.0
    %938 = vmatprep.subr.mxu0 0.0
    %939 = vmatpush1.msra.mxu0 0.0
    %940 = vmatprep.subr.mxu0 0.0
    %941 = vmatpush1.msra.mxu0 0.0
    %942 = vmatprep.subr.mxu0 0.0
    %943 = vmatpush1.msra.mxu0 0.0
    %944 = vmatprep.subr.mxu0 0.0
    %945 = vmatpush1.msra.mxu0 0.0
    %946 = vmatprep.subr.mxu0 0.0
    %947 = vmatpush1.msra.mxu0 0.0
    %948 = vmatprep.subr.mxu0 0.0
    %949 = vmatpush1.msra.mxu0 0.0
    %950 = vmatprep.subr.mxu0 0.0
    %951 = vmatpush1.msra.mxu0 0.0
    %952 = vmatprep.subr.mxu0 0.0
    %953 = vmatpush1.msra.mxu0 0.0
    %954 = vmatprep.subr.mxu0 0.0
    %955 = vmatpush1.msra.mxu0 0.0
    %956 = vmatprep.subr.mxu0 0.0
    %957 = vmatpush1.msra.mxu0 0.0
    %958 = vmatprep.mubr.f32.mxu0 0.0
    %959 = vmatmul.mubr.f32.gmra.mrb[0].mxu0 %v892
    %v960 = vpop.f32.mrb[0].mxu0
    %v961 = vadd.f32 %v886, %v960
    %v962 = vpop.f32.mrb[0].mxu0
    %963 = vdwg.mxu0
    %v964 = vadd.f32 %v961, %v158
    %v965 = vxor.u32 %v964, 2147483648
    %v966 = vmul.f32 %v965, 1.442695
    %v967 = vpow.pop %v966
    %v968 = vadd.f32 %v967, 1.0
    %v969 = vrcp.pop %v968
    %v970 = vmul.f32 1.0, %v969
    %v971 = vtanh.pop %v964
    %v972 = vmul.f32 %v970, %v523
    %974 = vrot.lane.b32.xlu0 %v971, 64
    %v975 = vpop.permute.xlu0 %974
    %v977 = vmul.f32 %v970, %v975
    %979 = vrot.lane.b32.xlu0 %v977, 32
    %v980 = vpop.permute.xlu0 %979
    %v982 = vadd.f32 %v972, %v980
    %v983 = vtanh.pop %v982
    %985 = vrot.lane.b32.xlu0 %v983, 64
    %v986 = vpop.permute.xlu0 %985
    %v988 = vmul.f32 %v970, %v986
    %990 = vrot.lane.b32.xlu0 %v988, 32
    %v991 = vpop.permute.xlu0 %990
    %v992 = vsel %vm180, %v991, 0
    %994 = vmatprep.subr.mxu0 0.0
    %995 = vmatpush1.msra.mxu0 %v160
    %996 = vmatprep.subr.mxu0 0.0
    %997 = vmatpush1.msra.mxu0 %v161
    %998 = vmatprep.subr.mxu0 0.0
    %999 = vmatpush1.msra.mxu0 %v162
    %1000 = vmatprep.subr.mxu0 0.0
    %1001 = vmatpush1.msra.mxu0 %v163
    %1002 = vmatprep.subr.mxu0 0.0
    %1003 = vmatpush1.msra.mxu0 0.0
    %1004 = vmatprep.subr.mxu0 0.0
    %1005 = vmatpush1.msra.mxu0 0.0
    %1006 = vmatprep.subr.mxu0 0.0
    %1007 = vmatpush1.msra.mxu0 0.0
    %1008 = vmatprep.subr.mxu0 0.0
    %1009 = vmatpush1.msra.mxu0 0.0
    %1010 = vmatprep.subr.mxu0 0.0
    %1011 = vmatpush1.msra.mxu0 0.0
    %1012 = vmatprep.subr.mxu0 0.0
    %1013 = vmatpush1.msra.mxu0 0.0
    %1014 = vmatprep.subr.mxu0 0.0
    %1015 = vmatpush1.msra.mxu0 0.0
    %1016 = vmatprep.subr.mxu0 0.0
    %1017 = vmatpush1.msra.mxu0 0.0
    %1018 = vmatprep.subr.mxu0 0.0
    %1019 = vmatpush1.msra.mxu0 0.0
    %1020 = vmatprep.subr.mxu0 0.0
    %1021 = vmatpush1.msra.mxu0 0.0
    %1022 = vmatprep.subr.mxu0 0.0
    %1023 = vmatpush1.msra.mxu0 0.0
    %1024 = vmatprep.subr.mxu0 0.0
    %1025 = vmatpush1.msra.mxu0 0.0
    %1026 = vmatprep.subr.mxu0 0.0
    %1027 = vmatpush1.msra.mxu0 0.0
    %1028 = vmatprep.subr.mxu0 0.0
    %1029 = vmatpush1.msra.mxu0 0.0
    %1030 = vmatprep.subr.mxu0 0.0
    %1031 = vmatpush1.msra.mxu0 0.0
    %1032 = vmatprep.subr.mxu0 0.0
    %1033 = vmatpush1.msra.mxu0 0.0
    %1034 = vmatprep.subr.mxu0 0.0
    %1035 = vmatpush1.msra.mxu0 0.0
    %1036 = vmatprep.subr.mxu0 0.0
    %1037 = vmatpush1.msra.mxu0 0.0
    %1038 = vmatprep.subr.mxu0 0.0
    %1039 = vmatpush1.msra.mxu0 0.0
    %1040 = vmatprep.subr.mxu0 0.0
    %1041 = vmatpush1.msra.mxu0 0.0
    %1042 = vmatprep.subr.mxu0 0.0
    %1043 = vmatpush1.msra.mxu0 0.0
    %1044 = vmatprep.subr.mxu0 0.0
    %1045 = vmatpush1.msra.mxu0 0.0
    %1046 = vmatprep.subr.mxu0 0.0
    %1047 = vmatpush1.msra.mxu0 0.0
    %1048 = vmatprep.subr.mxu0 0.0
    %1049 = vmatpush1.msra.mxu0 0.0
    %1050 = vmatprep.subr.mxu0 0.0
    %1051 = vmatpush1.msra.mxu0 0.0
    %1052 = vmatprep.subr.mxu0 0.0
    %1053 = vmatpush1.msra.mxu0 0.0
    %1054 = vmatprep.subr.mxu0 0.0
    %1055 = vmatpush1.msra.mxu0 0.0
    %1056 = vmatprep.subr.mxu0 0.0
    %1057 = vmatpush1.msra.mxu0 0.0
    %1058 = vmatprep.mubr.f32.mxu0 0.0
    %1059 = vmatmul.mubr.f32.gmra.mrb[0].mxu0 %v992
    %v1060 = vpop.f32.mrb[0].mxu0
    %v1061 = vadd.f32 %v169, %v1060
    %v1062 = vpop.f32.mrb[0].mxu0
    %1063 = vdwg.mxu0
    %v1064 = vsel %vm114, %v1061, -inf
    %1065 = vmax.xlane.f32.xlu0 %v1064
    %v1066 = vpop.xlane.xlu0 %1065
    %v1067 = vsub.f32 %v1064, %v1066
    %v1068 = vmul.f32 %v1067, 1.442695
    %v1069 = vpow.pop %v1068
    %1070 = vadd.xlane.f32.xlu0 %v1069
    %v1071 = vpop.xlane.xlu0 %1070
    %v1072 = vlog2.pop %v1071
    %v1073 = vmul.f32 %v1072, 0.6931472
    %v1074 = vadd.f32 %v1073, %v1066
    %v1075 = vand.u32 2147483647, %v1061
    %v1076 = vsub.f32 0.0, %v1075
    %v1077 = vmul.f32 %v1076, 1.442695
    %v1078 = vpow.pop %v1077
    %v1079 = vmin.f32 %v1061, 0.0
    %v1080 = vadd.f32 %v1078, 1.0
    %v1081 = vlog2.pop %v1080
    %v1082 = vmul.f32 %v1081, 0.6931472
    %v1083 = vsub.f32 %v1079, %v1082
    %v1084 = vsub.f32 %v1061, %v1074
    %v1085 = vsel %vm115, %v1083, 0.0
    %v1086 = vsel %vm114, %v1084, %v1085
    %vm1087 = vcmp.ge.f32.partialorder %v1061, %v1066
    %vm1088 = vmand %vm114, %vm1087
    %v1089 = vsel %vm1088, %v113, 128
    %v1090 = vand.u32 %v1089, 65535
    %v1091 = vshra.s32 %v1089, 16
    %v1092 = vcvt.s32.f32 %v1090
    %v1093 = vcvt.s32.f32 %v1091
    %1094 = vmin.xlane.f32.xlu0 %v1093
    %v1095 = vpop.xlane.xlu0 %1094
    %vm1096 = vcmp.eq.f32.partialorder %v1093, %v1095
    %v1097 = vsel %vm1096, %v1092, inf
    %1098 = vmin.xlane.f32.xlu0 %v1097
    %v1099 = vpop.xlane.xlu0 %1098
    %v1100 = vcvt.f32.s32 %v1099
    %v1101 = vcvt.f32.s32 %v1095
    %v1102 = vshll.u32 %v1101, 16
    %v1103 = vadd.s32 %v1102, %v1100
    %vm1104 = vcmp.eq.s32.totalorder %v113, %v1103
    %v1105 = vsel %vm1104, 1, 0
    %v1106 = vcvt.s32.f32 %v1105
    %v1107 = vrcp.pop %v1080
    %vm1108 = vcmp.ge.f32.partialorder %v1061, 0.0
    %v1109 = vmul.f32 %v1078, %v1107
    %v1110 = vsel %vm1108, %v1107, %v1109
    %v1111 = vsel %vm115, %v1110, %v1106
    %s1112 = scalar_lea.vmem [#allocation13], 8
    %1113 = vst [vmem:[%s1112] sm:$0xff] %v1086
    %1114 = vmatprep.subr.mxu0 0.0
    %1115 = vmatpush1.msra.mxu0 %v132
    %1116 = vmatprep.subr.mxu0 0.0
    %1117 = vmatpush1.msra.mxu0 %v133
    %1118 = vmatprep.subr.mxu0 0.0
    %1119 = vmatpush1.msra.mxu0 %v134
    %1120 = vmatprep.subr.mxu0 0.0
    %1121 = vmatpush1.msra.mxu0 %v135
    %1122 = vmatprep.subr.mxu0 0.0
    %1123 = vmatpush1.msra.mxu0 0.0
    %1124 = vmatprep.subr.mxu0 0.0
    %1125 = vmatpush1.msra.mxu0 0.0
    %1126 = vmatprep.subr.mxu0 0.0
    %1127 = vmatpush1.msra.mxu0 0.0
    %1128 = vmatprep.subr.mxu0 0.0
    %1129 = vmatpush1.msra.mxu0 0.0
    %1130 = vmatprep.subr.mxu0 0.0
    %1131 = vmatpush1.msra.mxu0 0.0
    %1132 = vmatprep.subr.mxu0 0.0
    %1133 = vmatpush1.msra.mxu0 0.0
    %1134 = vmatprep.subr.mxu0 0.0
    %1135 = vmatpush1.msra.mxu0 0.0
    %1136 = vmatprep.subr.mxu0 0.0
    %1137 = vmatpush1.msra.mxu0 0.0
    %1138 = vmatprep.subr.mxu0 0.0
    %1139 = vmatpush1.msra.mxu0 0.0
    %1140 = vmatprep.subr.mxu0 0.0
    %1141 = vmatpush1.msra.mxu0 0.0
    %1142 = vmatprep.subr.mxu0 0.0
    %1143 = vmatpush1.msra.mxu0 0.0
    %1144 = vmatprep.subr.mxu0 0.0
    %1145 = vmatpush1.msra.mxu0 0.0
    %1146 = vmatprep.subr.mxu0 0.0
    %1147 = vmatpush1.msra.mxu0 0.0
    %1148 = vmatprep.subr.mxu0 0.0
    %1149 = vmatpush1.msra.mxu0 0.0
    %1150 = vmatprep.subr.mxu0 0.0
    %1151 = vmatpush1.msra.mxu0 0.0
    %1152 = vmatprep.subr.mxu0 0.0
    %1153 = vmatpush1.msra.mxu0 0.0
    %1154 = vmatprep.subr.mxu0 0.0
    %1155 = vmatpush1.msra.mxu0 0.0
    %1156 = vmatprep.subr.mxu0 0.0
    %1157 = vmatpush1.msra.mxu0 0.0
    %1158 = vmatprep.subr.mxu0 0.0
    %1159 = vmatpush1.msra.mxu0 0.0
    %1160 = vmatprep.subr.mxu0 0.0
    %1161 = vmatpush1.msra.mxu0 0.0
    %1162 = vmatprep.subr.mxu0 0.0
    %1163 = vmatpush1.msra.mxu0 0.0
    %1164 = vmatprep.subr.mxu0 0.0
    %1165 = vmatpush1.msra.mxu0 0.0
    %1166 = vmatprep.subr.mxu0 0.0
    %1167 = vmatpush1.msra.mxu0 0.0
    %1168 = vmatprep.subr.mxu0 0.0
    %1169 = vmatpush1.msra.mxu0 0.0
    %1170 = vmatprep.subr.mxu0 0.0
    %1171 = vmatpush1.msra.mxu0 0.0
    %1172 = vmatprep.subr.mxu0 0.0
    %1173 = vmatpush1.msra.mxu0 0.0
    %1174 = vmatprep.subr.mxu0 0.0
    %1175 = vmatpush1.msra.mxu0 0.0
    %1176 = vmatprep.subr.mxu0 0.0
    %1177 = vmatpush1.msra.mxu0 0.0
    %1178 = vmatprep.mubr.f32.mxu0 0.0
    %1179 = vmatmul.mubr.f32.gmra.mrb[0].mxu0 %v892
    %v1180 = vpop.f32.mrb[0].mxu0
    %v1181 = vadd.f32 0.0, %v1180
    %v1182 = vpop.f32.mrb[0].mxu0
    %1183 = vdwg.mxu0
    %1184 = vmatprep.subr.mxu0 0.0
    %1185 = vmatpush1.msra.mxu0 %v116
    %1186 = vmatprep.subr.mxu0 0.0
    %1187 = vmatpush1.msra.mxu0 %v117
    %1188 = vmatprep.subr.mxu0 0.0
    %1189 = vmatpush1.msra.mxu0 %v118
    %1190 = vmatprep.subr.mxu0 0.0
    %1191 = vmatpush1.msra.mxu0 %v119
    %1192 = vmatprep.subr.mxu0 0.0
    %1193 = vmatpush1.msra.mxu0 %v120
    %1194 = vmatprep.subr.mxu0 0.0
    %1195 = vmatpush1.msra.mxu0 %v121
    %1196 = vmatprep.subr.mxu0 0.0
    %1197 = vmatpush1.msra.mxu0 %v122
    %1198 = vmatprep.subr.mxu0 0.0
    %1199 = vmatpush1.msra.mxu0 %v123
    %1200 = vmatprep.subr.mxu0 0.0
    %1201 = vmatpush1.msra.mxu0 %v124
    %1202 = vmatprep.subr.mxu0 0.0
    %1203 = vmatpush1.msra.mxu0 %v125
    %1204 = vmatprep.subr.mxu0 0.0
    %1205 = vmatpush1.msra.mxu0 %v126
    %1206 = vmatprep.subr.mxu0 0.0
    %1207 = vmatpush1.msra.mxu0 %v127
    %1208 = vmatprep.subr.mxu0 0.0
    %1209 = vmatpush1.msra.mxu0 %v128
    %1210 = vmatprep.subr.mxu0 0.0
    %1211 = vmatpush1.msra.mxu0 %v129
    %1212 = vmatprep.subr.mxu0 0.0
    %1213 = vmatpush1.msra.mxu0 %v130
    %1214 = vmatprep.subr.mxu0 0.0
    %1215 = vmatpush1.msra.mxu0 %v131
    %1216 = vmatprep.subr.mxu0 0.0
    %1217 = vmatpush1.msra.mxu0 0.0
    %1218 = vmatprep.subr.mxu0 0.0
    %1219 = vmatpush1.msra.mxu0 0.0
    %1220 = vmatprep.subr.mxu0 0.0
    %1221 = vmatpush1.msra.mxu0 0.0
    %1222 = vmatprep.subr.mxu0 0.0
    %1223 = vmatpush1.msra.mxu0 0.0
    %1224 = vmatprep.subr.mxu0 0.0
    %1225 = vmatpush1.msra.mxu0 0.0
    %1226 = vmatprep.subr.mxu0 0.0
    %1227 = vmatpush1.msra.mxu0 0.0
    %1228 = vmatprep.subr.mxu0 0.0
    %1229 = vmatpush1.msra.mxu0 0.0
    %1230 = vmatprep.subr.mxu0 0.0
    %1231 = vmatpush1.msra.mxu0 0.0
    %1232 = vmatprep.subr.mxu0 0.0
    %1233 = vmatpush1.msra.mxu0 0.0
    %1234 = vmatprep.subr.mxu0 0.0
    %1235 = vmatpush1.msra.mxu0 0.0
    %1236 = vmatprep.subr.mxu0 0.0
    %1237 = vmatpush1.msra.mxu0 0.0
    %1238 = vmatprep.subr.mxu0 0.0
    %1239 = vmatpush1.msra.mxu0 0.0
    %1240 = vmatprep.subr.mxu0 0.0
    %1241 = vmatpush1.msra.mxu0 0.0
    %1242 = vmatprep.subr.mxu0 0.0
    %1243 = vmatpush1.msra.mxu0 0.0
    %1244 = vmatprep.subr.mxu0 0.0
    %1245 = vmatpush1.msra.mxu0 0.0
    %1246 = vmatprep.subr.mxu0 0.0
    %1247 = vmatpush1.msra.mxu0 0.0
    %1248 = vmatprep.mubr.f32.mxu0 0.0
    %1249 = vmatmul.mubr.f32.gmra.mrb[0].mxu0 %v1111
    %v1250 = vpop.f32.mrb[0].mxu0
    %v1251 = vadd.f32 %v1181, %v1250
    %v1252 = vpop.f32.mrb[0].mxu0
    %1253 = vdwg.mxu0
    %v1254 = vadd.f32 %v1251, %v150
    %v1255 = vxor.u32 %v1254, 2147483648
    %v1256 = vmul.f32 %v1255, 1.442695
    %v1257 = vpow.pop %v1256
    %v1258 = vadd.f32 %v1257, 1.0
    %v1259 = vrcp.pop %v1258
    %v1260 = vmul.f32 1.0, %v1259
    %v1261 = vtanh.pop %v1254
    %v1262 = vmul.f32 %v1260, %v812
    %1264 = vrot.lane.b32.xlu0 %v1261, 64
    %v1265 = vpop.permute.xlu0 %1264
    %v1267 = vmul.f32 %v1260, %v1265
    %1269 = vrot.lane.b32.xlu0 %v1267, 32
    %v1270 = vpop.permute.xlu0 %1269
    %v1272 = vadd.f32 %v1262, %v1270
    %v1273 = vtanh.pop %v1272
    %1275 = vrot.lane.b32.xlu0 %v1273, 64
    %v1276 = vpop.permute.xlu0 %1275
    %v1278 = vmul.f32 %v1260, %v1276
    %1279 = vmatprep.subr.mxu0 0.0
    %1280 = vmatpush1.msra.mxu0 %v137
    %1281 = vmatprep.subr.mxu0 0.0
    %1282 = vmatpush1.msra.mxu0 %v138
    %1283 = vmatprep.subr.mxu0 0.0
    %1284 = vmatpush1.msra.mxu0 %v139
    %1285 = vmatprep.subr.mxu0 0.0
    %1286 = vmatpush1.msra.mxu0 %v140
    %1287 = vmatprep.subr.mxu0 0.0
    %1288 = vmatpush1.msra.mxu0 0.0
    %1289 = vmatprep.subr.mxu0 0.0
    %1290 = vmatpush1.msra.mxu0 0.0
    %1291 = vmatprep.subr.mxu0 0.0
    %1292 = vmatpush1.msra.mxu0 0.0
    %1293 = vmatprep.subr.mxu0 0.0
    %1294 = vmatpush1.msra.mxu0 0.0
    %1295 = vmatprep.subr.mxu0 0.0
    %1296 = vmatpush1.msra.mxu0 0.0
    %1297 = vmatprep.subr.mxu0 0.0
    %1298 = vmatpush1.msra.mxu0 0.0
    %1299 = vmatprep.subr.mxu0 0.0
    %1300 = vmatpush1.msra.mxu0 0.0
    %1301 = vmatprep.subr.mxu0 0.0
    %1302 = vmatpush1.msra.mxu0 0.0
    %1303 = vmatprep.subr.mxu0 0.0
    %1304 = vmatpush1.msra.mxu0 0.0
    %1305 = vmatprep.subr.mxu0 0.0
    %1306 = vmatpush1.msra.mxu0 0.0
    %1307 = vmatprep.subr.mxu0 0.0
    %1308 = vmatpush1.msra.mxu0 0.0
    %1309 = vmatprep.subr.mxu0 0.0
    %1310 = vmatpush1.msra.mxu0 0.0
    %1311 = vmatprep.subr.mxu0 0.0
    %1312 = vmatpush1.msra.mxu0 0.0
    %1313 = vmatprep.subr.mxu0 0.0
    %1314 = vmatpush1.msra.mxu0 0.0
    %1315 = vmatprep.subr.mxu0 0.0
    %1316 = vmatpush1.msra.mxu0 0.0
    %1317 = vmatprep.subr.mxu0 0.0
    %1318 = vmatpush1.msra.mxu0 0.0
    %1319 = vmatprep.subr.mxu0 0.0
    %1320 = vmatpush1.msra.mxu0 0.0
    %1321 = vmatprep.subr.mxu0 0.0
    %1322 = vmatpush1.msra.mxu0 0.0
    %1323 = vmatprep.subr.mxu0 0.0
    %1324 = vmatpush1.msra.mxu0 0.0
    %1325 = vmatprep.subr.mxu0 0.0
    %1326 = vmatpush1.msra.mxu0 0.0
    %1327 = vmatprep.subr.mxu0 0.0
    %1328 = vmatpush1.msra.mxu0 0.0
    %1329 = vmatprep.subr.mxu0 0.0
    %1330 = vmatpush1.msra.mxu0 0.0
    %1331 = vmatprep.subr.mxu0 0.0
    %1332 = vmatpush1.msra.mxu0 0.0
    %1333 = vmatprep.subr.mxu0 0.0
    %1334 = vmatpush1.msra.mxu0 0.0
    %1335 = vmatprep.subr.mxu0 0.0
    %1336 = vmatpush1.msra.mxu0 0.0
    %1337 = vmatprep.subr.mxu0 0.0
    %1338 = vmatpush1.msra.mxu0 0.0
    %1339 = vmatprep.subr.mxu0 0.0
    %1340 = vmatpush1.msra.mxu0 0.0
    %1341 = vmatprep.subr.mxu0 0.0
    %1342 = vmatpush1.msra.mxu0 0.0
    %1343 = vmatprep.mubr.f32.mxu0 0.0
    %1344 = vmatmul.mubr.f32.gmra.mrb[0].mxu0 %v992
    %v1345 = vpop.f32.mrb[0].mxu0
    %v1346 = vadd.f32 0.0, %v1345
    %v1347 = vpop.f32.mrb[0].mxu0
    %1348 = vdwg.mxu0
    %1350 = vrot.lane.b32.xlu0 %v1278, 32
    %v1351 = vpop.permute.xlu0 %1350
    %v1352 = vsel %vm180, %v1351, 0
    %1354 = vmatprep.subr.mxu0 0.0
    %1355 = vmatpush1.msra.mxu0 %v141
    %1356 = vmatprep.subr.mxu0 0.0
    %1357 = vmatpush1.msra.mxu0 %v142
    %1358 = vmatprep.subr.mxu0 0.0
    %1359 = vmatpush1.msra.mxu0 %v143
    %1360 = vmatprep.subr.mxu0 0.0
    %1361 = vmatpush1.msra.mxu0 %v144
    %1362 = vmatprep.subr.mxu0 0.0
    %1363 = vmatpush1.msra.mxu0 0.0
    %1364 = vmatprep.subr.mxu0 0.0
    %1365 = vmatpush1.msra.mxu0 0.0
    %1366 = vmatprep.subr.mxu0 0.0
    %1367 = vmatpush1.msra.mxu0 0.0
    %1368 = vmatprep.subr.mxu0 0.0
    %1369 = vmatpush1.msra.mxu0 0.0
    %1370 = vmatprep.subr.mxu0 0.0
    %1371 = vmatpush1.msra.mxu0 0.0
    %1372 = vmatprep.subr.mxu0 0.0
    %1373 = vmatpush1.msra.mxu0 0.0
    %1374 = vmatprep.subr.mxu0 0.0
    %1375 = vmatpush1.msra.mxu0 0.0
    %1376 = vmatprep.subr.mxu0 0.0
    %1377 = vmatpush1.msra.mxu0 0.0
    %1378 = vmatprep.subr.mxu0 0.0
    %1379 = vmatpush1.msra.mxu0 0.0
    %1380 = vmatprep.subr.mxu0 0.0
    %1381 = vmatpush1.msra.mxu0 0.0
    %1382 = vmatprep.subr.mxu0 0.0
    %1383 = vmatpush1.msra.mxu0 0.0
    %1384 = vmatprep.subr.mxu0 0.0
    %1385 = vmatpush1.msra.mxu0 0.0
    %1386 = vmatprep.subr.mxu0 0.0
    %1387 = vmatpush1.msra.mxu0 0.0
    %1388 = vmatprep.subr.mxu0 0.0
    %1389 = vmatpush1.msra.mxu0 0.0
    %1390 = vmatprep.subr.mxu0 0.0
    %1391 = vmatpush1.msra.mxu0 0.0
    %1392 = vmatprep.subr.mxu0 0.0
    %1393 = vmatpush1.msra.mxu0 0.0
    %1394 = vmatprep.subr.mxu0 0.0
    %1395 = vmatpush1.msra.mxu0 0.0
    %1396 = vmatprep.subr.mxu0 0.0
    %1397 = vmatpush1.msra.mxu0 0.0
    %1398 = vmatprep.subr.mxu0 0.0
    %1399 = vmatpush1.msra.mxu0 0.0
    %1400 = vmatprep.subr.mxu0 0.0
    %1401 = vmatpush1.msra.mxu0 0.0
    %1402 = vmatprep.subr.mxu0 0.0
    %1403 = vmatpush1.msra.mxu0 0.0
    %1404 = vmatprep.subr.mxu0 0.0
    %1405 = vmatpush1.msra.mxu0 0.0
    %1406 = vmatprep.subr.mxu0 0.0
    %1407 = vmatpush1.msra.mxu0 0.0
    %1408 = vmatprep.subr.mxu0 0.0
    %1409 = vmatpush1.msra.mxu0 0.0
    %1410 = vmatprep.subr.mxu0 0.0
    %1411 = vmatpush1.msra.mxu0 0.0
    %1412 = vmatprep.subr.mxu0 0.0
    %1413 = vmatpush1.msra.mxu0 0.0
    %1414 = vmatprep.subr.mxu0 0.0
    %1415 = vmatpush1.msra.mxu0 0.0
    %1416 = vmatprep.subr.mxu0 0.0
    %1417 = vmatpush1.msra.mxu0 0.0
    %1418 = vmatprep.mubr.f32.mxu0 0.0
    %1419 = vmatmul.mubr.f32.gmra.mrb[0].mxu0 %v1352
    %v1420 = vpop.f32.mrb[0].mxu0
    %v1421 = vadd.f32 %v1346, %v1420
    %v1422 = vpop.f32.mrb[0].mxu0
    %1423 = vdwg.mxu0
    %v1424 = vadd.f32 %v1421, %v158
    %v1425 = vxor.u32 %v1424, 2147483648
    %v1426 = vmul.f32 %v1425, 1.442695
    %v1427 = vpow.pop %v1426
    %v1428 = vadd.f32 %v1427, 1.0
    %v1429 = vrcp.pop %v1428
    %v1430 = vmul.f32 1.0, %v1429
    %v1431 = vtanh.pop %v1424
    %v1432 = vmul.f32 %v1430, %v982
    %1434 = vrot.lane.b32.xlu0 %v1431, 64
    %v1435 = vpop.permute.xlu0 %1434
    %v1437 = vmul.f32 %v1430, %v1435
    %1439 = vrot.lane.b32.xlu0 %v1437, 32
    %v1440 = vpop.permute.xlu0 %1439
    %v1442 = vadd.f32 %v1432, %v1440
    %v1443 = vtanh.pop %v1442
    %1445 = vrot.lane.b32.xlu0 %v1443, 64
    %v1446 = vpop.permute.xlu0 %1445
    %v1448 = vmul.f32 %v1430, %v1446
    %1450 = vrot.lane.b32.xlu0 %v1448, 32
    %v1451 = vpop.permute.xlu0 %1450
    %v1452 = vsel %vm180, %v1451, 0
    %1454 = vmatprep.subr.mxu0 0.0
    %1455 = vmatpush1.msra.mxu0 %v160
    %1456 = vmatprep.subr.mxu0 0.0
    %1457 = vmatpush1.msra.mxu0 %v161
    %1458 = vmatprep.subr.mxu0 0.0
    %1459 = vmatpush1.msra.mxu0 %v162
    %1460 = vmatprep.subr.mxu0 0.0
    %1461 = vmatpush1.msra.mxu0 %v163
    %1462 = vmatprep.subr.mxu0 0.0
    %1463 = vmatpush1.msra.mxu0 0.0
    %1464 = vmatprep.subr.mxu0 0.0
    %1465 = vmatpush1.msra.mxu0 0.0
    %1466 = vmatprep.subr.mxu0 0.0
    %1467 = vmatpush1.msra.mxu0 0.0
    %1468 = vmatprep.subr.mxu0 0.0
    %1469 = vmatpush1.msra.mxu0 0.0
    %1470 = vmatprep.subr.mxu0 0.0
    %1471 = vmatpush1.msra.mxu0 0.0
    %1472 = vmatprep.subr.mxu0 0.0
    %1473 = vmatpush1.msra.mxu0 0.0
    %1474 = vmatprep.subr.mxu0 0.0
    %1475 = vmatpush1.msra.mxu0 0.0
    %1476 = vmatprep.subr.mxu0 0.0
    %1477 = vmatpush1.msra.mxu0 0.0
    %1478 = vmatprep.subr.mxu0 0.0
    %1479 = vmatpush1.msra.mxu0 0.0
    %1480 = vmatprep.subr.mxu0 0.0
    %1481 = vmatpush1.msra.mxu0 0.0
    %1482 = vmatprep.subr.mxu0 0.0
    %1483 = vmatpush1.msra.mxu0 0.0
    %1484 = vmatprep.subr.mxu0 0.0
    %1485 = vmatpush1.msra.mxu0 0.0
    %1486 = vmatprep.subr.mxu0 0.0
    %1487 = vmatpush1.msra.mxu0 0.0
    %1488 = vmatprep.subr.mxu0 0.0
    %1489 = vmatpush1.msra.mxu0 0.0
    %1490 = vmatprep.subr.mxu0 0.0
    %1491 = vmatpush1.msra.mxu0 0.0
    %1492 = vmatprep.subr.mxu0 0.0
    %1493 = vmatpush1.msra.mxu0 0.0
    %1494 = vmatprep.subr.mxu0 0.0
    %1495 = vmatpush1.msra.mxu0 0.0
    %1496 = vmatprep.subr.mxu0 0.0
    %1497 = vmatpush1.msra.mxu0 0.0
    %1498 = vmatprep.subr.mxu0 0.0
    %1499 = vmatpush1.msra.mxu0 0.0
    %1500 = vmatprep.subr.mxu0 0.0
    %1501 = vmatpush1.msra.mxu0 0.0
    %1502 = vmatprep.subr.mxu0 0.0
    %1503 = vmatpush1.msra.mxu0 0.0
    %1504 = vmatprep.subr.mxu0 0.0
    %1505 = vmatpush1.msra.mxu0 0.0
    %1506 = vmatprep.subr.mxu0 0.0
    %1507 = vmatpush1.msra.mxu0 0.0
    %1508 = vmatprep.subr.mxu0 0.0
    %1509 = vmatpush1.msra.mxu0 0.0
    %1510 = vmatprep.subr.mxu0 0.0
    %1511 = vmatpush1.msra.mxu0 0.0
    %1512 = vmatprep.subr.mxu0 0.0
    %1513 = vmatpush1.msra.mxu0 0.0
    %1514 = vmatprep.subr.mxu0 0.0
    %1515 = vmatpush1.msra.mxu0 0.0
    %1516 = vmatprep.subr.mxu0 0.0
    %1517 = vmatpush1.msra.mxu0 0.0
    %1518 = vmatprep.mubr.f32.mxu0 0.0
    %1519 = vmatmul.mubr.f32.gmra.mrb[0].mxu0 %v1452
    %v1520 = vpop.f32.mrb[0].mxu0
    %v1521 = vadd.f32 %v169, %v1520
    %v1522 = vpop.f32.mrb[0].mxu0
    %1523 = vdwg.mxu0
    %v1524 = vsel %vm114, %v1521, -inf
    %1525 = vmax.xlane.f32.xlu0 %v1524
    %v1526 = vpop.xlane.xlu0 %1525
    %v1527 = vsub.f32 %v1524, %v1526
    %v1528 = vmul.f32 %v1527, 1.442695
    %v1529 = vpow.pop %v1528
    %1530 = vadd.xlane.f32.xlu0 %v1529
    %v1531 = vpop.xlane.xlu0 %1530
    %v1532 = vlog2.pop %v1531
    %v1533 = vmul.f32 %v1532, 0.6931472
    %v1534 = vadd.f32 %v1533, %v1526
    %v1535 = vand.u32 2147483647, %v1521
    %v1536 = vsub.f32 0.0, %v1535
    %v1537 = vmul.f32 %v1536, 1.442695
    %v1538 = vpow.pop %v1537
    %v1539 = vmin.f32 %v1521, 0.0
    %v1540 = vadd.f32 %v1538, 1.0
    %v1541 = vlog2.pop %v1540
    %v1542 = vmul.f32 %v1541, 0.6931472
    %v1543 = vsub.f32 %v1539, %v1542
    %v1544 = vsub.f32 %v1521, %v1534
    %v1545 = vsel %vm115, %v1543, 0.0
    %v1546 = vsel %vm114, %v1544, %v1545
    %vm1547 = vcmp.ge.f32.partialorder %v1521, %v1526
    %vm1548 = vmand %vm114, %vm1547
    %v1549 = vsel %vm1548, %v113, 128
    %v1550 = vand.u32 %v1549, 65535
    %v1551 = vshra.s32 %v1549, 16
    %v1552 = vcvt.s32.f32 %v1550
    %v1553 = vcvt.s32.f32 %v1551
    %1554 = vmin.xlane.f32.xlu0 %v1553
    %v1555 = vpop.xlane.xlu0 %1554
    %vm1556 = vcmp.eq.f32.partialorder %v1553, %v1555
    %v1557 = vsel %vm1556, %v1552, inf
    %1558 = vmin.xlane.f32.xlu0 %v1557
    %v1559 = vpop.xlane.xlu0 %1558
    %v1560 = vcvt.f32.s32 %v1559
    %v1561 = vcvt.f32.s32 %v1555
    %v1562 = vshll.u32 %v1561, 16
    %v1563 = vadd.s32 %v1562, %v1560
    %vm1564 = vcmp.eq.s32.totalorder %v113, %v1563
    %v1565 = vsel %vm1564, 1, 0
    %v1566 = vcvt.s32.f32 %v1565
    %v1567 = vrcp.pop %v1540
    %vm1568 = vcmp.ge.f32.partialorder %v1521, 0.0
    %v1569 = vmul.f32 %v1538, %v1567
    %v1570 = vsel %vm1568, %v1567, %v1569
    %v1571 = vsel %vm115, %v1570, %v1566
    %s1572 = scalar_lea.vmem [#allocation13], 16
    %1573 = vst [vmem:[%s1572] sm:$0xff] %v1546
    %1574 = vmatprep.subr.mxu0 0.0
    %1575 = vmatpush1.msra.mxu0 %v132
    %1576 = vmatprep.subr.mxu0 0.0
    %1577 = vmatpush1.msra.mxu0 %v133
    %1578 = vmatprep.subr.mxu0 0.0
    %1579 = vmatpush1.msra.mxu0 %v134
    %1580 = vmatprep.subr.mxu0 0.0
    %1581 = vmatpush1.msra.mxu0 %v135
    %1582 = vmatprep.subr.mxu0 0.0
    %1583 = vmatpush1.msra.mxu0 0.0
    %1584 = vmatprep.subr.mxu0 0.0
    %1585 = vmatpush1.msra.mxu0 0.0
    %1586 = vmatprep.subr.mxu0 0.0
    %1587 = vmatpush1.msra.mxu0 0.0
    %1588 = vmatprep.subr.mxu0 0.0
    %1589 = vmatpush1.msra.mxu0 0.0
    %1590 = vmatprep.subr.mxu0 0.0
    %1591 = vmatpush1.msra.mxu0 0.0
    %1592 = vmatprep.subr.mxu0 0.0
    %1593 = vmatpush1.msra.mxu0 0.0
    %1594 = vmatprep.subr.mxu0 0.0
    %1595 = vmatpush1.msra.mxu0 0.0
    %1596 = vmatprep.subr.mxu0 0.0
    %1597 = vmatpush1.msra.mxu0 0.0
    %1598 = vmatprep.subr.mxu0 0.0
    %1599 = vmatpush1.msra.mxu0 0.0
    %1600 = vmatprep.subr.mxu0 0.0
    %1601 = vmatpush1.msra.mxu0 0.0
    %1602 = vmatprep.subr.mxu0 0.0
    %1603 = vmatpush1.msra.mxu0 0.0
    %1604 = vmatprep.subr.mxu0 0.0
    %1605 = vmatpush1.msra.mxu0 0.0
    %1606 = vmatprep.subr.mxu0 0.0
    %1607 = vmatpush1.msra.mxu0 0.0
    %1608 = vmatprep.subr.mxu0 0.0
    %1609 = vmatpush1.msra.mxu0 0.0
    %1610 = vmatprep.subr.mxu0 0.0
    %1611 = vmatpush1.msra.mxu0 0.0
    %1612 = vmatprep.subr.mxu0 0.0
    %1613 = vmatpush1.msra.mxu0 0.0
    %1614 = vmatprep.subr.mxu0 0.0
    %1615 = vmatpush1.msra.mxu0 0.0
    %1616 = vmatprep.subr.mxu0 0.0
    %1617 = vmatpush1.msra.mxu0 0.0
    %1618 = vmatprep.subr.mxu0 0.0
    %1619 = vmatpush1.msra.mxu0 0.0
    %1620 = vmatprep.subr.mxu0 0.0
    %1621 = vmatpush1.msra.mxu0 0.0
    %1622 = vmatprep.subr.mxu0 0.0
    %1623 = vmatpush1.msra.mxu0 0.0
    %1624 = vmatprep.subr.mxu0 0.0
    %1625 = vmatpush1.msra.mxu0 0.0
    %1626 = vmatprep.subr.mxu0 0.0
    %1627 = vmatpush1.msra.mxu0 0.0
    %1628 = vmatprep.subr.mxu0 0.0
    %1629 = vmatpush1.msra.mxu0 0.0
    %1630 = vmatprep.subr.mxu0 0.0
    %1631 = vmatpush1.msra.mxu0 0.0
    %1632 = vmatprep.subr.mxu0 0.0
    %1633 = vmatpush1.msra.mxu0 0.0
    %1634 = vmatprep.subr.mxu0 0.0
    %1635 = vmatpush1.msra.mxu0 0.0
    %1636 = vmatprep.subr.mxu0 0.0
    %1637 = vmatpush1.msra.mxu0 0.0
    %1638 = vmatprep.mubr.f32.mxu0 0.0
    %1639 = vmatmul.mubr.f32.gmra.mrb[0].mxu0 %v1352
    %v1640 = vpop.f32.mrb[0].mxu0
    %v1641 = vadd.f32 0.0, %v1640
    %v1642 = vpop.f32.mrb[0].mxu0
    %1643 = vdwg.mxu0
    %1644 = vmatprep.subr.mxu0 0.0
    %1645 = vmatpush1.msra.mxu0 %v116
    %1646 = vmatprep.subr.mxu0 0.0
    %1647 = vmatpush1.msra.mxu0 %v117
    %1648 = vmatprep.subr.mxu0 0.0
    %1649 = vmatpush1.msra.mxu0 %v118
    %1650 = vmatprep.subr.mxu0 0.0
    %1651 = vmatpush1.msra.mxu0 %v119
    %1652 = vmatprep.subr.mxu0 0.0
    %1653 = vmatpush1.msra.mxu0 %v120
    %1654 = vmatprep.subr.mxu0 0.0
    %1655 = vmatpush1.msra.mxu0 %v121
    %1656 = vmatprep.subr.mxu0 0.0
    %1657 = vmatpush1.msra.mxu0 %v122
    %1658 = vmatprep.subr.mxu0 0.0
    %1659 = vmatpush1.msra.mxu0 %v123
    %1660 = vmatprep.subr.mxu0 0.0
    %1661 = vmatpush1.msra.mxu0 %v124
    %1662 = vmatprep.subr.mxu0 0.0
    %1663 = vmatpush1.msra.mxu0 %v125
    %1664 = vmatprep.subr.mxu0 0.0
    %1665 = vmatpush1.msra.mxu0 %v126
    %1666 = vmatprep.subr.mxu0 0.0
    %1667 = vmatpush1.msra.mxu0 %v127
    %1668 = vmatprep.subr.mxu0 0.0
    %1669 = vmatpush1.msra.mxu0 %v128
    %1670 = vmatprep.subr.mxu0 0.0
    %1671 = vmatpush1.msra.mxu0 %v129
    %1672 = vmatprep.subr.mxu0 0.0
    %1673 = vmatpush1.msra.mxu0 %v130
    %1674 = vmatprep.subr.mxu0 0.0
    %1675 = vmatpush1.msra.mxu0 %v131
    %1676 = vmatprep.subr.mxu0 0.0
    %1677 = vmatpush1.msra.mxu0 0.0
    %1678 = vmatprep.subr.mxu0 0.0
    %1679 = vmatpush1.msra.mxu0 0.0
    %1680 = vmatprep.subr.mxu0 0.0
    %1681 = vmatpush1.msra.mxu0 0.0
    %1682 = vmatprep.subr.mxu0 0.0
    %1683 = vmatpush1.msra.mxu0 0.0
    %1684 = vmatprep.subr.mxu0 0.0
    %1685 = vmatpush1.msra.mxu0 0.0
    %1686 = vmatprep.subr.mxu0 0.0
    %1687 = vmatpush1.msra.mxu0 0.0
    %1688 = vmatprep.subr.mxu0 0.0
    %1689 = vmatpush1.msra.mxu0 0.0
    %1690 = vmatprep.subr.mxu0 0.0
    %1691 = vmatpush1.msra.mxu0 0.0
    %1692 = vmatprep.subr.mxu0 0.0
    %1693 = vmatpush1.msra.mxu0 0.0
    %1694 = vmatprep.subr.mxu0 0.0
    %1695 = vmatpush1.msra.mxu0 0.0
    %1696 = vmatprep.subr.mxu0 0.0
    %1697 = vmatpush1.msra.mxu0 0.0
    %1698 = vmatprep.subr.mxu0 0.0
    %1699 = vmatpush1.msra.mxu0 0.0
    %1700 = vmatprep.subr.mxu0 0.0
    %1701 = vmatpush1.msra.mxu0 0.0
    %1702 = vmatprep.subr.mxu0 0.0
    %1703 = vmatpush1.msra.mxu0 0.0
    %1704 = vmatprep.subr.mxu0 0.0
    %1705 = vmatpush1.msra.mxu0 0.0
    %1706 = vmatprep.subr.mxu0 0.0
    %1707 = vmatpush1.msra.mxu0 0.0
    %1708 = vmatprep.mubr.f32.mxu0 0.0
    %1709 = vmatmul.mubr.f32.gmra.mrb[0].mxu0 %v1571
    %v1710 = vpop.f32.mrb[0].mxu0
    %v1711 = vadd.f32 %v1641, %v1710
    %v1712 = vpop.f32.mrb[0].mxu0
    %1713 = vdwg.mxu0
    %v1714 = vadd.f32 %v1711, %v150
    %v1715 = vxor.u32 %v1714, 2147483648
    %v1716 = vmul.f32 %v1715, 1.442695
    %v1717 = vpow.pop %v1716
    %v1718 = vadd.f32 %v1717, 1.0
    %v1719 = vrcp.pop %v1718
    %v1720 = vmul.f32 1.0, %v1719
    %v1721 = vtanh.pop %v1714
    %v1722 = vmul.f32 %v1720, %v1272
    %1724 = vrot.lane.b32.xlu0 %v1721, 64
    %v1725 = vpop.permute.xlu0 %1724
    %v1727 = vmul.f32 %v1720, %v1725
    %1729 = vrot.lane.b32.xlu0 %v1727, 32
    %v1730 = vpop.permute.xlu0 %1729
    %v1732 = vadd.f32 %v1722, %v1730
    %v1733 = vtanh.pop %v1732
    %1735 = vrot.lane.b32.xlu0 %v1733, 64
    %v1736 = vpop.permute.xlu0 %1735
    %v1738 = vmul.f32 %v1720, %v1736
    %1739 = vmatprep.subr.mxu0 0.0
    %1740 = vmatpush1.msra.mxu0 %v137
    %1741 = vmatprep.subr.mxu0 0.0
    %1742 = vmatpush1.msra.mxu0 %v138
    %1743 = vmatprep.subr.mxu0 0.0
    %1744 = vmatpush1.msra.mxu0 %v139
    %1745 = vmatprep.subr.mxu0 0.0
    %1746 = vmatpush1.msra.mxu0 %v140
    %1747 = vmatprep.subr.mxu0 0.0
    %1748 = vmatpush1.msra.mxu0 0.0
    %1749 = vmatprep.subr.mxu0 0.0
    %1750 = vmatpush1.msra.mxu0 0.0
    %1751 = vmatprep.subr.mxu0 0.0
    %1752 = vmatpush1.msra.mxu0 0.0
    %1753 = vmatprep.subr.mxu0 0.0
    %1754 = vmatpush1.msra.mxu0 0.0
    %1755 = vmatprep.subr.mxu0 0.0
    %1756 = vmatpush1.msra.mxu0 0.0
    %1757 = vmatprep.subr.mxu0 0.0
    %1758 = vmatpush1.msra.mxu0 0.0
    %1759 = vmatprep.subr.mxu0 0.0
    %1760 = vmatpush1.msra.mxu0 0.0
    %1761 = vmatprep.subr.mxu0 0.0
    %1762 = vmatpush1.msra.mxu0 0.0
    %1763 = vmatprep.subr.mxu0 0.0
    %1764 = vmatpush1.msra.mxu0 0.0
    %1765 = vmatprep.subr.mxu0 0.0
    %1766 = vmatpush1.msra.mxu0 0.0
    %1767 = vmatprep.subr.mxu0 0.0
    %1768 = vmatpush1.msra.mxu0 0.0
    %1769 = vmatprep.subr.mxu0 0.0
    %1770 = vmatpush1.msra.mxu0 0.0
    %1771 = vmatprep.subr.mxu0 0.0
    %1772 = vmatpush1.msra.mxu0 0.0
    %1773 = vmatprep.subr.mxu0 0.0
    %1774 = vmatpush1.msra.mxu0 0.0
    %1775 = vmatprep.subr.mxu0 0.0
    %1776 = vmatpush1.msra.mxu0 0.0
    %1777 = vmatprep.subr.mxu0 0.0
    %1778 = vmatpush1.msra.mxu0 0.0
    %1779 = vmatprep.subr.mxu0 0.0
    %1780 = vmatpush1.msra.mxu0 0.0
    %1781 = vmatprep.subr.mxu0 0.0
    %1782 = vmatpush1.msra.mxu0 0.0
    %1783 = vmatprep.subr.mxu0 0.0
    %1784 = vmatpush1.msra.mxu0 0.0
    %1785 = vmatprep.subr.mxu0 0.0
    %1786 = vmatpush1.msra.mxu0 0.0
    %1787 = vmatprep.subr.mxu0 0.0
    %1788 = vmatpush1.msra.mxu0 0.0
    %1789 = vmatprep.subr.mxu0 0.0
    %1790 = vmatpush1.msra.mxu0 0.0
    %1791 = vmatprep.subr.mxu0 0.0
    %1792 = vmatpush1.msra.mxu0 0.0
    %1793 = vmatprep.subr.mxu0 0.0
    %1794 = vmatpush1.msra.mxu0 0.0
    %1795 = vmatprep.subr.mxu0 0.0
    %1796 = vmatpush1.msra.mxu0 0.0
    %1797 = vmatprep.subr.mxu0 0.0
    %1798 = vmatpush1.msra.mxu0 0.0
    %1799 = vmatprep.subr.mxu0 0.0
    %1800 = vmatpush1.msra.mxu0 0.0
    %1801 = vmatprep.subr.mxu0 0.0
    %1802 = vmatpush1.msra.mxu0 0.0
    %1803 = vmatprep.mubr.f32.mxu0 0.0
    %1804 = vmatmul.mubr.f32.gmra.mrb[0].mxu0 %v1452
    %v1805 = vpop.f32.mrb[0].mxu0
    %v1806 = vadd.f32 0.0, %v1805
    %v1807 = vpop.f32.mrb[0].mxu0
    %1808 = vdwg.mxu0
    %1810 = vrot.lane.b32.xlu0 %v1738, 32
    %v1811 = vpop.permute.xlu0 %1810
    %v1812 = vsel %vm180, %v1811, 0
    %1814 = vmatprep.subr.mxu0 0.0
    %1815 = vmatpush1.msra.mxu0 %v141
    %1816 = vmatprep.subr.mxu0 0.0
    %1817 = vmatpush1.msra.mxu0 %v142
    %1818 = vmatprep.subr.mxu0 0.0
    %1819 = vmatpush1.msra.mxu0 %v143
    %1820 = vmatprep.subr.mxu0 0.0
    %1821 = vmatpush1.msra.mxu0 %v144
    %1822 = vmatprep.subr.mxu0 0.0
    %1823 = vmatpush1.msra.mxu0 0.0
    %1824 = vmatprep.subr.mxu0 0.0
    %1825 = vmatpush1.msra.mxu0 0.0
    %1826 = vmatprep.subr.mxu0 0.0
    %1827 = vmatpush1.msra.mxu0 0.0
    %1828 = vmatprep.subr.mxu0 0.0
    %1829 = vmatpush1.msra.mxu0 0.0
    %1830 = vmatprep.subr.mxu0 0.0
    %1831 = vmatpush1.msra.mxu0 0.0
    %1832 = vmatprep.subr.mxu0 0.0
    %1833 = vmatpush1.msra.mxu0 0.0
    %1834 = vmatprep.subr.mxu0 0.0
    %1835 = vmatpush1.msra.mxu0 0.0
    %1836 = vmatprep.subr.mxu0 0.0
    %1837 = vmatpush1.msra.mxu0 0.0
    %1838 = vmatprep.subr.mxu0 0.0
    %1839 = vmatpush1.msra.mxu0 0.0
    %1840 = vmatprep.subr.mxu0 0.0
    %1841 = vmatpush1.msra.mxu0 0.0
    %1842 = vmatprep.subr.mxu0 0.0
    %1843 = vmatpush1.msra.mxu0 0.0
    %1844 = vmatprep.subr.mxu0 0.0
    %1845 = vmatpush1.msra.mxu0 0.0
    %1846 = vmatprep.subr.mxu0 0.0
    %1847 = vmatpush1.msra.mxu0 0.0
    %1848 = vmatprep.subr.mxu0 0.0
    %1849 = vmatpush1.msra.mxu0 0.0
    %1850 = vmatprep.subr.mxu0 0.0
    %1851 = vmatpush1.msra.mxu0 0.0
    %1852 = vmatprep.subr.mxu0 0.0
    %1853 = vmatpush1.msra.mxu0 0.0
    %1854 = vmatprep.subr.mxu0 0.0
    %1855 = vmatpush1.msra.mxu0 0.0
    %1856 = vmatprep.subr.mxu0 0.0
    %1857 = vmatpush1.msra.mxu0 0.0
    %1858 = vmatprep.subr.mxu0 0.0
    %1859 = vmatpush1.msra.mxu0 0.0
    %1860 = vmatprep.subr.mxu0 0.0
    %1861 = vmatpush1.msra.mxu0 0.0
    %1862 = vmatprep.subr.mxu0 0.0
    %1863 = vmatpush1.msra.mxu0 0.0
    %1864 = vmatprep.subr.mxu0 0.0
    %1865 = vmatpush1.msra.mxu0 0.0
    %1866 = vmatprep.subr.mxu0 0.0
    %1867 = vmatpush1.msra.mxu0 0.0
    %1868 = vmatprep.subr.mxu0 0.0
    %1869 = vmatpush1.msra.mxu0 0.0
    %1870 = vmatprep.subr.mxu0 0.0
    %1871 = vmatpush1.msra.mxu0 0.0
    %1872 = vmatprep.subr.mxu0 0.0
    %1873 = vmatpush1.msra.mxu0 0.0
    %1874 = vmatprep.subr.mxu0 0.0
    %1875 = vmatpush1.msra.mxu0 0.0
    %1876 = vmatprep.subr.mxu0 0.0
    %1877 = vmatpush1.msra.mxu0 0.0
    %1878 = vmatprep.mubr.f32.mxu0 0.0
    %1879 = vmatmul.mubr.f32.gmra.mrb[0].mxu0 %v1812
    %v1880 = vpop.f32.mrb[0].mxu0
    %v1881 = vadd.f32 %v1806, %v1880
    %v1882 = vpop.f32.mrb[0].mxu0
    %1883 = vdwg.mxu0
    %v1884 = vadd.f32 %v1881, %v158
    %v1885 = vxor.u32 %v1884, 2147483648
    %v1886 = vmul.f32 %v1885, 1.442695
    %v1887 = vpow.pop %v1886
    %v1888 = vadd.f32 %v1887, 1.0
    %v1889 = vrcp.pop %v1888
    %v1890 = vmul.f32 1.0, %v1889
    %v1891 = vtanh.pop %v1884
    %v1892 = vmul.f32 %v1890, %v1442
    %1894 = vrot.lane.b32.xlu0 %v1891, 64
    %v1895 = vpop.permute.xlu0 %1894
    %v1897 = vmul.f32 %v1890, %v1895
    %1899 = vrot.lane.b32.xlu0 %v1897, 32
    %v1900 = vpop.permute.xlu0 %1899
    %v1902 = vadd.f32 %v1892, %v1900
    %v1903 = vtanh.pop %v1902
    %1905 = vrot.lane.b32.xlu0 %v1903, 64
    %v1906 = vpop.permute.xlu0 %1905
    %v1908 = vmul.f32 %v1890, %v1906
    %1910 = vrot.lane.b32.xlu0 %v1908, 32
    %v1911 = vpop.permute.xlu0 %1910
    %v1912 = vsel %vm180, %v1911, 0
    %1914 = vmatprep.subr.mxu0 0.0
    %1915 = vmatpush1.msra.mxu0 %v160
    %1916 = vmatprep.subr.mxu0 0.0
    %1917 = vmatpush1.msra.mxu0 %v161
    %1918 = vmatprep.subr.mxu0 0.0
    %1919 = vmatpush1.msra.mxu0 %v162
    %1920 = vmatprep.subr.mxu0 0.0
    %1921 = vmatpush1.msra.mxu0 %v163
    %1922 = vmatprep.subr.mxu0 0.0
    %1923 = vmatpush1.msra.mxu0 0.0
    %1924 = vmatprep.subr.mxu0 0.0
    %1925 = vmatpush1.msra.mxu0 0.0
    %1926 = vmatprep.subr.mxu0 0.0
    %1927 = vmatpush1.msra.mxu0 0.0
    %1928 = vmatprep.subr.mxu0 0.0
    %1929 = vmatpush1.msra.mxu0 0.0
    %1930 = vmatprep.subr.mxu0 0.0
    %1931 = vmatpush1.msra.mxu0 0.0
    %1932 = vmatprep.subr.mxu0 0.0
    %1933 = vmatpush1.msra.mxu0 0.0
    %1934 = vmatprep.subr.mxu0 0.0
    %1935 = vmatpush1.msra.mxu0 0.0
    %1936 = vmatprep.subr.mxu0 0.0
    %1937 = vmatpush1.msra.mxu0 0.0
    %1938 = vmatprep.subr.mxu0 0.0
    %1939 = vmatpush1.msra.mxu0 0.0
    %1940 = vmatprep.subr.mxu0 0.0
    %1941 = vmatpush1.msra.mxu0 0.0
    %1942 = vmatprep.subr.mxu0 0.0
    %1943 = vmatpush1.msra.mxu0 0.0
    %1944 = vmatprep.subr.mxu0 0.0
    %1945 = vmatpush1.msra.mxu0 0.0
    %1946 = vmatprep.subr.mxu0 0.0
    %1947 = vmatpush1.msra.mxu0 0.0
    %1948 = vmatprep.subr.mxu0 0.0
    %1949 = vmatpush1.msra.mxu0 0.0
    %1950 = vmatprep.subr.mxu0 0.0
    %1951 = vmatpush1.msra.mxu0 0.0
    %1952 = vmatprep.subr.mxu0 0.0
    %1953 = vmatpush1.msra.mxu0 0.0
    %1954 = vmatprep.subr.mxu0 0.0
    %1955 = vmatpush1.msra.mxu0 0.0
    %1956 = vmatprep.subr.mxu0 0.0
    %1957 = vmatpush1.msra.mxu0 0.0
    %1958 = vmatprep.subr.mxu0 0.0
    %1959 = vmatpush1.msra.mxu0 0.0
    %1960 = vmatprep.subr.mxu0 0.0
    %1961 = vmatpush1.msra.mxu0 0.0
    %1962 = vmatprep.subr.mxu0 0.0
    %1963 = vmatpush1.msra.mxu0 0.0
    %1964 = vmatprep.subr.mxu0 0.0
    %1965 = vmatpush1.msra.mxu0 0.0
    %1966 = vmatprep.subr.mxu0 0.0
    %1967 = vmatpush1.msra.mxu0 0.0
    %1968 = vmatprep.subr.mxu0 0.0
    %1969 = vmatpush1.msra.mxu0 0.0
    %1970 = vmatprep.subr.mxu0 0.0
    %1971 = vmatpush1.msra.mxu0 0.0
    %1972 = vmatprep.subr.mxu0 0.0
    %1973 = vmatpush1.msra.mxu0 0.0
    %1974 = vmatprep.subr.mxu0 0.0
    %1975 = vmatpush1.msra.mxu0 0.0
    %1976 = vmatprep.subr.mxu0 0.0
    %1977 = vmatpush1.msra.mxu0 0.0
    %1978 = vmatprep.mubr.f32.mxu0 0.0
    %1979 = vmatmul.mubr.f32.gmra.mrb[0].mxu0 %v1912
    %v1980 = vpop.f32.mrb[0].mxu0
    %v1981 = vadd.f32 %v169, %v1980
    %v1982 = vpop.f32.mrb[0].mxu0
    %1983 = vdwg.mxu0
    %v1984 = vsel %vm114, %v1981, -inf
    %1985 = vmax.xlane.f32.xlu0 %v1984
    %v1986 = vpop.xlane.xlu0 %1985
    %v1987 = vsub.f32 %v1984, %v1986
    %v1988 = vmul.f32 %v1987, 1.442695
    %v1989 = vpow.pop %v1988
    %1990 = vadd.xlane.f32.xlu0 %v1989
    %v1991 = vpop.xlane.xlu0 %1990
    %v1992 = vlog2.pop %v1991
    %v1993 = vmul.f32 %v1992, 0.6931472
    %v1994 = vadd.f32 %v1993, %v1986
    %v1995 = vand.u32 2147483647, %v1981
    %v1996 = vsub.f32 0.0, %v1995
    %v1997 = vmul.f32 %v1996, 1.442695
    %v1998 = vpow.pop %v1997
    %v1999 = vmin.f32 %v1981, 0.0
    %v2000 = vadd.f32 %v1998, 1.0
    %v2001 = vlog2.pop %v2000
    %v2002 = vmul.f32 %v2001, 0.6931472
    %v2003 = vsub.f32 %v1999, %v2002
    %v2004 = vsub.f32 %v1981, %v1994
    %v2005 = vsel %vm115, %v2003, 0.0
    %v2006 = vsel %vm114, %v2004, %v2005
    %vm2007 = vcmp.ge.f32.partialorder %v1981, %v1986
    %vm2008 = vmand %vm114, %vm2007
    %v2009 = vsel %vm2008, %v113, 128
    %v2010 = vand.u32 %v2009, 65535
    %v2011 = vshra.s32 %v2009, 16
    %v2012 = vcvt.s32.f32 %v2010
    %v2013 = vcvt.s32.f32 %v2011
    %2014 = vmin.xlane.f32.xlu0 %v2013
    %v2015 = vpop.xlane.xlu0 %2014
    %vm2016 = vcmp.eq.f32.partialorder %v2013, %v2015
    %v2017 = vsel %vm2016, %v2012, inf
    %2018 = vmin.xlane.f32.xlu0 %v2017
    %v2019 = vpop.xlane.xlu0 %2018
    %v2020 = vcvt.f32.s32 %v2019
    %v2021 = vcvt.f32.s32 %v2015
    %v2022 = vshll.u32 %v2021, 16
    %v2023 = vadd.s32 %v2022, %v2020
    %vm2024 = vcmp.eq.s32.totalorder %v113, %v2023
    %v2025 = vsel %vm2024, 1, 0
    %v2026 = vcvt.s32.f32 %v2025
    %v2027 = vrcp.pop %v2000
    %vm2028 = vcmp.ge.f32.partialorder %v1981, 0.0
    %v2029 = vmul.f32 %v1998, %v2027
    %v2030 = vsel %vm2028, %v2027, %v2029
    %v2031 = vsel %vm115, %v2030, %v2026
    %s2032 = scalar_lea.vmem [#allocation13], 24
    %2033 = vst [vmem:[%s2032] sm:$0xff] %v2006
    %2034 = vmatprep.subr.mxu0 0.0
    %2035 = vmatpush1.msra.mxu0 %v132
    %2036 = vmatprep.subr.mxu0 0.0
    %2037 = vmatpush1.msra.mxu0 %v133
    %2038 = vmatprep.subr.mxu0 0.0
    %2039 = vmatpush1.msra.mxu0 %v134
    %2040 = vmatprep.subr.mxu0 0.0
    %2041 = vmatpush1.msra.mxu0 %v135
    %2042 = vmatprep.subr.mxu0 0.0
    %2043 = vmatpush1.msra.mxu0 0.0
    %2044 = vmatprep.subr.mxu0 0.0
    %2045 = vmatpush1.msra.mxu0 0.0
    %2046 = vmatprep.subr.mxu0 0.0
    %2047 = vmatpush1.msra.mxu0 0.0
    %2048 = vmatprep.subr.mxu0 0.0
    %2049 = vmatpush1.msra.mxu0 0.0
    %2050 = vmatprep.subr.mxu0 0.0
    %2051 = vmatpush1.msra.mxu0 0.0
    %2052 = vmatprep.subr.mxu0 0.0
    %2053 = vmatpush1.msra.mxu0 0.0
    %2054 = vmatprep.subr.mxu0 0.0
    %2055 = vmatpush1.msra.mxu0 0.0
    %2056 = vmatprep.subr.mxu0 0.0
    %2057 = vmatpush1.msra.mxu0 0.0
    %2058 = vmatprep.subr.mxu0 0.0
    %2059 = vmatpush1.msra.mxu0 0.0
    %2060 = vmatprep.subr.mxu0 0.0
    %2061 = vmatpush1.msra.mxu0 0.0
    %2062 = vmatprep.subr.mxu0 0.0
    %2063 = vmatpush1.msra.mxu0 0.0
    %2064 = vmatprep.subr.mxu0 0.0
    %2065 = vmatpush1.msra.mxu0 0.0
    %2066 = vmatprep.subr.mxu0 0.0
    %2067 = vmatpush1.msra.mxu0 0.0
    %2068 = vmatprep.subr.mxu0 0.0
    %2069 = vmatpush1.msra.mxu0 0.0
    %2070 = vmatprep.subr.mxu0 0.0
    %2071 = vmatpush1.msra.mxu0 0.0
    %2072 = vmatprep.subr.mxu0 0.0
    %2073 = vmatpush1.msra.mxu0 0.0
    %2074 = vmatprep.subr.mxu0 0.0
    %2075 = vmatpush1.msra.mxu0 0.0
    %2076 = vmatprep.subr.mxu0 0.0
    %2077 = vmatpush1.msra.mxu0 0.0
    %2078 = vmatprep.subr.mxu0 0.0
    %2079 = vmatpush1.msra.mxu0 0.0
    %2080 = vmatprep.subr.mxu0 0.0
    %2081 = vmatpush1.msra.mxu0 0.0
    %2082 = vmatprep.subr.mxu0 0.0
    %2083 = vmatpush1.msra.mxu0 0.0
    %2084 = vmatprep.subr.mxu0 0.0
    %2085 = vmatpush1.msra.mxu0 0.0
    %2086 = vmatprep.subr.mxu0 0.0
    %2087 = vmatpush1.msra.mxu0 0.0
    %2088 = vmatprep.subr.mxu0 0.0
    %2089 = vmatpush1.msra.mxu0 0.0
    %2090 = vmatprep.subr.mxu0 0.0
    %2091 = vmatpush1.msra.mxu0 0.0
    %2092 = vmatprep.subr.mxu0 0.0
    %2093 = vmatpush1.msra.mxu0 0.0
    %2094 = vmatprep.subr.mxu0 0.0
    %2095 = vmatpush1.msra.mxu0 0.0
    %2096 = vmatprep.subr.mxu0 0.0
    %2097 = vmatpush1.msra.mxu0 0.0
    %2098 = vmatprep.mubr.f32.mxu0 0.0
    %2099 = vmatmul.mubr.f32.gmra.mrb[0].mxu0 %v1812
    %v2100 = vpop.f32.mrb[0].mxu0
    %v2101 = vadd.f32 0.0, %v2100
    %v2102 = vpop.f32.mrb[0].mxu0
    %2103 = vdwg.mxu0
    %2104 = vmatprep.subr.mxu0 0.0
    %2105 = vmatpush1.msra.mxu0 %v116
    %2106 = vmatprep.subr.mxu0 0.0
    %2107 = vmatpush1.msra.mxu0 %v117
    %2108 = vmatprep.subr.mxu0 0.0
    %2109 = vmatpush1.msra.mxu0 %v118
    %2110 = vmatprep.subr.mxu0 0.0
    %2111 = vmatpush1.msra.mxu0 %v119
    %2112 = vmatprep.subr.mxu0 0.0
    %2113 = vmatpush1.msra.mxu0 %v120
    %2114 = vmatprep.subr.mxu0 0.0
    %2115 = vmatpush1.msra.mxu0 %v121
    %2116 = vmatprep.subr.mxu0 0.0
    %2117 = vmatpush1.msra.mxu0 %v122
    %2118 = vmatprep.subr.mxu0 0.0
    %2119 = vmatpush1.msra.mxu0 %v123
    %2120 = vmatprep.subr.mxu0 0.0
    %2121 = vmatpush1.msra.mxu0 %v124
    %2122 = vmatprep.subr.mxu0 0.0
    %2123 = vmatpush1.msra.mxu0 %v125
    %2124 = vmatprep.subr.mxu0 0.0
    %2125 = vmatpush1.msra.mxu0 %v126
    %2126 = vmatprep.subr.mxu0 0.0
    %2127 = vmatpush1.msra.mxu0 %v127
    %2128 = vmatprep.subr.mxu0 0.0
    %2129 = vmatpush1.msra.mxu0 %v128
    %2130 = vmatprep.subr.mxu0 0.0
    %2131 = vmatpush1.msra.mxu0 %v129
    %2132 = vmatprep.subr.mxu0 0.0
    %2133 = vmatpush1.msra.mxu0 %v130
    %2134 = vmatprep.subr.mxu0 0.0
    %2135 = vmatpush1.msra.mxu0 %v131
    %2136 = vmatprep.subr.mxu0 0.0
    %2137 = vmatpush1.msra.mxu0 0.0
    %2138 = vmatprep.subr.mxu0 0.0
    %2139 = vmatpush1.msra.mxu0 0.0
    %2140 = vmatprep.subr.mxu0 0.0
    %2141 = vmatpush1.msra.mxu0 0.0
    %2142 = vmatprep.subr.mxu0 0.0
    %2143 = vmatpush1.msra.mxu0 0.0
    %2144 = vmatprep.subr.mxu0 0.0
    %2145 = vmatpush1.msra.mxu0 0.0
    %2146 = vmatprep.subr.mxu0 0.0
    %2147 = vmatpush1.msra.mxu0 0.0
    %2148 = vmatprep.subr.mxu0 0.0
    %2149 = vmatpush1.msra.mxu0 0.0
    %2150 = vmatprep.subr.mxu0 0.0
    %2151 = vmatpush1.msra.mxu0 0.0
    %2152 = vmatprep.subr.mxu0 0.0
    %2153 = vmatpush1.msra.mxu0 0.0
    %2154 = vmatprep.subr.mxu0 0.0
    %2155 = vmatpush1.msra.mxu0 0.0
    %2156 = vmatprep.subr.mxu0 0.0
    %2157 = vmatpush1.msra.mxu0 0.0
    %2158 = vmatprep.subr.mxu0 0.0
    %2159 = vmatpush1.msra.mxu0 0.0
    %2160 = vmatprep.subr.mxu0 0.0
    %2161 = vmatpush1.msra.mxu0 0.0
    %2162 = vmatprep.subr.mxu0 0.0
    %2163 = vmatpush1.msra.mxu0 0.0
    %2164 = vmatprep.subr.mxu0 0.0
    %2165 = vmatpush1.msra.mxu0 0.0
    %2166 = vmatprep.subr.mxu0 0.0
    %2167 = vmatpush1.msra.mxu0 0.0
    %2168 = vmatprep.mubr.f32.mxu0 0.0
    %2169 = vmatmul.mubr.f32.gmra.mrb[0].mxu0 %v2031
    %v2170 = vpop.f32.mrb[0].mxu0
    %v2171 = vadd.f32 %v2101, %v2170
    %v2172 = vpop.f32.mrb[0].mxu0
    %2173 = vdwg.mxu0
    %v2174 = vadd.f32 %v2171, %v150
    %v2175 = vxor.u32 %v2174, 2147483648
    %v2176 = vmul.f32 %v2175, 1.442695
    %v2177 = vpow.pop %v2176
    %v2178 = vadd.f32 %v2177, 1.0
    %v2179 = vrcp.pop %v2178
    %v2180 = vmul.f32 1.0, %v2179
    %v2181 = vtanh.pop %v2174
    %v2182 = vmul.f32 %v2180, %v1732
    %2184 = vrot.lane.b32.xlu0 %v2181, 64
    %v2185 = vpop.permute.xlu0 %2184
    %v2187 = vmul.f32 %v2180, %v2185
    %2189 = vrot.lane.b32.xlu0 %v2187, 32
    %v2190 = vpop.permute.xlu0 %2189
    %v2192 = vadd.f32 %v2182, %v2190
    %v2193 = vtanh.pop %v2192
    %2195 = vrot.lane.b32.xlu0 %v2193, 64
    %v2196 = vpop.permute.xlu0 %2195
    %v2198 = vmul.f32 %v2180, %v2196
    %2199 = vmatprep.subr.mxu0 0.0
    %2200 = vmatpush1.msra.mxu0 %v137
    %2201 = vmatprep.subr.mxu0 0.0
    %2202 = vmatpush1.msra.mxu0 %v138
    %2203 = vmatprep.subr.mxu0 0.0
    %2204 = vmatpush1.msra.mxu0 %v139
    %2205 = vmatprep.subr.mxu0 0.0
    %2206 = vmatpush1.msra.mxu0 %v140
    %2207 = vmatprep.subr.mxu0 0.0
    %2208 = vmatpush1.msra.mxu0 0.0
    %2209 = vmatprep.subr.mxu0 0.0
    %2210 = vmatpush1.msra.mxu0 0.0
    %2211 = vmatprep.subr.mxu0 0.0
    %2212 = vmatpush1.msra.mxu0 0.0
    %2213 = vmatprep.subr.mxu0 0.0
    %2214 = vmatpush1.msra.mxu0 0.0
    %2215 = vmatprep.subr.mxu0 0.0
    %2216 = vmatpush1.msra.mxu0 0.0
    %2217 = vmatprep.subr.mxu0 0.0
    %2218 = vmatpush1.msra.mxu0 0.0
    %2219 = vmatprep.subr.mxu0 0.0
    %2220 = vmatpush1.msra.mxu0 0.0
    %2221 = vmatprep.subr.mxu0 0.0
    %2222 = vmatpush1.msra.mxu0 0.0
    %2223 = vmatprep.subr.mxu0 0.0
    %2224 = vmatpush1.msra.mxu0 0.0
    %2225 = vmatprep.subr.mxu0 0.0
    %2226 = vmatpush1.msra.mxu0 0.0
    %2227 = vmatprep.subr.mxu0 0.0
    %2228 = vmatpush1.msra.mxu0 0.0
    %2229 = vmatprep.subr.mxu0 0.0
    %2230 = vmatpush1.msra.mxu0 0.0
    %2231 = vmatprep.subr.mxu0 0.0
    %2232 = vmatpush1.msra.mxu0 0.0
    %2233 = vmatprep.subr.mxu0 0.0
    %2234 = vmatpush1.msra.mxu0 0.0
    %2235 = vmatprep.subr.mxu0 0.0
    %2236 = vmatpush1.msra.mxu0 0.0
    %2237 = vmatprep.subr.mxu0 0.0
    %2238 = vmatpush1.msra.mxu0 0.0
    %2239 = vmatprep.subr.mxu0 0.0
    %2240 = vmatpush1.msra.mxu0 0.0
    %2241 = vmatprep.subr.mxu0 0.0
    %2242 = vmatpush1.msra.mxu0 0.0
    %2243 = vmatprep.subr.mxu0 0.0
    %2244 = vmatpush1.msra.mxu0 0.0
    %2245 = vmatprep.subr.mxu0 0.0
    %2246 = vmatpush1.msra.mxu0 0.0
    %2247 = vmatprep.subr.mxu0 0.0
    %2248 = vmatpush1.msra.mxu0 0.0
    %2249 = vmatprep.subr.mxu0 0.0
    %2250 = vmatpush1.msra.mxu0 0.0
    %2251 = vmatprep.subr.mxu0 0.0
    %2252 = vmatpush1.msra.mxu0 0.0
    %2253 = vmatprep.subr.mxu0 0.0
    %2254 = vmatpush1.msra.mxu0 0.0
    %2255 = vmatprep.subr.mxu0 0.0
    %2256 = vmatpush1.msra.mxu0 0.0
    %2257 = vmatprep.subr.mxu0 0.0
    %2258 = vmatpush1.msra.mxu0 0.0
    %2259 = vmatprep.subr.mxu0 0.0
    %2260 = vmatpush1.msra.mxu0 0.0
    %2261 = vmatprep.subr.mxu0 0.0
    %2262 = vmatpush1.msra.mxu0 0.0
    %2263 = vmatprep.mubr.f32.mxu0 0.0
    %2264 = vmatmul.mubr.f32.gmra.mrb[0].mxu0 %v1912
    %v2265 = vpop.f32.mrb[0].mxu0
    %v2266 = vadd.f32 0.0, %v2265
    %v2267 = vpop.f32.mrb[0].mxu0
    %2268 = vdwg.mxu0
    %2270 = vrot.lane.b32.xlu0 %v2198, 32
    %v2271 = vpop.permute.xlu0 %2270
    %v2272 = vsel %vm180, %v2271, 0
    %2274 = vmatprep.subr.mxu0 0.0
    %2275 = vmatpush1.msra.mxu0 %v141
    %2276 = vmatprep.subr.mxu0 0.0
    %2277 = vmatpush1.msra.mxu0 %v142
    %2278 = vmatprep.subr.mxu0 0.0
    %2279 = vmatpush1.msra.mxu0 %v143
    %2280 = vmatprep.subr.mxu0 0.0
    %2281 = vmatpush1.msra.mxu0 %v144
    %2282 = vmatprep.subr.mxu0 0.0
    %2283 = vmatpush1.msra.mxu0 0.0
    %2284 = vmatprep.subr.mxu0 0.0
    %2285 = vmatpush1.msra.mxu0 0.0
    %2286 = vmatprep.subr.mxu0 0.0
    %2287 = vmatpush1.msra.mxu0 0.0
    %2288 = vmatprep.subr.mxu0 0.0
    %2289 = vmatpush1.msra.mxu0 0.0
    %2290 = vmatprep.subr.mxu0 0.0
    %2291 = vmatpush1.msra.mxu0 0.0
    %2292 = vmatprep.subr.mxu0 0.0
    %2293 = vmatpush1.msra.mxu0 0.0
    %2294 = vmatprep.subr.mxu0 0.0
    %2295 = vmatpush1.msra.mxu0 0.0
    %2296 = vmatprep.subr.mxu0 0.0
    %2297 = vmatpush1.msra.mxu0 0.0
    %2298 = vmatprep.subr.mxu0 0.0
    %2299 = vmatpush1.msra.mxu0 0.0
    %2300 = vmatprep.subr.mxu0 0.0
    %2301 = vmatpush1.msra.mxu0 0.0
    %2302 = vmatprep.subr.mxu0 0.0
    %2303 = vmatpush1.msra.mxu0 0.0
    %2304 = vmatprep.subr.mxu0 0.0
    %2305 = vmatpush1.msra.mxu0 0.0
    %2306 = vmatprep.subr.mxu0 0.0
    %2307 = vmatpush1.msra.mxu0 0.0
    %2308 = vmatprep.subr.mxu0 0.0
    %2309 = vmatpush1.msra.mxu0 0.0
    %2310 = vmatprep.subr.mxu0 0.0
    %2311 = vmatpush1.msra.mxu0 0.0
    %2312 = vmatprep.subr.mxu0 0.0
    %2313 = vmatpush1.msra.mxu0 0.0
    %2314 = vmatprep.subr.mxu0 0.0
    %2315 = vmatpush1.msra.mxu0 0.0
    %2316 = vmatprep.subr.mxu0 0.0
    %2317 = vmatpush1.msra.mxu0 0.0
    %2318 = vmatprep.subr.mxu0 0.0
    %2319 = vmatpush1.msra.mxu0 0.0
    %2320 = vmatprep.subr.mxu0 0.0
    %2321 = vmatpush1.msra.mxu0 0.0
    %2322 = vmatprep.subr.mxu0 0.0
    %2323 = vmatpush1.msra.mxu0 0.0
    %2324 = vmatprep.subr.mxu0 0.0
    %2325 = vmatpush1.msra.mxu0 0.0
    %2326 = vmatprep.subr.mxu0 0.0
    %2327 = vmatpush1.msra.mxu0 0.0
    %2328 = vmatprep.subr.mxu0 0.0
    %2329 = vmatpush1.msra.mxu0 0.0
    %2330 = vmatprep.subr.mxu0 0.0
    %2331 = vmatpush1.msra.mxu0 0.0
    %2332 = vmatprep.subr.mxu0 0.0
    %2333 = vmatpush1.msra.mxu0 0.0
    %2334 = vmatprep.subr.mxu0 0.0
    %2335 = vmatpush1.msra.mxu0 0.0
    %2336 = vmatprep.subr.mxu0 0.0
    %2337 = vmatpush1.msra.mxu0 0.0
    %2338 = vmatprep.mubr.f32.mxu0 0.0
    %2339 = vmatmul.mubr.f32.gmra.mrb[0].mxu0 %v2272
    %v2340 = vpop.f32.mrb[0].mxu0
    %v2341 = vadd.f32 %v2266, %v2340
    %v2342 = vpop.f32.mrb[0].mxu0
    %2343 = vdwg.mxu0
    %v2344 = vadd.f32 %v2341, %v158
    %v2345 = vxor.u32 %v2344, 2147483648
    %v2346 = vmul.f32 %v2345, 1.442695
    %v2347 = vpow.pop %v2346
    %v2348 = vadd.f32 %v2347, 1.0
    %v2349 = vrcp.pop %v2348
    %v2350 = vmul.f32 1.0, %v2349
    %v2351 = vtanh.pop %v2344
    %v2352 = vmul.f32 %v2350, %v1902
    %2354 = vrot.lane.b32.xlu0 %v2351, 64
    %v2355 = vpop.permute.xlu0 %2354
    %v2357 = vmul.f32 %v2350, %v2355
    %2359 = vrot.lane.b32.xlu0 %v2357, 32
    %v2360 = vpop.permute.xlu0 %2359
    %v2362 = vadd.f32 %v2352, %v2360
    %v2363 = vtanh.pop %v2362
    %2365 = vrot.lane.b32.xlu0 %v2363, 64
    %v2366 = vpop.permute.xlu0 %2365
    %v2368 = vmul.f32 %v2350, %v2366
    %2370 = vrot.lane.b32.xlu0 %v2368, 32
    %v2371 = vpop.permute.xlu0 %2370
    %v2372 = vsel %vm180, %v2371, 0
    %2374 = vmatprep.subr.mxu0 0.0
    %2375 = vmatpush1.msra.mxu0 %v160
    %2376 = vmatprep.subr.mxu0 0.0
    %2377 = vmatpush1.msra.mxu0 %v161
    %2378 = vmatprep.subr.mxu0 0.0
    %2379 = vmatpush1.msra.mxu0 %v162
    %2380 = vmatprep.subr.mxu0 0.0
    %2381 = vmatpush1.msra.mxu0 %v163
    %2382 = vmatprep.subr.mxu0 0.0
    %2383 = vmatpush1.msra.mxu0 0.0
    %2384 = vmatprep.subr.mxu0 0.0
    %2385 = vmatpush1.msra.mxu0 0.0
    %2386 = vmatprep.subr.mxu0 0.0
    %2387 = vmatpush1.msra.mxu0 0.0
    %2388 = vmatprep.subr.mxu0 0.0
    %2389 = vmatpush1.msra.mxu0 0.0
    %2390 = vmatprep.subr.mxu0 0.0
    %2391 = vmatpush1.msra.mxu0 0.0
    %2392 = vmatprep.subr.mxu0 0.0
    %2393 = vmatpush1.msra.mxu0 0.0
    %2394 = vmatprep.subr.mxu0 0.0
    %2395 = vmatpush1.msra.mxu0 0.0
    %2396 = vmatprep.subr.mxu0 0.0
    %2397 = vmatpush1.msra.mxu0 0.0
    %2398 = vmatprep.subr.mxu0 0.0
    %2399 = vmatpush1.msra.mxu0 0.0
    %2400 = vmatprep.subr.mxu0 0.0
    %2401 = vmatpush1.msra.mxu0 0.0
    %2402 = vmatprep.subr.mxu0 0.0
    %2403 = vmatpush1.msra.mxu0 0.0
    %2404 = vmatprep.subr.mxu0 0.0
    %2405 = vmatpush1.msra.mxu0 0.0
    %2406 = vmatprep.subr.mxu0 0.0
    %2407 = vmatpush1.msra.mxu0 0.0
    %2408 = vmatprep.subr.mxu0 0.0
    %2409 = vmatpush1.msra.mxu0 0.0
    %2410 = vmatprep.subr.mxu0 0.0
    %2411 = vmatpush1.msra.mxu0 0.0
    %2412 = vmatprep.subr.mxu0 0.0
    %2413 = vmatpush1.msra.mxu0 0.0
    %2414 = vmatprep.subr.mxu0 0.0
    %2415 = vmatpush1.msra.mxu0 0.0
    %2416 = vmatprep.subr.mxu0 0.0
    %2417 = vmatpush1.msra.mxu0 0.0
    %2418 = vmatprep.subr.mxu0 0.0
    %2419 = vmatpush1.msra.mxu0 0.0
    %2420 = vmatprep.subr.mxu0 0.0
    %2421 = vmatpush1.msra.mxu0 0.0
    %2422 = vmatprep.subr.mxu0 0.0
    %2423 = vmatpush1.msra.mxu0 0.0
    %2424 = vmatprep.subr.mxu0 0.0
    %2425 = vmatpush1.msra.mxu0 0.0
    %2426 = vmatprep.subr.mxu0 0.0
    %2427 = vmatpush1.msra.mxu0 0.0
    %2428 = vmatprep.subr.mxu0 0.0
    %2429 = vmatpush1.msra.mxu0 0.0
    %2430 = vmatprep.subr.mxu0 0.0
    %2431 = vmatpush1.msra.mxu0 0.0
    %2432 = vmatprep.subr.mxu0 0.0
    %2433 = vmatpush1.msra.mxu0 0.0
    %2434 = vmatprep.subr.mxu0 0.0
    %2435 = vmatpush1.msra.mxu0 0.0
    %2436 = vmatprep.subr.mxu0 0.0
    %2437 = vmatpush1.msra.mxu0 0.0
    %2438 = vmatprep.mubr.f32.mxu0 0.0
    %2439 = vmatmul.mubr.f32.gmra.mrb[0].mxu0 %v2372
    %v2440 = vpop.f32.mrb[0].mxu0
    %v2441 = vadd.f32 %v169, %v2440
    %v2442 = vpop.f32.mrb[0].mxu0
    %2443 = vdwg.mxu0
    %v2444 = vsel %vm114, %v2441, -inf
    %2445 = vmax.xlane.f32.xlu0 %v2444
    %v2446 = vpop.xlane.xlu0 %2445
    %v2447 = vsub.f32 %v2444, %v2446
    %v2448 = vmul.f32 %v2447, 1.442695
    %v2449 = vpow.pop %v2448
    %2450 = vadd.xlane.f32.xlu0 %v2449
    %v2451 = vpop.xlane.xlu0 %2450
    %v2452 = vlog2.pop %v2451
    %v2453 = vmul.f32 %v2452, 0.6931472
    %v2454 = vadd.f32 %v2453, %v2446
    %v2455 = vand.u32 2147483647, %v2441
    %v2456 = vsub.f32 0.0, %v2455
    %v2457 = vmul.f32 %v2456, 1.442695
    %v2458 = vpow.pop %v2457
    %v2459 = vmin.f32 %v2441, 0.0
    %v2460 = vadd.f32 %v2458, 1.0
    %v2461 = vlog2.pop %v2460
    %v2462 = vmul.f32 %v2461, 0.6931472
    %v2463 = vsub.f32 %v2459, %v2462
    %v2464 = vsub.f32 %v2441, %v2454
    %v2465 = vsel %vm115, %v2463, 0.0
    %v2466 = vsel %vm114, %v2464, %v2465
    %vm2467 = vcmp.ge.f32.partialorder %v2441, %v2446
    %vm2468 = vmand %vm114, %vm2467
    %v2469 = vsel %vm2468, %v113, 128
    %v2470 = vand.u32 %v2469, 65535
    %v2471 = vshra.s32 %v2469, 16
    %v2472 = vcvt.s32.f32 %v2470
    %v2473 = vcvt.s32.f32 %v2471
    %2474 = vmin.xlane.f32.xlu0 %v2473
    %v2475 = vpop.xlane.xlu0 %2474
    %vm2476 = vcmp.eq.f32.partialorder %v2473, %v2475
    %v2477 = vsel %vm2476, %v2472, inf
    %2478 = vmin.xlane.f32.xlu0 %v2477
    %v2479 = vpop.xlane.xlu0 %2478
    %v2480 = vcvt.f32.s32 %v2479
    %v2481 = vcvt.f32.s32 %v2475
    %v2482 = vshll.u32 %v2481, 16
    %v2483 = vadd.s32 %v2482, %v2480
    %vm2484 = vcmp.eq.s32.totalorder %v113, %v2483
    %v2485 = vsel %vm2484, 1, 0
    %v2486 = vcvt.s32.f32 %v2485
    %v2487 = vrcp.pop %v2460
    %vm2488 = vcmp.ge.f32.partialorder %v2441, 0.0
    %v2489 = vmul.f32 %v2458, %v2487
    %v2490 = vsel %vm2488, %v2487, %v2489
    %v2491 = vsel %vm115, %v2490, %v2486
    %s2492 = scalar_lea.vmem [#allocation13], 32
    %2493 = vst [vmem:[%s2492] sm:$0xff] %v2466
    %2494 = vmatprep.subr.mxu0 0.0
    %2495 = vmatpush1.msra.mxu0 %v132
    %2496 = vmatprep.subr.mxu0 0.0
    %2497 = vmatpush1.msra.mxu0 %v133
    %2498 = vmatprep.subr.mxu0 0.0
    %2499 = vmatpush1.msra.mxu0 %v134
    %2500 = vmatprep.subr.mxu0 0.0
    %2501 = vmatpush1.msra.mxu0 %v135
    %2502 = vmatprep.subr.mxu0 0.0
    %2503 = vmatpush1.msra.mxu0 0.0
    %2504 = vmatprep.subr.mxu0 0.0
    %2505 = vmatpush1.msra.mxu0 0.0
    %2506 = vmatprep.subr.mxu0 0.0
    %2507 = vmatpush1.msra.mxu0 0.0
    %2508 = vmatprep.subr.mxu0 0.0
    %2509 = vmatpush1.msra.mxu0 0.0
    %2510 = vmatprep.subr.mxu0 0.0
    %2511 = vmatpush1.msra.mxu0 0.0
    %2512 = vmatprep.subr.mxu0 0.0
    %2513 = vmatpush1.msra.mxu0 0.0
    %2514 = vmatprep.subr.mxu0 0.0
    %2515 = vmatpush1.msra.mxu0 0.0
    %2516 = vmatprep.subr.mxu0 0.0
    %2517 = vmatpush1.msra.mxu0 0.0
    %2518 = vmatprep.subr.mxu0 0.0
    %2519 = vmatpush1.msra.mxu0 0.0
    %2520 = vmatprep.subr.mxu0 0.0
    %2521 = vmatpush1.msra.mxu0 0.0
    %2522 = vmatprep.subr.mxu0 0.0
    %2523 = vmatpush1.msra.mxu0 0.0
    %2524 = vmatprep.subr.mxu0 0.0
    %2525 = vmatpush1.msra.mxu0 0.0
    %2526 = vmatprep.subr.mxu0 0.0
    %2527 = vmatpush1.msra.mxu0 0.0
    %2528 = vmatprep.subr.mxu0 0.0
    %2529 = vmatpush1.msra.mxu0 0.0
    %2530 = vmatprep.subr.mxu0 0.0
    %2531 = vmatpush1.msra.mxu0 0.0
    %2532 = vmatprep.subr.mxu0 0.0
    %2533 = vmatpush1.msra.mxu0 0.0
    %2534 = vmatprep.subr.mxu0 0.0
    %2535 = vmatpush1.msra.mxu0 0.0
    %2536 = vmatprep.subr.mxu0 0.0
    %2537 = vmatpush1.msra.mxu0 0.0
    %2538 = vmatprep.subr.mxu0 0.0
    %2539 = vmatpush1.msra.mxu0 0.0
    %2540 = vmatprep.subr.mxu0 0.0
    %2541 = vmatpush1.msra.mxu0 0.0
    %2542 = vmatprep.subr.mxu0 0.0
    %2543 = vmatpush1.msra.mxu0 0.0
    %2544 = vmatprep.subr.mxu0 0.0
    %2545 = vmatpush1.msra.mxu0 0.0
    %2546 = vmatprep.subr.mxu0 0.0
    %2547 = vmatpush1.msra.mxu0 0.0
    %2548 = vmatprep.subr.mxu0 0.0
    %2549 = vmatpush1.msra.mxu0 0.0
    %2550 = vmatprep.subr.mxu0 0.0
    %2551 = vmatpush1.msra.mxu0 0.0
    %2552 = vmatprep.subr.mxu0 0.0
    %2553 = vmatpush1.msra.mxu0 0.0
    %2554 = vmatprep.subr.mxu0 0.0
    %2555 = vmatpush1.msra.mxu0 0.0
    %2556 = vmatprep.subr.mxu0 0.0
    %2557 = vmatpush1.msra.mxu0 0.0
    %2558 = vmatprep.mubr.f32.mxu0 0.0
    %2559 = vmatmul.mubr.f32.gmra.mrb[0].mxu0 %v2272
    %v2560 = vpop.f32.mrb[0].mxu0
    %v2561 = vadd.f32 0.0, %v2560
    %v2562 = vpop.f32.mrb[0].mxu0
    %2563 = vdwg.mxu0
    %2564 = vmatprep.subr.mxu0 0.0
    %2565 = vmatpush1.msra.mxu0 %v116
    %2566 = vmatprep.subr.mxu0 0.0
    %2567 = vmatpush1.msra.mxu0 %v117
    %2568 = vmatprep.subr.mxu0 0.0
    %2569 = vmatpush1.msra.mxu0 %v118
    %2570 = vmatprep.subr.mxu0 0.0
    %2571 = vmatpush1.msra.mxu0 %v119
    %2572 = vmatprep.subr.mxu0 0.0
    %2573 = vmatpush1.msra.mxu0 %v120
    %2574 = vmatprep.subr.mxu0 0.0
    %2575 = vmatpush1.msra.mxu0 %v121
    %2576 = vmatprep.subr.mxu0 0.0
    %2577 = vmatpush1.msra.mxu0 %v122
    %2578 = vmatprep.subr.mxu0 0.0
    %2579 = vmatpush1.msra.mxu0 %v123
    %2580 = vmatprep.subr.mxu0 0.0
    %2581 = vmatpush1.msra.mxu0 %v124
    %2582 = vmatprep.subr.mxu0 0.0
    %2583 = vmatpush1.msra.mxu0 %v125
    %2584 = vmatprep.subr.mxu0 0.0
    %2585 = vmatpush1.msra.mxu0 %v126
    %2586 = vmatprep.subr.mxu0 0.0
    %2587 = vmatpush1.msra.mxu0 %v127
    %2588 = vmatprep.subr.mxu0 0.0
    %2589 = vmatpush1.msra.mxu0 %v128
    %2590 = vmatprep.subr.mxu0 0.0
    %2591 = vmatpush1.msra.mxu0 %v129
    %2592 = vmatprep.subr.mxu0 0.0
    %2593 = vmatpush1.msra.mxu0 %v130
    %2594 = vmatprep.subr.mxu0 0.0
    %2595 = vmatpush1.msra.mxu0 %v131
    %2596 = vmatprep.subr.mxu0 0.0
    %2597 = vmatpush1.msra.mxu0 0.0
    %2598 = vmatprep.subr.mxu0 0.0
    %2599 = vmatpush1.msra.mxu0 0.0
    %2600 = vmatprep.subr.mxu0 0.0
    %2601 = vmatpush1.msra.mxu0 0.0
    %2602 = vmatprep.subr.mxu0 0.0
    %2603 = vmatpush1.msra.mxu0 0.0
    %2604 = vmatprep.subr.mxu0 0.0
    %2605 = vmatpush1.msra.mxu0 0.0
    %2606 = vmatprep.subr.mxu0 0.0
    %2607 = vmatpush1.msra.mxu0 0.0
    %2608 = vmatprep.subr.mxu0 0.0
    %2609 = vmatpush1.msra.mxu0 0.0
    %2610 = vmatprep.subr.mxu0 0.0
    %2611 = vmatpush1.msra.mxu0 0.0
    %2612 = vmatprep.subr.mxu0 0.0
    %2613 = vmatpush1.msra.mxu0 0.0
    %2614 = vmatprep.subr.mxu0 0.0
    %2615 = vmatpush1.msra.mxu0 0.0
    %2616 = vmatprep.subr.mxu0 0.0
    %2617 = vmatpush1.msra.mxu0 0.0
    %2618 = vmatprep.subr.mxu0 0.0
    %2619 = vmatpush1.msra.mxu0 0.0
    %2620 = vmatprep.subr.mxu0 0.0
    %2621 = vmatpush1.msra.mxu0 0.0
    %2622 = vmatprep.subr.mxu0 0.0
    %2623 = vmatpush1.msra.mxu0 0.0
    %2624 = vmatprep.subr.mxu0 0.0
    %2625 = vmatpush1.msra.mxu0 0.0
    %2626 = vmatprep.subr.mxu0 0.0
    %2627 = vmatpush1.msra.mxu0 0.0
    %2628 = vmatprep.mubr.f32.mxu0 0.0
    %2629 = vmatmul.mubr.f32.gmra.mrb[0].mxu0 %v2491
    %v2630 = vpop.f32.mrb[0].mxu0
    %v2631 = vadd.f32 %v2561, %v2630
    %v2632 = vpop.f32.mrb[0].mxu0
    %2633 = vdwg.mxu0
    %v2634 = vadd.f32 %v2631, %v150
    %v2635 = vxor.u32 %v2634, 2147483648
    %v2636 = vmul.f32 %v2635, 1.442695
    %v2637 = vpow.pop %v2636
    %v2638 = vadd.f32 %v2637, 1.0
    %v2639 = vrcp.pop %v2638
    %v2640 = vmul.f32 1.0, %v2639
    %v2641 = vtanh.pop %v2634
    %v2642 = vmul.f32 %v2640, %v2192
    %2644 = vrot.lane.b32.xlu0 %v2641, 64
    %v2645 = vpop.permute.xlu0 %2644
    %v2647 = vmul.f32 %v2640, %v2645
    %2649 = vrot.lane.b32.xlu0 %v2647, 32
    %v2650 = vpop.permute.xlu0 %2649
    %v2652 = vadd.f32 %v2642, %v2650
    %v2653 = vtanh.pop %v2652
    %2655 = vrot.lane.b32.xlu0 %v2653, 64
    %v2656 = vpop.permute.xlu0 %2655
    %v2658 = vmul.f32 %v2640, %v2656
    %2659 = vmatprep.subr.mxu0 0.0
    %2660 = vmatpush1.msra.mxu0 %v137
    %2661 = vmatprep.subr.mxu0 0.0
    %2662 = vmatpush1.msra.mxu0 %v138
    %2663 = vmatprep.subr.mxu0 0.0
    %2664 = vmatpush1.msra.mxu0 %v139
    %2665 = vmatprep.subr.mxu0 0.0
    %2666 = vmatpush1.msra.mxu0 %v140
    %2667 = vmatprep.subr.mxu0 0.0
    %2668 = vmatpush1.msra.mxu0 0.0
    %2669 = vmatprep.subr.mxu0 0.0
    %2670 = vmatpush1.msra.mxu0 0.0
    %2671 = vmatprep.subr.mxu0 0.0
    %2672 = vmatpush1.msra.mxu0 0.0
    %2673 = vmatprep.subr.mxu0 0.0
    %2674 = vmatpush1.msra.mxu0 0.0
    %2675 = vmatprep.subr.mxu0 0.0
    %2676 = vmatpush1.msra.mxu0 0.0
    %2677 = vmatprep.subr.mxu0 0.0
    %2678 = vmatpush1.msra.mxu0 0.0
    %2679 = vmatprep.subr.mxu0 0.0
    %2680 = vmatpush1.msra.mxu0 0.0
    %2681 = vmatprep.subr.mxu0 0.0
    %2682 = vmatpush1.msra.mxu0 0.0
    %2683 = vmatprep.subr.mxu0 0.0
    %2684 = vmatpush1.msra.mxu0 0.0
    %2685 = vmatprep.subr.mxu0 0.0
    %2686 = vmatpush1.msra.mxu0 0.0
    %2687 = vmatprep.subr.mxu0 0.0
    %2688 = vmatpush1.msra.mxu0 0.0
    %2689 = vmatprep.subr.mxu0 0.0
    %2690 = vmatpush1.msra.mxu0 0.0
    %2691 = vmatprep.subr.mxu0 0.0
    %2692 = vmatpush1.msra.mxu0 0.0
    %2693 = vmatprep.subr.mxu0 0.0
    %2694 = vmatpush1.msra.mxu0 0.0
    %2695 = vmatprep.subr.mxu0 0.0
    %2696 = vmatpush1.msra.mxu0 0.0
    %2697 = vmatprep.subr.mxu0 0.0
    %2698 = vmatpush1.msra.mxu0 0.0
    %2699 = vmatprep.subr.mxu0 0.0
    %2700 = vmatpush1.msra.mxu0 0.0
    %2701 = vmatprep.subr.mxu0 0.0
    %2702 = vmatpush1.msra.mxu0 0.0
    %2703 = vmatprep.subr.mxu0 0.0
    %2704 = vmatpush1.msra.mxu0 0.0
    %2705 = vmatprep.subr.mxu0 0.0
    %2706 = vmatpush1.msra.mxu0 0.0
    %2707 = vmatprep.subr.mxu0 0.0
    %2708 = vmatpush1.msra.mxu0 0.0
    %2709 = vmatprep.subr.mxu0 0.0
    %2710 = vmatpush1.msra.mxu0 0.0
    %2711 = vmatprep.subr.mxu0 0.0
    %2712 = vmatpush1.msra.mxu0 0.0
    %2713 = vmatprep.subr.mxu0 0.0
    %2714 = vmatpush1.msra.mxu0 0.0
    %2715 = vmatprep.subr.mxu0 0.0
    %2716 = vmatpush1.msra.mxu0 0.0
    %2717 = vmatprep.subr.mxu0 0.0
    %2718 = vmatpush1.msra.mxu0 0.0
    %2719 = vmatprep.subr.mxu0 0.0
    %2720 = vmatpush1.msra.mxu0 0.0
    %2721 = vmatprep.subr.mxu0 0.0
    %2722 = vmatpush1.msra.mxu0 0.0
    %2723 = vmatprep.mubr.f32.mxu0 0.0
    %2724 = vmatmul.mubr.f32.gmra.mrb[0].mxu0 %v2372
    %v2725 = vpop.f32.mrb[0].mxu0
    %v2726 = vadd.f32 0.0, %v2725
    %v2727 = vpop.f32.mrb[0].mxu0
    %2728 = vdwg.mxu0
    %2730 = vrot.lane.b32.xlu0 %v2658, 32
    %v2731 = vpop.permute.xlu0 %2730
    %v2732 = vsel %vm180, %v2731, 0
    %2734 = vmatprep.subr.mxu0 0.0
    %2735 = vmatpush1.msra.mxu0 %v141
    %2736 = vmatprep.subr.mxu0 0.0
    %2737 = vmatpush1.msra.mxu0 %v142
    %2738 = vmatprep.subr.mxu0 0.0
    %2739 = vmatpush1.msra.mxu0 %v143
    %2740 = vmatprep.subr.mxu0 0.0
    %2741 = vmatpush1.msra.mxu0 %v144
    %2742 = vmatprep.subr.mxu0 0.0
    %2743 = vmatpush1.msra.mxu0 0.0
    %2744 = vmatprep.subr.mxu0 0.0
    %2745 = vmatpush1.msra.mxu0 0.0
    %2746 = vmatprep.subr.mxu0 0.0
    %2747 = vmatpush1.msra.mxu0 0.0
    %2748 = vmatprep.subr.mxu0 0.0
    %2749 = vmatpush1.msra.mxu0 0.0
    %2750 = vmatprep.subr.mxu0 0.0
    %2751 = vmatpush1.msra.mxu0 0.0
    %2752 = vmatprep.subr.mxu0 0.0
    %2753 = vmatpush1.msra.mxu0 0.0
    %2754 = vmatprep.subr.mxu0 0.0
    %2755 = vmatpush1.msra.mxu0 0.0
    %2756 = vmatprep.subr.mxu0 0.0
    %2757 = vmatpush1.msra.mxu0 0.0
    %2758 = vmatprep.subr.mxu0 0.0
    %2759 = vmatpush1.msra.mxu0 0.0
    %2760 = vmatprep.subr.mxu0 0.0
    %2761 = vmatpush1.msra.mxu0 0.0
    %2762 = vmatprep.subr.mxu0 0.0
    %2763 = vmatpush1.msra.mxu0 0.0
    %2764 = vmatprep.subr.mxu0 0.0
    %2765 = vmatpush1.msra.mxu0 0.0
    %2766 = vmatprep.subr.mxu0 0.0
    %2767 = vmatpush1.msra.mxu0 0.0
    %2768 = vmatprep.subr.mxu0 0.0
    %2769 = vmatpush1.msra.mxu0 0.0
    %2770 = vmatprep.subr.mxu0 0.0
    %2771 = vmatpush1.msra.mxu0 0.0
    %2772 = vmatprep.subr.mxu0 0.0
    %2773 = vmatpush1.msra.mxu0 0.0
    %2774 = vmatprep.subr.mxu0 0.0
    %2775 = vmatpush1.msra.mxu0 0.0
    %2776 = vmatprep.subr.mxu0 0.0
    %2777 = vmatpush1.msra.mxu0 0.0
    %2778 = vmatprep.subr.mxu0 0.0
    %2779 = vmatpush1.msra.mxu0 0.0
    %2780 = vmatprep.subr.mxu0 0.0
    %2781 = vmatpush1.msra.mxu0 0.0
    %2782 = vmatprep.subr.mxu0 0.0
    %2783 = vmatpush1.msra.mxu0 0.0
    %2784 = vmatprep.subr.mxu0 0.0
    %2785 = vmatpush1.msra.mxu0 0.0
    %2786 = vmatprep.subr.mxu0 0.0
    %2787 = vmatpush1.msra.mxu0 0.0
    %2788 = vmatprep.subr.mxu0 0.0
    %2789 = vmatpush1.msra.mxu0 0.0
    %2790 = vmatprep.subr.mxu0 0.0
    %2791 = vmatpush1.msra.mxu0 0.0
    %2792 = vmatprep.subr.mxu0 0.0
    %2793 = vmatpush1.msra.mxu0 0.0
    %2794 = vmatprep.subr.mxu0 0.0
    %2795 = vmatpush1.msra.mxu0 0.0
    %2796 = vmatprep.subr.mxu0 0.0
    %2797 = vmatpush1.msra.mxu0 0.0
    %2798 = vmatprep.mubr.f32.mxu0 0.0
    %2799 = vmatmul.mubr.f32.gmra.mrb[0].mxu0 %v2732
    %v2800 = vpop.f32.mrb[0].mxu0
    %v2801 = vadd.f32 %v2726, %v2800
    %v2802 = vpop.f32.mrb[0].mxu0
    %2803 = vdwg.mxu0
    %v2804 = vadd.f32 %v2801, %v158
    %v2805 = vxor.u32 %v2804, 2147483648
    %v2806 = vmul.f32 %v2805, 1.442695
    %v2807 = vpow.pop %v2806
    %v2808 = vadd.f32 %v2807, 1.0
    %v2809 = vrcp.pop %v2808
    %v2810 = vmul.f32 1.0, %v2809
    %v2811 = vtanh.pop %v2804
    %v2812 = vmul.f32 %v2810, %v2362
    %2814 = vrot.lane.b32.xlu0 %v2811, 64
    %v2815 = vpop.permute.xlu0 %2814
    %v2817 = vmul.f32 %v2810, %v2815
    %2819 = vrot.lane.b32.xlu0 %v2817, 32
    %v2820 = vpop.permute.xlu0 %2819
    %v2822 = vadd.f32 %v2812, %v2820
    %v2823 = vtanh.pop %v2822
    %2825 = vrot.lane.b32.xlu0 %v2823, 64
    %v2826 = vpop.permute.xlu0 %2825
    %v2828 = vmul.f32 %v2810, %v2826
    %2830 = vrot.lane.b32.xlu0 %v2828, 32
    %v2831 = vpop.permute.xlu0 %2830
    %v2832 = vsel %vm180, %v2831, 0
    %2834 = vmatprep.subr.mxu0 0.0
    %2835 = vmatpush1.msra.mxu0 %v160
    %2836 = vmatprep.subr.mxu0 0.0
    %2837 = vmatpush1.msra.mxu0 %v161
    %2838 = vmatprep.subr.mxu0 0.0
    %2839 = vmatpush1.msra.mxu0 %v162
    %2840 = vmatprep.subr.mxu0 0.0
    %2841 = vmatpush1.msra.mxu0 %v163
    %2842 = vmatprep.subr.mxu0 0.0
    %2843 = vmatpush1.msra.mxu0 0.0
    %2844 = vmatprep.subr.mxu0 0.0
    %2845 = vmatpush1.msra.mxu0 0.0
    %2846 = vmatprep.subr.mxu0 0.0
    %2847 = vmatpush1.msra.mxu0 0.0
    %2848 = vmatprep.subr.mxu0 0.0
    %2849 = vmatpush1.msra.mxu0 0.0
    %2850 = vmatprep.subr.mxu0 0.0
    %2851 = vmatpush1.msra.mxu0 0.0
    %2852 = vmatprep.subr.mxu0 0.0
    %2853 = vmatpush1.msra.mxu0 0.0
    %2854 = vmatprep.subr.mxu0 0.0
    %2855 = vmatpush1.msra.mxu0 0.0
    %2856 = vmatprep.subr.mxu0 0.0
    %2857 = vmatpush1.msra.mxu0 0.0
    %2858 = vmatprep.subr.mxu0 0.0
    %2859 = vmatpush1.msra.mxu0 0.0
    %2860 = vmatprep.subr.mxu0 0.0
    %2861 = vmatpush1.msra.mxu0 0.0
    %2862 = vmatprep.subr.mxu0 0.0
    %2863 = vmatpush1.msra.mxu0 0.0
    %2864 = vmatprep.subr.mxu0 0.0
    %2865 = vmatpush1.msra.mxu0 0.0
    %2866 = vmatprep.subr.mxu0 0.0
    %2867 = vmatpush1.msra.mxu0 0.0
    %2868 = vmatprep.subr.mxu0 0.0
    %2869 = vmatpush1.msra.mxu0 0.0
    %2870 = vmatprep.subr.mxu0 0.0
    %2871 = vmatpush1.msra.mxu0 0.0
    %2872 = vmatprep.subr.mxu0 0.0
    %2873 = vmatpush1.msra.mxu0 0.0
    %2874 = vmatprep.subr.mxu0 0.0
    %2875 = vmatpush1.msra.mxu0 0.0
    %2876 = vmatprep.subr.mxu0 0.0
    %2877 = vmatpush1.msra.mxu0 0.0
    %2878 = vmatprep.subr.mxu0 0.0
    %2879 = vmatpush1.msra.mxu0 0.0
    %2880 = vmatprep.subr.mxu0 0.0
    %2881 = vmatpush1.msra.mxu0 0.0
    %2882 = vmatprep.subr.mxu0 0.0
    %2883 = vmatpush1.msra.mxu0 0.0
    %2884 = vmatprep.subr.mxu0 0.0
    %2885 = vmatpush1.msra.mxu0 0.0
    %2886 = vmatprep.subr.mxu0 0.0
    %2887 = vmatpush1.msra.mxu0 0.0
    %2888 = vmatprep.subr.mxu0 0.0
    %2889 = vmatpush1.msra.mxu0 0.0
    %2890 = vmatprep.subr.mxu0 0.0
    %2891 = vmatpush1.msra.mxu0 0.0
    %2892 = vmatprep.subr.mxu0 0.0
    %2893 = vmatpush1.msra.mxu0 0.0
    %2894 = vmatprep.subr.mxu0 0.0
    %2895 = vmatpush1.msra.mxu0 0.0
    %2896 = vmatprep.subr.mxu0 0.0
    %2897 = vmatpush1.msra.mxu0 0.0
    %2898 = vmatprep.mubr.f32.mxu0 0.0
    %2899 = vmatmul.mubr.f32.gmra.mrb[0].mxu0 %v2832
    %v2900 = vpop.f32.mrb[0].mxu0
    %v2901 = vadd.f32 %v169, %v2900
    %v2902 = vpop.f32.mrb[0].mxu0
    %2903 = vdwg.mxu0
    %v2904 = vsel %vm114, %v2901, -inf
    %2905 = vmax.xlane.f32.xlu0 %v2904
    %v2906 = vpop.xlane.xlu0 %2905
    %v2907 = vsub.f32 %v2904, %v2906
    %v2908 = vmul.f32 %v2907, 1.442695
    %v2909 = vpow.pop %v2908
    %2910 = vadd.xlane.f32.xlu0 %v2909
    %v2911 = vpop.xlane.xlu0 %2910
    %v2912 = vlog2.pop %v2911
    %v2913 = vmul.f32 %v2912, 0.6931472
    %v2914 = vadd.f32 %v2913, %v2906
    %v2915 = vand.u32 2147483647, %v2901
    %v2916 = vsub.f32 0.0, %v2915
    %v2917 = vmul.f32 %v2916, 1.442695
    %v2918 = vpow.pop %v2917
    %v2919 = vmin.f32 %v2901, 0.0
    %v2920 = vadd.f32 %v2918, 1.0
    %v2921 = vlog2.pop %v2920
    %v2922 = vmul.f32 %v2921, 0.6931472
    %v2923 = vsub.f32 %v2919, %v2922
    %v2924 = vsub.f32 %v2901, %v2914
    %v2925 = vsel %vm115, %v2923, 0.0
    %v2926 = vsel %vm114, %v2924, %v2925
    %s2927 = scalar_lea.vmem [#allocation13], 40
    %2928 = vst [vmem:[%s2927] sm:$0xff] %v2926
    // Predicated region
    $region58: #{tpu_custom_call.1} parent=1 // pred_check
      _
    $region59: #{tpu_custom_call.1} parent=1 // pred_check_branch
      %2930 = sbr.rel (0) target = $region61
    $region60: #{tpu_custom_call.1} parent=1 // pred_region
      %s2932 = ssub.s32 768, 768
      %2933 = vsyncadd [#allocation4], %s2932
      %s2934 = sshll.u32 [#allocation13], 4
      %s2935 = int_to_ptr.vmem [resolvable:$true] %s2934
      %2940 = dma.vmem_to_hbm [thread:$0]  %s2935, 768, %s8, [#allocation4], 128, 128, 8
    $region61: #{tpu_custom_call.1} parent=1 // pred_fallthru
      _
    // Predicated region
    $region62: #{tpu_custom_call.1} parent=1 // pred_check
      _
    $region63: #{tpu_custom_call.1} parent=1 // pred_check_branch
      %2942 = sbr.rel (0) target = $region65
    $region64: #{tpu_custom_call.1} parent=1 // pred_region
      %2943 = dma.done [#allocation4], 768
    $region65: #{tpu_custom_call.1} parent=1 // pred_fallthru
      _
    %2944 = vsyncpa [#allocation3], 1
    %2945 = vsyncpa [#allocation6], 1
    %2946 = vsyncpa [#allocation9], 1
    %2947 = vsyncpa [#allocation12], 1
    %2948 = vsyncpa [#allocation4], 1

</llo_original>
